<compile_context>
chip_gen: v6e
topology: v6e:2x2x1
jax: 0.10.0
libtpu: 0.0.40
codegen_flags: <defaults>
</compile_context>

<pallas_src>
import jax
import jax.numpy as jnp
from jax.experimental import pallas as pl
from jax.experimental.pallas import tpu as pltpu


def _round_up(x, m):
    return (x + m - 1) // m * m


# -----------------------------------------------------------------------------
# Fused multi-layer QConv kernel.
# grid = (num_layers, num_edge_tiles); node features resident in VMEM scratch.
# -----------------------------------------------------------------------------
def make_qgnn_kernel(n_pad, fp, out_f, e_tile):
    neg_slope = 0.01  # torch F.leaky_relu default

    def kernel(srcc_ref, dstc_ref, revc_ref, dstr_ref, w1e_ref, w1h_ref,
               w2h_ref, w2n_ref, b2_ref, invdeg_ref, h0_ref, out_ref,
               h_scr, acc_scr, hw1_scr, hw2_scr, copy_sem):
        # srcc_ref  : (e_tile, 1) int32   edge source ids  (col layout)
        # dstc_ref  : (e_tile, 1) int32   edge dest   ids  (col layout, feature)
        # revc_ref  : (e_tile, 1) int32   edge reversed flag
        # dstr_ref  : (1, e_tile) int32   edge dest ids (row layout, scatter;
        #                                 padded edges carry sentinel n_pad)
        # w1e_ref   : (8, inter)          linear1 edge-block rows 0..2 (padded)
        # w1h_ref   : (fp, inter)         linear1 h-block (zero-padded rows)
        # w2h_ref   : (fp, out_f)         linear2 h-block (zero-padded rows)
        # w2n_ref   : (inter, out_f)      linear2 h_N-block
        # b2_ref    : (1, out_f)          linear2 bias
        # invdeg_ref: (n_pad, 1)          1 / max(in_degree, 1)
        # h0_ref    : (n_pad, fp) HBM     initial node features (embedding)
        # h_scr     : (n_pad, fp)   VMEM  resident node features
        # acc_scr   : (n_pad, inter) VMEM edge scatter-sum accumulator
        # hw1_scr   : (n_pad, inter) VMEM h @ W1_h   (hoisted, per layer)
        # hw2_scr   : (n_pad, out_f) VMEM h @ W2_h   (hoisted, per layer)
        l = pl.program_id(0)
        e = pl.program_id(1)
        last_l = pl.num_programs(0) - 1
        last_e = pl.num_programs(1) - 1

        # one-time: DMA initial node features HBM -> resident VMEM table
        @pl.when((l == 0) & (e == 0))
        def _():
            cp = pltpu.make_async_copy(h0_ref, h_scr, copy_sem)
            cp.start()
            cp.wait()

        # per-layer init: zero accumulator + hoist the two h-dependent matmuls
        # (independent of the edge reduction; overlap with edge streaming).
        @pl.when(e == 0)
        def _():
            acc_scr[...] = jnp.zeros_like(acc_scr)
            h = h_scr[...]
            hw1_scr[...] = jnp.dot(h, w1h_ref[...],
                                   preferred_element_type=jnp.float32)
            hw2_scr[...] = jnp.dot(h, w2h_ref[...],
                                   preferred_element_type=jnp.float32)

        # ---- message passing for this edge tile ----
        src_c = srcc_ref[...]                   # (e_tile, 1)
        dst_c = dstc_ref[...]                   # (e_tile, 1)
        rev_c = revc_ref[...]                   # (e_tile, 1)
        dst_r = dstr_ref[...]                   # (1, e_tile)

        # gather (h @ W1_h)[src] via in-kernel one-hot (sel @ (h@W1h))
        lane_nodes = jax.lax.broadcasted_iota(jnp.int32, (e_tile, n_pad), 1)
        sel = (lane_nodes == src_c).astype(jnp.float32)        # (e_tile, n_pad)
        tmp = jnp.dot(sel, hw1_scr[...],
                      preferred_element_type=jnp.float32)      # (e_tile, inter)

        # in-kernel edge-feature term: [src, dst, rev] @ W1_edge^T (3 FMAs)
        w1e = w1e_ref[...]
        tmp = tmp + src_c.astype(jnp.float32) * w1e[0:1, :]
        tmp = tmp + dst_c.astype(jnp.float32) * w1e[1:2, :]
        tmp = tmp + rev_c.astype(jnp.float32) * w1e[2:3, :]
        tmp = jnp.where(tmp > 0, tmp, neg_slope * tmp)         # leaky_relu

        # scatter-add onto destination nodes (padded edges: dst == n_pad
        # sentinel never matches -> masked out)
        sub_nodes = jax.lax.broadcasted_iota(jnp.int32, (n_pad, e_tile), 0)
        scat = (sub_nodes == dst_r).astype(jnp.float32)        # (n_pad, e_tile)
        acc_scr[...] += jnp.dot(scat, tmp,
                                preferred_element_type=jnp.float32)

        # ---- finalize this layer on the last edge tile ----
        @pl.when(e == last_e)
        def _():
            h_n = acc_scr[...] * invdeg_ref[...]               # mean over in-edges
            new_h = (hw2_scr[...]
                     + jnp.dot(h_n, w2n_ref[...],
                               preferred_element_type=jnp.float32)
                     + b2_ref[...])
            new_h = jnp.maximum(new_h, 0.0)                    # (n_pad, out_f)
            h_scr[:, :out_f] = new_h
            if fp > out_f:  # static: keep padded feature columns at zero
                h_scr[:, out_f:] = jnp.zeros((n_pad, fp - out_f), jnp.float32)

        @pl.when((e == last_e) & (l == last_l))
        def _():
            out_ref[...] = h_scr[:, :out_f]

    return kernel


# -----------------------------------------------------------------------------
# One-time parameter preparation (transposes / splits / zero padding).
# -----------------------------------------------------------------------------
def prepare_qgnn_params(emb, layers, in_feats, h_feats, inter_dim):
    fp = max(in_feats, h_feats)
    w1h, w1e, w2h, w2n, b2s = [], [], [], [], []
    f_in = in_feats
    for (w1, w2, b2) in layers:
        w1h.append(jnp.zeros((fp, inter_dim), jnp.float32).at[:f_in].set(w1[:, :f_in].T))
        w1e.append(jnp.zeros((8, inter_dim), jnp.float32).at[:3].set(w1[:, f_in:].T))
        w2h.append(jnp.zeros((fp, h_feats), jnp.float32).at[:f_in].set(w2[:, :f_in].T))
        w2n.append(jnp.asarray(w2[:, f_in:].T, jnp.float32))            # (inter, out)
        b2s.append(jnp.asarray(b2[None, :], jnp.float32))               # (1, out)
        f_in = h_feats
    return dict(
        emb=jnp.asarray(emb, jnp.float32),
        in_feats=in_feats, fp=fp, inter=inter_dim, out_f=h_feats,
        num_layers=len(layers),
        w1h=jnp.stack(w1h), w1e=jnp.stack(w1e),
        w2h=jnp.stack(w2h), w2n=jnp.stack(w2n), b2=jnp.stack(b2s))


# -----------------------------------------------------------------------------
# QGNN forward: JAX glue (embedding lookup, degrees, padding) + fused kernel.
# -----------------------------------------------------------------------------
def qgnn_forward(gate_type, src, dst, reversed_flag, params, *, e_tile=256):
    n_nodes = gate_type.shape[0]
    n_edges = src.shape[0]
    fp, inter, out_f = params["fp"], params["inter"], params["out_f"]
    L = params["num_layers"]

    n_pad = _round_up(max(n_nodes, 128), 128)       # lane/K dim stays full
    e_pad = _round_up(max(n_edges, e_tile), e_tile)
    n_et = e_pad // e_tile

    # node features: embedding lookup, zero-padded to (n_pad, fp)
    h0 = jnp.zeros((n_pad, fp), jnp.float32)
    h0 = h0.at[:n_nodes, :params["in_feats"]].set(params["emb"][gate_type])

    # in-degree via index scatter-add (no dense matrices)
    deg = jnp.zeros((n_nodes,), jnp.float32).at[dst].add(1.0)
    inv_deg = jnp.zeros((n_pad, 1), jnp.float32).at[:n_nodes, 0].set(
        1.0 / jnp.maximum(deg, 1.0))

    # tiny per-edge int32 tiles; padded edges get scatter-dst = n_pad sentinel
    src_c = jnp.zeros((e_pad, 1), jnp.int32).at[:n_edges, 0].set(src.astype(jnp.int32))
    dst_c = jnp.zeros((e_pad, 1), jnp.int32).at[:n_edges, 0].set(dst.astype(jnp.int32))
    rev_c = jnp.zeros((e_pad, 1), jnp.int32).at[:n_edges, 0].set(
        reversed_flag.astype(jnp.int32))
    dst_r = jnp.full((1, e_pad), n_pad, jnp.int32).at[0, :n_edges].set(
        dst.astype(jnp.int32))

    kernel = make_qgnn_kernel(n_pad, fp, out_f, e_tile)

    grid_spec = pltpu.PrefetchScalarGridSpec(
        num_scalar_prefetch=0,
        grid=(L, n_et),
        in_specs=[
            pl.BlockSpec((e_tile, 1), lambda l, e: (e, 0)),                # src col
            pl.BlockSpec((e_tile, 1), lambda l, e: (e, 0)),                # dst col
            pl.BlockSpec((e_tile, 1), lambda l, e: (e, 0)),                # rev col
            pl.BlockSpec((1, e_tile), lambda l, e: (0, e)),                # dst row
            pl.BlockSpec((None, 8, inter), lambda l, e: (l, 0, 0)),        # W1 edge-block
            pl.BlockSpec((None, fp, inter), lambda l, e: (l, 0, 0)),       # W1 h-block
            pl.BlockSpec((None, fp, out_f), lambda l, e: (l, 0, 0)),       # W2 h-block
            pl.BlockSpec((None, inter, out_f), lambda l, e: (l, 0, 0)),    # W2 h_N-block
            pl.BlockSpec((None, 1, out_f), lambda l, e: (l, 0, 0)),        # b2
            pl.BlockSpec((n_pad, 1), lambda l, e: (0, 0)),                 # 1/deg
            pl.BlockSpec(memory_space=pl.ANY),                             # h0 (HBM)
        ],
        out_specs=pl.BlockSpec((n_pad, out_f), lambda l, e: (0, 0)),
        scratch_shapes=[
            pltpu.VMEM((n_pad, fp), jnp.float32),        # resident node features
            pltpu.VMEM((n_pad, inter), jnp.float32),     # edge-sum accumulator
            pltpu.VMEM((n_pad, inter), jnp.float32),     # hoisted h @ W1_h
            pltpu.VMEM((n_pad, out_f), jnp.float32),     # hoisted h @ W2_h
            pltpu.SemaphoreType.DMA(()),                 # one-shot h0 copy sem
        ],
    )

    # TODO(synk): re-budget vmem_limit_bytes / add node-chunked contraction for
    # large graphs on v7x (64 MiB VMEM); 32 MiB is ample for these shapes.
    out = pl.pallas_call(
        kernel,
        out_shape=jax.ShapeDtypeStruct((n_pad, out_f), jnp.float32),
        grid_spec=grid_spec,
        compiler_params=pltpu.CompilerParams(
            dimension_semantics=("arbitrary", "arbitrary"),
            vmem_limit_bytes=32 * 1024 * 1024),
    )(src_c, dst_c, rev_c, dst_r, params["w1e"], params["w1h"], params["w2h"],
      params["w2n"], params["b2"], inv_deg, h0)
    return out[:n_nodes]


# -----------------------------------------------------------------------------
# Parameter init (matches module shapes; xavier_normal gain=relu, torch-like bias)
# -----------------------------------------------------------------------------
def xavier_normal(key, shape, gain):
    fan_out, fan_in = shape
    std = gain * (2.0 / (fan_in + fan_out)) ** 0.5
    return std * jax.random.normal(key, shape, dtype=jnp.float32)


def init_qgnn(key, num_layers, in_feats, h_feats, inter_dim):
    gain = 2.0 ** 0.5  # nn.init.calculate_gain('relu')
    keys = jax.random.split(key, 1 + 3 * num_layers)
    emb = jax.random.normal(keys[0], (in_feats, in_feats), dtype=jnp.float32)
    layers = []
    f_in = in_feats
    for i in range(num_layers):
        k1, k2, k3 = keys[1 + 3 * i: 4 + 3 * i]
        w1 = xavier_normal(k1, (inter_dim, f_in + 3), gain)           # linear1 (no bias)
        w2 = xavier_normal(k2, (h_feats, f_in + inter_dim), gain)     # linear2 weight
        bound = 1.0 / (f_in + inter_dim) ** 0.5                       # torch Linear bias init
        b2 = jax.random.uniform(k3, (h_feats,), jnp.float32, -bound, bound)
        layers.append((w1, w2, b2))
        f_in = h_feats
    return emb, layers


# -----------------------------------------------------------------------------
# Pure-JAX reference (mirrors the torch/DGL semantics) for validation.
# -----------------------------------------------------------------------------
def qgnn_reference(gate_type, src, dst, reversed_flag, emb, layers):
    n_nodes = gate_type.shape[0]
    h = emb[gate_type]
    w_edge = jnp.stack([src.astype(jnp.float32), dst.astype(jnp.float32),
                        reversed_flag.astype(jnp.float32)], axis=1)
    for (w1, w2, b2) in layers:
        m = jnp.concatenate([h[src], w_edge], axis=1)
        tmp = jax.nn.leaky_relu(m @ w1.T, 0.01)
        deg = jnp.zeros((n_nodes,), jnp.float32).at[dst].add(1.0)
        summed = jnp.zeros((n_nodes, tmp.shape[1]), jnp.float32).at[dst].add(tmp)
        h_n = summed / jnp.maximum(deg, 1.0)[:, None]
        h = jax.nn.relu(jnp.concatenate([h, h_n], axis=1) @ w2.T + b2)
    return h


# -----------------------------------------------------------------------------
if __name__ == "__main__":
    num_layers, in_feats, h_feats, inter_dim = 3, 8, 32, 16
    n_nodes = 150  # ring + reversed edges -> E = 300 -> 2 edge tiles of 256

    key = jax.random.PRNGKey(0)
    k_param, k_gate = jax.random.split(key)
    emb, layers = init_qgnn(k_param, num_layers, in_feats, h_feats, inter_dim)
    params = prepare_qgnn_params(emb, layers, in_feats, h_feats, inter_dim)

    gate_type = jax.random.randint(k_gate, (n_nodes,), 0, in_feats, dtype=jnp.int32)
    fwd_src = jnp.arange(n_nodes, dtype=jnp.int32)
    fwd_dst = (fwd_src + 1) % n_nodes
    src = jnp.concatenate([fwd_src, fwd_dst])
    dst = jnp.concatenate([fwd_dst, fwd_src])
    reversed_flag = jnp.concatenate([jnp.zeros((n_nodes,), jnp.int32),
                                     jnp.ones((n_nodes,), jnp.int32)])

    out = qgnn_forward(gate_type, src, dst, reversed_flag, params)
    out = jax.block_until_ready(out)

    ref = qgnn_reference(gate_type, src, dst, reversed_flag, emb, layers)
    assert out.shape == (n_nodes, h_feats)
    max_err = float(jnp.max(jnp.abs(out - ref)))
    # Edge features are raw node indices, so activations reach O(1e3); allow a
    # correspondingly scaled absolute tolerance on top of the relative check.
    assert jnp.allclose(out, ref, atol=1e-3, rtol=1e-4), max_err

    print("KERNEL_OK")
</pallas_src>

<mosaic_0001>
module attributes {stable_mosaic.version = 11 : i64} {
  func.func @kernel(%arg0: i32, %arg1: i32, %arg2: memref<256x1xi32, #tpu.memory_space<vmem>>, %arg3: memref<256x1xi32, #tpu.memory_space<vmem>>, %arg4: memref<256x1xi32, #tpu.memory_space<vmem>>, %arg5: memref<1x256xi32, #tpu.memory_space<vmem>>, %arg6: memref<1x8x16xf32, #tpu.memory_space<vmem>>, %arg7: memref<1x32x16xf32, #tpu.memory_space<vmem>>, %arg8: memref<1x32x32xf32, #tpu.memory_space<vmem>>, %arg9: memref<1x16x32xf32, #tpu.memory_space<vmem>>, %arg10: memref<1x1x32xf32, #tpu.memory_space<vmem>>, %arg11: memref<256x1xf32, #tpu.memory_space<vmem>>, %arg12: memref<256x32xf32, #tpu.memory_space<any>>, %arg13: memref<256x32xf32, #tpu.memory_space<vmem>>, %arg14: memref<256x32xf32, #tpu.memory_space<vmem>>, %arg15: memref<256x16xf32, #tpu.memory_space<vmem>>, %arg16: memref<256x16xf32, #tpu.memory_space<vmem>>, %arg17: memref<256x32xf32, #tpu.memory_space<vmem>>, %arg18: memref<!tpu.dma_semaphore, #tpu.memory_space<semaphore_mem>>) attributes {dimension_semantics = [#tpu.dimension_semantics<arbitrary>, #tpu.dimension_semantics<arbitrary>], iteration_bounds = array<i64: 3, 2>, scalar_prefetch = 0 : i64, scratch_operands = 5 : i64, tpu.core_type = #tpu.core_type<tc>, window_params = [{transform_indices = @transform_0, window_bounds = array<i64: 256, 1>}, {transform_indices = @transform_1, window_bounds = array<i64: 256, 1>}, {transform_indices = @transform_2, window_bounds = array<i64: 256, 1>}, {transform_indices = @transform_3, window_bounds = array<i64: 1, 256>}, {transform_indices = @transform_4, window_bounds = array<i64: 1, 8, 16>}, {transform_indices = @transform_5, window_bounds = array<i64: 1, 32, 16>}, {transform_indices = @transform_6, window_bounds = array<i64: 1, 32, 32>}, {transform_indices = @transform_7, window_bounds = array<i64: 1, 16, 32>}, {transform_indices = @transform_8, window_bounds = array<i64: 1, 1, 32>}, {pipeline_mode = #tpu.pipeline_mode<synchronous>, transform_indices = @transform_9, window_bounds = array<i64: 256, 1>}, {}, {pipeline_mode = #tpu.pipeline_mode<synchronous>, transform_indices = @transform_11, window_bounds = array<i64: 256, 32>}]} {
    %c0_i32 = arith.constant 0 : i32
    %0 = arith.cmpi eq, %arg0, %c0_i32 : i32
    %c0_i32_0 = arith.constant 0 : i32
    %1 = arith.cmpi eq, %arg1, %c0_i32_0 : i32
    %2 = arith.andi %0, %1 : i1
    %3 = arith.extui %2 : i1 to i32
    %c0_i32_1 = arith.constant 0 : i32
    %4 = arith.cmpi ne, %3, %c0_i32_1 : i32
    scf.if %4 {
      tpu.enqueue_dma source(%arg12 : memref<256x32xf32, #tpu.memory_space<any>>) target(%arg14 : memref<256x32xf32, #tpu.memory_space<vmem>>) target_semaphore(%arg18 : memref<!tpu.dma_semaphore, #tpu.memory_space<semaphore_mem>>)
      tpu.wait_dma2 semaphore(%arg18 : memref<!tpu.dma_semaphore, #tpu.memory_space<semaphore_mem>>) src(%arg12 : memref<256x32xf32, #tpu.memory_space<any>>) dst(%arg14 : memref<256x32xf32, #tpu.memory_space<vmem>>)
    } else {
    }
    %c0_i32_2 = arith.constant 0 : i32
    %5 = arith.cmpi eq, %arg1, %c0_i32_2 : i32
    %6 = arith.extui %5 : i1 to i32
    %c0_i32_3 = arith.constant 0 : i32
    %7 = arith.cmpi ne, %6, %c0_i32_3 : i32
    scf.if %7 {
      %cst_26 = arith.constant 0.000000e+00 : f32
      %61 = vector.broadcast %cst_26 : f32 to vector<256x16xf32>
      %c0_27 = arith.constant 0 : index
      %c0_28 = arith.constant 0 : index
      %62 = vector.load %arg15[%c0_27, %c0_28] : memref<256x16xf32, #tpu.memory_space<vmem>>, vector<256x16xf32>
      tpu.vector_store %arg15[%c0_27, %c0_28], %61 {strides = array<i32>} : memref<256x16xf32, #tpu.memory_space<vmem>>, vector<256x16xf32>,
      %c0_29 = arith.constant 0 : index
      %c0_30 = arith.constant 0 : index
      %63 = vector.load %arg14[%c0_29, %c0_30] : memref<256x32xf32, #tpu.memory_space<vmem>>, vector<256x32xf32>
      %c0_31 = arith.constant 0 : index
      %c0_32 = arith.constant 0 : index
      %c0_33 = arith.constant 0 : index
      %64 = vector.load %arg7[%c0_31, %c0_32, %c0_33] : memref<1x32x16xf32, #tpu.memory_space<vmem>>, vector<1x32x16xf32>
      %65 = vector.shape_cast %64 : vector<1x32x16xf32> to vector<32x16xf32>
      %cst_34 = arith.constant dense<0.000000e+00> : vector<256x16xf32>
      %66 = tpu.matmul %63, %65, %cst_34 {dimension_numbers = #tpu.dot_dimension_numbers<[1], [0], [0], [1], [0, 0, 1, 1], [], []>} : vector<256x32xf32>, vector<32x16xf32>, vector<256x16xf32> -> vector<256x16xf32>
      %c0_35 = arith.constant 0 : index
      %c0_36 = arith.constant 0 : index
      %67 = vector.load %arg16[%c0_35, %c0_36] : memref<256x16xf32, #tpu.memory_space<vmem>>, vector<256x16xf32>
      tpu.vector_store %arg16[%c0_35, %c0_36], %66 {strides = array<i32>} : memref<256x16xf32, #tpu.memory_space<vmem>>, vector<256x16xf32>,
      %c0_37 = arith.constant 0 : index
      %c0_38 = arith.constant 0 : index
      %c0_39 = arith.constant 0 : index
      %68 = vector.load %arg8[%c0_37, %c0_38, %c0_39] : memref<1x32x32xf32, #tpu.memory_space<vmem>>, vector<1x32x32xf32>
      %69 = vector.shape_cast %68 : vector<1x32x32xf32> to vector<32x32xf32>
      %cst_40 = arith.constant dense<0.000000e+00> : vector<256x32xf32>
      %70 = tpu.matmul %63, %69, %cst_40 {dimension_numbers = #tpu.dot_dimension_numbers<[1], [0], [0], [1], [0, 0, 1, 1], [], []>} : vector<256x32xf32>, vector<32x32xf32>, vector<256x32xf32> -> vector<256x32xf32>
      %c0_41 = arith.constant 0 : index
      %c0_42 = arith.constant 0 : index
      %71 = vector.load %arg17[%c0_41, %c0_42] : memref<256x32xf32, #tpu.memory_space<vmem>>, vector<256x32xf32>
      tpu.vector_store %arg17[%c0_41, %c0_42], %70 {strides = array<i32>} : memref<256x32xf32, #tpu.memory_space<vmem>>, vector<256x32xf32>,
    } else {
    }
    %c0 = arith.constant 0 : index
    %c0_4 = arith.constant 0 : index
    %8 = vector.load %arg2[%c0, %c0_4] : memref<256x1xi32, #tpu.memory_space<vmem>>, vector<256x1xi32>
    %c0_5 = arith.constant 0 : index
    %c0_6 = arith.constant 0 : index
    %9 = vector.load %arg3[%c0_5, %c0_6] : memref<256x1xi32, #tpu.memory_space<vmem>>, vector<256x1xi32>
    %c0_7 = arith.constant 0 : index
    %c0_8 = arith.constant 0 : index
    %10 = vector.load %arg4[%c0_7, %c0_8] : memref<256x1xi32, #tpu.memory_space<vmem>>, vector<256x1xi32>
    %c0_9 = arith.constant 0 : index
    %c0_10 = arith.constant 0 : index
    %11 = vector.load %arg5[%c0_9, %c0_10] : memref<1x256xi32, #tpu.memory_space<vmem>>, vector<1x256xi32>
    %12 = tpu.iota {dimensions = array<i32: 1>} : vector<256x256xi32>
    %13 = vector.broadcast %8 : vector<256x1xi32> to vector<256x256xi32>
    %14 = arith.cmpi eq, %12, %13 : vector<256x256xi32>
    %15 = arith.extui %14 : vector<256x256xi1> to vector<256x256xi32>
    %16 = arith.sitofp %15 : vector<256x256xi32> to vector<256x256xf32>
    %c0_11 = arith.constant 0 : index
    %c0_12 = arith.constant 0 : index
    %17 = vector.load %arg16[%c0_11, %c0_12] : memref<256x16xf32, #tpu.memory_space<vmem>>, vector<256x16xf32>
    %cst = arith.constant dense<0.000000e+00> : vector<256x16xf32>
    %18 = tpu.matmul %16, %17, %cst {dimension_numbers = #tpu.dot_dimension_numbers<[1], [0], [0], [1], [0, 0, 1, 1], [], []>} : vector<256x256xf32>, vector<256x16xf32>, vector<256x16xf32> -> vector<256x16xf32>
    %c0_13 = arith.constant 0 : index
    %c0_14 = arith.constant 0 : index
    %c0_15 = arith.constant 0 : index
    %19 = vector.load %arg6[%c0_13, %c0_14, %c0_15] : memref<1x8x16xf32, #tpu.memory_space<vmem>>, vector<1x8x16xf32>
    %20 = vector.shape_cast %19 : vector<1x8x16xf32> to vector<8x16xf32>
    %21 = arith.sitofp %8 : vector<256x1xi32> to vector<256x1xf32>
    %22 = vector.extract_strided_slice %20 {offsets = [0, 0], sizes = [1, 16], strides = [1, 1]} : vector<8x16xf32> to vector<1x16xf32>
    %23 = vector.broadcast %21 : vector<256x1xf32> to vector<256x16xf32>
    %24 = vector.broadcast %22 : vector<1x16xf32> to vector<256x16xf32>
    %25 = arith.mulf %23, %24 : vector<256x16xf32>
    %26 = arith.addf %18, %25 : vector<256x16xf32>
    %27 = arith.sitofp %9 : vector<256x1xi32> to vector<256x1xf32>
    %28 = vector.extract_strided_slice %20 {offsets = [1, 0], sizes = [1, 16], strides = [1, 1]} : vector<8x16xf32> to vector<1x16xf32>
    %29 = vector.broadcast %27 : vector<256x1xf32> to vector<256x16xf32>
    %30 = vector.broadcast %28 : vector<1x16xf32> to vector<256x16xf32>
    %31 = arith.mulf %29, %30 : vector<256x16xf32>
    %32 = arith.addf %26, %31 : vector<256x16xf32>
    %33 = arith.sitofp %10 : vector<256x1xi32> to vector<256x1xf32>
    %34 = vector.extract_strided_slice %20 {offsets = [2, 0], sizes = [1, 16], strides = [1, 1]} : vector<8x16xf32> to vector<1x16xf32>
    %35 = vector.broadcast %33 : vector<256x1xf32> to vector<256x16xf32>
    %36 = vector.broadcast %34 : vector<1x16xf32> to vector<256x16xf32>
    %37 = arith.mulf %35, %36 : vector<256x16xf32>
    %38 = arith.addf %32, %37 : vector<256x16xf32>
    %cst_16 = arith.constant 0.000000e+00 : f32
    %39 = vector.broadcast %cst_16 : f32 to vector<256x16xf32>
    %40 = arith.cmpf ogt, %38, %39 : vector<256x16xf32>
    %cst_17 = arith.constant 0.00999999977 : f32
    %41 = vector.broadcast %cst_17 : f32 to vector<256x16xf32>
    %42 = arith.mulf %41, %38 : vector<256x16xf32>
    %43 = arith.select %40, %38, %42 : vector<256x16xi1>, vector<256x16xf32>
    %44 = tpu.iota {dimensions = array<i32: 0>} : vector<256x256xi32>
    %45 = vector.broadcast %11 : vector<1x256xi32> to vector<256x256xi32>
    %46 = arith.cmpi eq, %44, %45 : vector<256x256xi32>
    %47 = arith.extui %46 : vector<256x256xi1> to vector<256x256xi32>
    %48 = arith.sitofp %47 : vector<256x256xi32> to vector<256x256xf32>
    %c0_18 = arith.constant 0 : index
    %c0_19 = arith.constant 0 : index
    %49 = vector.load %arg15[%c0_18, %c0_19] : memref<256x16xf32, #tpu.memory_space<vmem>>, vector<256x16xf32>
    %cst_20 = arith.constant dense<0.000000e+00> : vector<256x16xf32>
    %50 = tpu.matmul %48, %43, %cst_20 {dimension_numbers = #tpu.dot_dimension_numbers<[1], [0], [0], [1], [0, 0, 1, 1], [], []>} : vector<256x256xf32>, vector<256x16xf32>, vector<256x16xf32> -> vector<256x16xf32>
    %51 = arith.addf %49, %50 : vector<256x16xf32>
    %c0_21 = arith.constant 0 : index
    %c0_22 = arith.constant 0 : index
    %52 = vector.load %arg15[%c0_21, %c0_22] : memref<256x16xf32, #tpu.memory_space<vmem>>, vector<256x16xf32>
    tpu.vector_store %arg15[%c0_21, %c0_22], %51 {strides = array<i32>} : memref<256x16xf32, #tpu.memory_space<vmem>>, vector<256x16xf32>,
    %c1_i32 = arith.constant 1 : i32
    %53 = arith.cmpi eq, %arg1, %c1_i32 : i32
    %54 = arith.extui %53 : i1 to i32
    %c0_i32_23 = arith.constant 0 : i32
    %55 = arith.cmpi ne, %54, %c0_i32_23 : i32
    scf.if %55 {
      %c0_26 = arith.constant 0 : index
      %c0_27 = arith.constant 0 : index
      %61 = vector.load %arg15[%c0_26, %c0_27] : memref<256x16xf32, #tpu.memory_space<vmem>>, vector<256x16xf32>
      %c0_28 = arith.constant 0 : index
      %c0_29 = arith.constant 0 : index
      %62 = vector.load %arg11[%c0_28, %c0_29] : memref<256x1xf32, #tpu.memory_space<vmem>>, vector<256x1xf32>
      %63 = vector.broadcast %62 : vector<256x1xf32> to vector<256x16xf32>
      %64 = arith.mulf %61, %63 : vector<256x16xf32>
      %c0_30 = arith.constant 0 : index
      %c0_31 = arith.constant 0 : index
      %65 = vector.load %arg17[%c0_30, %c0_31] : memref<256x32xf32, #tpu.memory_space<vmem>>, vector<256x32xf32>
      %c0_32 = arith.constant 0 : index
      %c0_33 = arith.constant 0 : index
      %c0_34 = arith.constant 0 : index
      %66 = vector.load %arg9[%c0_32, %c0_33, %c0_34] : memref<1x16x32xf32, #tpu.memory_space<vmem>>, vector<1x16x32xf32>
      %67 = vector.shape_cast %66 : vector<1x16x32xf32> to vector<16x32xf32>
      %cst_35 = arith.constant dense<0.000000e+00> : vector<256x32xf32>
      %68 = tpu.matmul %64, %67, %cst_35 {dimension_numbers = #tpu.dot_dimension_numbers<[1], [0], [0], [1], [0, 0, 1, 1], [], []>} : vector<256x16xf32>, vector<16x32xf32>, vector<256x32xf32> -> vector<256x32xf32>
      %69 = arith.addf %65, %68 : vector<256x32xf32>
      %c0_36 = arith.constant 0 : index
      %c0_37 = arith.constant 0 : index
      %c0_38 = arith.constant 0 : index
      %70 = vector.load %arg10[%c0_36, %c0_37, %c0_38] : memref<1x1x32xf32, #tpu.memory_space<vmem>>, vector<1x1x32xf32>
      %71 = vector.shape_cast %70 : vector<1x1x32xf32> to vector<1x32xf32>
      %72 = vector.broadcast %71 : vector<1x32xf32> to vector<256x32xf32>
      %73 = arith.addf %69, %72 : vector<256x32xf32>
      %cst_39 = arith.constant 0.000000e+00 : f32
      %74 = vector.broadcast %cst_39 : f32 to vector<256x32xf32>
      %75 = arith.maximumf %73, %74 : vector<256x32xf32>
      %c0_40 = arith.constant 0 : index
      %c0_41 = arith.constant 0 : index
      %76 = vector.load %arg14[%c0_40, %c0_41] : memref<256x32xf32, #tpu.memory_space<vmem>>, vector<256x32xf32>
      tpu.vector_store %arg14[%c0_40, %c0_41], %75 {strides = array<i32>} : memref<256x32xf32, #tpu.memory_space<vmem>>, vector<256x32xf32>,
    } else {
    }
    %c1_i32_24 = arith.constant 1 : i32
    %56 = arith.cmpi eq, %arg1, %c1_i32_24 : i32
    %c2_i32 = arith.constant 2 : i32
    %57 = arith.cmpi eq, %arg0, %c2_i32 : i32
    %58 = arith.andi %56, %57 : i1
    %59 = arith.extui %58 : i1 to i32
    %c0_i32_25 = arith.constant 0 : i32
    %60 = arith.cmpi ne, %59, %c0_i32_25 : i32
    scf.if %60 {
      %c0_26 = arith.constant 0 : index
      %c0_27 = arith.constant 0 : index
      %61 = vector.load %arg14[%c0_26, %c0_27] : memref<256x32xf32, #tpu.memory_space<vmem>>, vector<256x32xf32>
      %c0_28 = arith.constant 0 : index
      %c0_29 = arith.constant 0 : index
      %62 = vector.load %arg13[%c0_28, %c0_29] : memref<256x32xf32, #tpu.memory_space<vmem>>, vector<256x32xf32>
      tpu.vector_store %arg13[%c0_28, %c0_29], %61 {strides = array<i32>} : memref<256x32xf32, #tpu.memory_space<vmem>>, vector<256x32xf32>,
    } else {
    }
    return
  }
  func.func @transform_0(%arg0: i32, %arg1: i32) -> (i32, i32) {
    %c0_i32 = arith.constant 0 : i32
    %c0_i32_0 = arith.constant 0 : i32
    return %arg1, %c0_i32 : i32, i32
  }
  func.func @transform_1(%arg0: i32, %arg1: i32) -> (i32, i32) {
    %c0_i32 = arith.constant 0 : i32
    %c0_i32_0 = arith.constant 0 : i32
    return %arg1, %c0_i32 : i32, i32
  }
  func.func @transform_2(%arg0: i32, %arg1: i32) -> (i32, i32) {
    %c0_i32 = arith.constant 0 : i32
    %c0_i32_0 = arith.constant 0 : i32
    return %arg1, %c0_i32 : i32, i32
  }
  func.func @transform_3(%arg0: i32, %arg1: i32) -> (i32, i32) {
    %c0_i32 = arith.constant 0 : i32
    %c0_i32_0 = arith.constant 0 : i32
    return %c0_i32, %arg1 : i32, i32
  }
  func.func @transform_4(%arg0: i32, %arg1: i32) -> (i32, i32, i32) {
    %c0_i32 = arith.constant 0 : i32
    %c0_i32_0 = arith.constant 0 : i32
    %c0_i32_1 = arith.constant 0 : i32
    return %arg0, %c0_i32, %c0_i32_0 : i32, i32, i32
  }
  func.func @transform_5(%arg0: i32, %arg1: i32) -> (i32, i32, i32) {
    %c0_i32 = arith.constant 0 : i32
    %c0_i32_0 = arith.constant 0 : i32
    %c0_i32_1 = arith.constant 0 : i32
    return %arg0, %c0_i32, %c0_i32_0 : i32, i32, i32
  }
  func.func @transform_6(%arg0: i32, %arg1: i32) -> (i32, i32, i32) {
    %c0_i32 = arith.constant 0 : i32
    %c0_i32_0 = arith.constant 0 : i32
    %c0_i32_1 = arith.constant 0 : i32
    return %arg0, %c0_i32, %c0_i32_0 : i32, i32, i32
  }
  func.func @transform_7(%arg0: i32, %arg1: i32) -> (i32, i32, i32) {
    %c0_i32 = arith.constant 0 : i32
    %c0_i32_0 = arith.constant 0 : i32
    %c0_i32_1 = arith.constant 0 : i32
    return %arg0, %c0_i32, %c0_i32_0 : i32, i32, i32
  }
  func.func @transform_8(%arg0: i32, %arg1: i32) -> (i32, i32, i32) {
    %c0_i32 = arith.constant 0 : i32
    %c0_i32_0 = arith.constant 0 : i32
    %c0_i32_1 = arith.constant 0 : i32
    return %arg0, %c0_i32, %c0_i32_0 : i32, i32, i32
  }
  func.func @transform_9(%arg0: i32, %arg1: i32) -> (i32, i32) {
    %c0_i32 = arith.constant 0 : i32
    %c0_i32_0 = arith.constant 0 : i32
    %c0_i32_1 = arith.constant 0 : i32
    return %c0_i32, %c0_i32_0 : i32, i32
  }
  func.func @transform_11(%arg0: i32, %arg1: i32) -> (i32, i32) {
    %c0_i32 = arith.constant 0 : i32
    %c0_i32_0 = arith.constant 0 : i32
    %c0_i32_1 = arith.constant 0 : i32
    return %c0_i32, %c0_i32_0 : i32, i32
  }
}

</mosaic_0001>

<llo_original>
// kernel: tpu_custom_call.1
$region0: #{tpu_custom_call.1}
  #allocation0 [shape = 'u32[]', space=smem, size = 0x4, offset = 0x4, fixed_abs, tag = 'smem constant byte address 0x4 - core index']
  #allocation1 [shape = 'u32[144,128]{1,0:T(1,128)}', space=vmem, size = 0x12000, scoped, tag = 'internal scratch']
  #allocation2 [shape = 'f32[256,32]{1,0:T(8,128)}', space=vmem, size = 0x20000, scoped, tag = 'scratch operand']
  #allocation3 [shape = 'f32[256,16]{1,0:T(8,128)}', space=vmem, size = 0x20000, scoped, tag = 'scratch operand']
  #allocation4 [shape = 'f32[256,16]{1,0:T(8,128)}', space=vmem, size = 0x20000, scoped, tag = 'scratch operand']
  #allocation5 [shape = 'f32[256,32]{1,0:T(8,128)}', space=vmem, size = 0x20000, scoped, tag = 'scratch operand']
  #allocation6 [shape = 's32[1]{0}', space=sflag, size = 0x4, scoped, tag = 'scratch operand']
  #allocation7 [shape = 's32[]', space=sflag, size = 0x4, offset = 0, fixed_abs, tag = 'sflag constant byte address 0x0 - dummy sync flag']
  %s0 = inlined_call_operand.vmem [shape: s32[512,1], index: 0, kind: input, shape index: {}]
  %s1 = inlined_call_operand.vmem [shape: s32[512,1], index: 1, kind: input, shape index: {}]
  %s2 = inlined_call_operand.vmem [shape: s32[512,1], index: 2, kind: input, shape index: {}]
  %s3 = inlined_call_operand.vmem [shape: s32[1,512], index: 3, kind: input, shape index: {}]
  %s4 = inlined_call_operand.vmem [shape: f32[3,8,16], index: 4, kind: input, shape index: {}]
  %s5 = inlined_call_operand.vmem [shape: f32[3,32,16], index: 5, kind: input, shape index: {}]
  %s6 = inlined_call_operand.vmem [shape: f32[3,32,32], index: 6, kind: input, shape index: {}]
  %s7 = inlined_call_operand.vmem [shape: f32[3,16,32], index: 7, kind: input, shape index: {}]
  %s8 = inlined_call_operand.vmem [shape: f32[3,1,32], index: 8, kind: input, shape index: {}]
  %s9 = inlined_call_operand.vmem [shape: f32[256,1], index: 9, kind: input, shape index: {}]
  %s10 = inlined_call_operand.vmem [shape: f32[256,32], index: 10, kind: input, shape index: {}]
  %s11 = inlined_call_operand.vmem [shape: f32[256,32], index: 11, kind: output, shape index: {}]
  %s12 = sld [smem:[#allocation0]]
  $region123: #{tpu_custom_call.1} parent=0
    _
  %s14 = ssub.s32 1, %s12
  %s15 = scalar_select 0, %s14, %s12
  loop: start=0, step=1, limit=8
  $region2: #{tpu_custom_call.1} parent=0 // loop_pre_header
    _
  $region3: #{tpu_custom_call.1} parent=0 // loop_header
    %s17 = sphi 0, %s21
    %p18 = scmp.ge.s32.totalorder %s17, 8
    %s24 = sphi 0, %s36
    %s25 = sphi 0, %s32
    %s26 = sphi 0, %s24
    %s27 = sphi 0, %s25
    %s28 = sphi 0, %s26
    %s29 = sphi 0, %s27
    %s39 = sphi 0, %s41
    %s42 = sphi 0, %s39
    %s43 = sphi 0, %s42
    %s59 = sphi 0, %s43
    %s65 = sphi 0, %s67
    %s68 = sphi 0, %s65
    %s69 = sphi 0, %s68
    %s85 = sphi 0, %s69
    %s91 = sphi 0, %s93
    %s94 = sphi 0, %s91
    %s95 = sphi 0, %s94
    %s111 = sphi 0, %s95
    %s117 = sphi 0, %s119
    %s120 = sphi 0, %s117
    %s121 = sphi 0, %s120
    %s137 = sphi 0, %s121
    %s143 = sphi 0, %s145
    %s146 = sphi 0, %s143
    %s147 = sphi 0, %s146
    %s163 = sphi 0, %s147
    %s169 = sphi 0, %s171
    %s172 = sphi 0, %s169
    %s173 = sphi 0, %s172
    %s189 = sphi 0, %s173
    %s195 = sphi 0, %s197
    %s198 = sphi 0, %s195
    %s199 = sphi 0, %s198
    %s215 = sphi 0, %s199
    %s221 = sphi 0, %s223
    %s224 = sphi 0, %s221
    %s225 = sphi 0, %s224
    %s241 = sphi 0, %s225
    %s247 = sphi 0, %s249
    %s250 = sphi 0, %s247
    %s251 = sphi 0, %s250
    %s267 = sphi 0, %s251
    %s271 = sphi 0, %s271
    %s273 = sphi 0, %s271
    %s274 = sphi 0, %s273
    %s288 = sphi 0, %s274
    %s292 = sphi 0, %s292
    %s294 = sphi 0, %s292
    %s295 = sphi 0, %s294
    %s309 = sphi 0, %s295
  $region4: #{tpu_custom_call.1} parent=0 // loop_header_branch
    %20 = sbr.rel (%p18) target = $region8
  $region5: #{tpu_custom_call.1} parent=0 // loop_body
    %s22 = ssub.s32 %s17, 1
    %s23 = ssub.s32 %s17, 2
    %s30 = sadd.s32 1, %s25
    %p31 = scmp.ge.s32.totalorder %s30, 2
    %s32 = scalar_select %p31, 0, %s30
    %s33 = sadd.s32 1, %s24
    %s34 = scalar_select %p31, %s33, %s24
    %p35 = scmp.ge.s32.totalorder %s34, 3
    %s36 = scalar_select %p35, 0, %s34
    %s37 = ssub.s32 %s25, %s32
    %p38 = scmp.eq.s32.totalorder %s37, 0
    %s40 = sadd.s32 %s39, 1
    %s41 = scalar_select %p38, %s39, %s40
    %p44 = pneg %p38
    %p45 = scmp.eq.s32.totalorder %s17, 5
    %p46 = por %p44, %p45
    %p47 = scmp.ne.s32.totalorder %s39, %s42
    %p48 = scmp.eq.s32.totalorder %s17, 0
    %p49 = por %p47, %p48
    %p50 = scmp.ne.s32.totalorder %s39, %s42
    %p51 = scmp.eq.s32.totalorder %s22, 5
    %p52 = por %p50, %p51
    %p53 = scmp.ne.s32.totalorder %s42, %s43
    %p54 = scmp.eq.s32.totalorder %s22, 0
    %p55 = por %p53, %p54
    %p56 = scmp.ne.s32.totalorder %s42, %s43
    %p57 = scmp.eq.s32.totalorder %s23, 5
    %p58 = por %p56, %p57
    %p60 = scmp.ne.s32.totalorder %s43, %s59
    %p61 = scmp.eq.s32.totalorder %s23, 0
    %p62 = por %p60, %p61
    %s63 = ssub.s32 %s25, %s32
    %p64 = scmp.eq.s32.totalorder %s63, 0
    %s66 = sadd.s32 %s65, 1
    %s67 = scalar_select %p64, %s65, %s66
    %p70 = pneg %p64
    %p71 = scmp.eq.s32.totalorder %s17, 5
    %p72 = por %p70, %p71
    %p73 = scmp.ne.s32.totalorder %s65, %s68
    %p74 = scmp.eq.s32.totalorder %s17, 0
    %p75 = por %p73, %p74
    %p76 = scmp.ne.s32.totalorder %s65, %s68
    %p77 = scmp.eq.s32.totalorder %s22, 5
    %p78 = por %p76, %p77
    %p79 = scmp.ne.s32.totalorder %s68, %s69
    %p80 = scmp.eq.s32.totalorder %s22, 0
    %p81 = por %p79, %p80
    %p82 = scmp.ne.s32.totalorder %s68, %s69
    %p83 = scmp.eq.s32.totalorder %s23, 5
    %p84 = por %p82, %p83
    %p86 = scmp.ne.s32.totalorder %s69, %s85
    %p87 = scmp.eq.s32.totalorder %s23, 0
    %p88 = por %p86, %p87
    %s89 = ssub.s32 %s25, %s32
    %p90 = scmp.eq.s32.totalorder %s89, 0
    %s92 = sadd.s32 %s91, 1
    %s93 = scalar_select %p90, %s91, %s92
    %p96 = pneg %p90
    %p97 = scmp.eq.s32.totalorder %s17, 5
    %p98 = por %p96, %p97
    %p99 = scmp.ne.s32.totalorder %s91, %s94
    %p100 = scmp.eq.s32.totalorder %s17, 0
    %p101 = por %p99, %p100
    %p102 = scmp.ne.s32.totalorder %s91, %s94
    %p103 = scmp.eq.s32.totalorder %s22, 5
    %p104 = por %p102, %p103
    %p105 = scmp.ne.s32.totalorder %s94, %s95
    %p106 = scmp.eq.s32.totalorder %s22, 0
    %p107 = por %p105, %p106
    %p108 = scmp.ne.s32.totalorder %s94, %s95
    %p109 = scmp.eq.s32.totalorder %s23, 5
    %p110 = por %p108, %p109
    %p112 = scmp.ne.s32.totalorder %s95, %s111
    %p113 = scmp.eq.s32.totalorder %s23, 0
    %p114 = por %p112, %p113
    %s115 = ssub.s32 %s25, %s32
    %p116 = scmp.eq.s32.totalorder %s115, 0
    %s118 = sadd.s32 %s117, 1
    %s119 = scalar_select %p116, %s117, %s118
    %p122 = pneg %p116
    %p123 = scmp.eq.s32.totalorder %s17, 5
    %p124 = por %p122, %p123
    %p125 = scmp.ne.s32.totalorder %s117, %s120
    %p126 = scmp.eq.s32.totalorder %s17, 0
    %p127 = por %p125, %p126
    %p128 = scmp.ne.s32.totalorder %s117, %s120
    %p129 = scmp.eq.s32.totalorder %s22, 5
    %p130 = por %p128, %p129
    %p131 = scmp.ne.s32.totalorder %s120, %s121
    %p132 = scmp.eq.s32.totalorder %s22, 0
    %p133 = por %p131, %p132
    %p134 = scmp.ne.s32.totalorder %s120, %s121
    %p135 = scmp.eq.s32.totalorder %s23, 5
    %p136 = por %p134, %p135
    %p138 = scmp.ne.s32.totalorder %s121, %s137
    %p139 = scmp.eq.s32.totalorder %s23, 0
    %p140 = por %p138, %p139
    %s141 = ssub.s32 %s24, %s36
    %p142 = scmp.eq.s32.totalorder %s141, 0
    %s144 = sadd.s32 %s143, 1
    %s145 = scalar_select %p142, %s143, %s144
    %p148 = pneg %p142
    %p149 = scmp.eq.s32.totalorder %s17, 5
    %p150 = por %p148, %p149
    %p151 = scmp.ne.s32.totalorder %s143, %s146
    %p152 = scmp.eq.s32.totalorder %s17, 0
    %p153 = por %p151, %p152
    %p154 = scmp.ne.s32.totalorder %s143, %s146
    %p155 = scmp.eq.s32.totalorder %s22, 5
    %p156 = por %p154, %p155
    %p157 = scmp.ne.s32.totalorder %s146, %s147
    %p158 = scmp.eq.s32.totalorder %s22, 0
    %p159 = por %p157, %p158
    %p160 = scmp.ne.s32.totalorder %s146, %s147
    %p161 = scmp.eq.s32.totalorder %s23, 5
    %p162 = por %p160, %p161
    %p164 = scmp.ne.s32.totalorder %s147, %s163
    %p165 = scmp.eq.s32.totalorder %s23, 0
    %p166 = por %p164, %p165
    %s167 = ssub.s32 %s24, %s36
    %p168 = scmp.eq.s32.totalorder %s167, 0
    %s170 = sadd.s32 %s169, 1
    %s171 = scalar_select %p168, %s169, %s170
    %p174 = pneg %p168
    %p175 = scmp.eq.s32.totalorder %s17, 5
    %p176 = por %p174, %p175
    %p177 = scmp.ne.s32.totalorder %s169, %s172
    %p178 = scmp.eq.s32.totalorder %s17, 0
    %p179 = por %p177, %p178
    %p180 = scmp.ne.s32.totalorder %s169, %s172
    %p181 = scmp.eq.s32.totalorder %s22, 5
    %p182 = por %p180, %p181
    %p183 = scmp.ne.s32.totalorder %s172, %s173
    %p184 = scmp.eq.s32.totalorder %s22, 0
    %p185 = por %p183, %p184
    %p186 = scmp.ne.s32.totalorder %s172, %s173
    %p187 = scmp.eq.s32.totalorder %s23, 5
    %p188 = por %p186, %p187
    %p190 = scmp.ne.s32.totalorder %s173, %s189
    %p191 = scmp.eq.s32.totalorder %s23, 0
    %p192 = por %p190, %p191
    %s193 = ssub.s32 %s24, %s36
    %p194 = scmp.eq.s32.totalorder %s193, 0
    %s196 = sadd.s32 %s195, 1
    %s197 = scalar_select %p194, %s195, %s196
    %p200 = pneg %p194
    %p201 = scmp.eq.s32.totalorder %s17, 5
    %p202 = por %p200, %p201
    %p203 = scmp.ne.s32.totalorder %s195, %s198
    %p204 = scmp.eq.s32.totalorder %s17, 0
    %p205 = por %p203, %p204
    %p206 = scmp.ne.s32.totalorder %s195, %s198
    %p207 = scmp.eq.s32.totalorder %s22, 5
    %p208 = por %p206, %p207
    %p209 = scmp.ne.s32.totalorder %s198, %s199
    %p210 = scmp.eq.s32.totalorder %s22, 0
    %p211 = por %p209, %p210
    %p212 = scmp.ne.s32.totalorder %s198, %s199
    %p213 = scmp.eq.s32.totalorder %s23, 5
    %p214 = por %p212, %p213
    %p216 = scmp.ne.s32.totalorder %s199, %s215
    %p217 = scmp.eq.s32.totalorder %s23, 0
    %p218 = por %p216, %p217
    %s219 = ssub.s32 %s24, %s36
    %p220 = scmp.eq.s32.totalorder %s219, 0
    %s222 = sadd.s32 %s221, 1
    %s223 = scalar_select %p220, %s221, %s222
    %p226 = pneg %p220
    %p227 = scmp.eq.s32.totalorder %s17, 5
    %p228 = por %p226, %p227
    %p229 = scmp.ne.s32.totalorder %s221, %s224
    %p230 = scmp.eq.s32.totalorder %s17, 0
    %p231 = por %p229, %p230
    %p232 = scmp.ne.s32.totalorder %s221, %s224
    %p233 = scmp.eq.s32.totalorder %s22, 5
    %p234 = por %p232, %p233
    %p235 = scmp.ne.s32.totalorder %s224, %s225
    %p236 = scmp.eq.s32.totalorder %s22, 0
    %p237 = por %p235, %p236
    %p238 = scmp.ne.s32.totalorder %s224, %s225
    %p239 = scmp.eq.s32.totalorder %s23, 5
    %p240 = por %p238, %p239
    %p242 = scmp.ne.s32.totalorder %s225, %s241
    %p243 = scmp.eq.s32.totalorder %s23, 0
    %p244 = por %p242, %p243
    %s245 = ssub.s32 %s24, %s36
    %p246 = scmp.eq.s32.totalorder %s245, 0
    %s248 = sadd.s32 %s247, 1
    %s249 = scalar_select %p246, %s247, %s248
    %p252 = pneg %p246
    %p253 = scmp.eq.s32.totalorder %s17, 5
    %p254 = por %p252, %p253
    %p255 = scmp.ne.s32.totalorder %s247, %s250
    %p256 = scmp.eq.s32.totalorder %s17, 0
    %p257 = por %p255, %p256
    %p258 = scmp.ne.s32.totalorder %s247, %s250
    %p259 = scmp.eq.s32.totalorder %s22, 5
    %p260 = por %p258, %p259
    %p261 = scmp.ne.s32.totalorder %s250, %s251
    %p262 = scmp.eq.s32.totalorder %s22, 0
    %p263 = por %p261, %p262
    %p264 = scmp.ne.s32.totalorder %s250, %s251
    %p265 = scmp.eq.s32.totalorder %s23, 5
    %p266 = por %p264, %p265
    %p268 = scmp.ne.s32.totalorder %s251, %s267
    %p269 = scmp.eq.s32.totalorder %s23, 0
    %p270 = por %p268, %p269
    %s272 = sadd.s32 %s271, 1
    %p275 = scmp.eq.s32.totalorder %s17, 5
    %p276 = scmp.ne.s32.totalorder %s271, %s273
    %p277 = scmp.eq.s32.totalorder %s17, 0
    %p278 = por %p276, %p277
    %p279 = scmp.ne.s32.totalorder %s271, %s273
    %p280 = scmp.eq.s32.totalorder %s22, 5
    %p281 = por %p279, %p280
    %p282 = scmp.ne.s32.totalorder %s273, %s274
    %p283 = scmp.eq.s32.totalorder %s22, 0
    %p284 = por %p282, %p283
    %p285 = scmp.ne.s32.totalorder %s273, %s274
    %p286 = scmp.eq.s32.totalorder %s23, 5
    %p287 = por %p285, %p286
    %p289 = scmp.ne.s32.totalorder %s274, %s288
    %p290 = scmp.eq.s32.totalorder %s23, 0
    %p291 = por %p289, %p290
    %s293 = sadd.s32 %s292, 1
    %p296 = scmp.eq.s32.totalorder %s17, 5
    %p297 = scmp.ne.s32.totalorder %s292, %s294
    %p298 = scmp.eq.s32.totalorder %s17, 0
    %p299 = por %p297, %p298
    %p300 = scmp.ne.s32.totalorder %s292, %s294
    %p301 = scmp.eq.s32.totalorder %s22, 5
    %p302 = por %p300, %p301
    %p303 = scmp.ne.s32.totalorder %s294, %s295
    %p304 = scmp.eq.s32.totalorder %s22, 0
    %p305 = por %p303, %p304
    %p306 = scmp.ne.s32.totalorder %s294, %s295
    %p307 = scmp.eq.s32.totalorder %s23, 5
    %p308 = por %p306, %p307
    %p310 = scmp.ne.s32.totalorder %s295, %s309
    %p311 = scmp.eq.s32.totalorder %s23, 0
    %p312 = por %p310, %p311
    %p313 = scmp.le.s32.totalorder 1, %s17
    %p314 = scmp.lt.s32.totalorder %s17, 7
    %p315 = pnand %p313, %p314
    %p316 = pneg %p315
    // Predicated region
    $region9: #{tpu_custom_call.1} parent=5 // pred_check
      _
    $region10: #{tpu_custom_call.1} parent=5 // pred_check_branch
      %318 = sbr.rel (%p315) target = $region12
    $region11: #{tpu_custom_call.1} parent=5 // pred_region
      %s319 = ssub.s32 %s17, 1
      // Predicated region
      $region13: #{tpu_custom_call.1} parent=11 // pred_check
        %p320 = pneg %p284
      $region14: #{tpu_custom_call.1} parent=11 // pred_check_branch
        %322 = sbr.rel (%p320) target = $region16
      $region15: #{tpu_custom_call.1} parent=11 // pred_region
        _
      $region16: #{tpu_custom_call.1} parent=11 // pred_fallthru
        _
    $region12: #{tpu_custom_call.1} parent=5 // pred_fallthru
      _
    %p323 = scmp.lt.s32.totalorder %s17, 6
    // Predicated region
    $region17: #{tpu_custom_call.1} parent=5 // pred_check
      %p324 = pneg %p323
    $region18: #{tpu_custom_call.1} parent=5 // pred_check_branch
      %326 = sbr.rel (%p324) target = $region20
    $region19: #{tpu_custom_call.1} parent=5 // pred_region
      // Predicated region
      $region21: #{tpu_custom_call.1} parent=19 // pred_check
        %p327 = pneg %p49
      $region22: #{tpu_custom_call.1} parent=19 // pred_check_branch
        %329 = sbr.rel (%p327) target = $region24
      $region23: #{tpu_custom_call.1} parent=19 // pred_region
        %s330 = smul.u32 32, %s25
        %p331 = scmp.lt.s32.totalorder %s330, 63
        %s332 = scalar_select %p331, %s330, 63
        %s333 = smul.addr %s332, 8
        %s334 = scalar_lea.vmem %s0, %s333
        %s335 = smul.u32 32, %s25
      $region24: #{tpu_custom_call.1} parent=19 // pred_fallthru
        _
      // Predicated region
      $region25: #{tpu_custom_call.1} parent=19 // pred_check
        %p336 = pneg %p75
      $region26: #{tpu_custom_call.1} parent=19 // pred_check_branch
        %338 = sbr.rel (%p336) target = $region28
      $region27: #{tpu_custom_call.1} parent=19 // pred_region
        %s339 = smul.u32 32, %s25
        %p340 = scmp.lt.s32.totalorder %s339, 63
        %s341 = scalar_select %p340, %s339, 63
        %s342 = smul.addr %s341, 8
        %s343 = scalar_lea.vmem %s1, %s342
        %s344 = smul.u32 32, %s25
      $region28: #{tpu_custom_call.1} parent=19 // pred_fallthru
        _
      // Predicated region
      $region29: #{tpu_custom_call.1} parent=19 // pred_check
        %p345 = pneg %p101
      $region30: #{tpu_custom_call.1} parent=19 // pred_check_branch
        %347 = sbr.rel (%p345) target = $region32
      $region31: #{tpu_custom_call.1} parent=19 // pred_region
        %s348 = smul.u32 32, %s25
        %p349 = scmp.lt.s32.totalorder %s348, 63
        %s350 = scalar_select %p349, %s348, 63
        %s351 = smul.addr %s350, 8
        %s352 = scalar_lea.vmem %s2, %s351
        %s353 = smul.u32 32, %s25
      $region32: #{tpu_custom_call.1} parent=19 // pred_fallthru
        _
      // Predicated region
      $region33: #{tpu_custom_call.1} parent=19 // pred_check
        %p354 = pneg %p127
      $region34: #{tpu_custom_call.1} parent=19 // pred_check_branch
        %356 = sbr.rel (%p354) target = $region36
      $region35: #{tpu_custom_call.1} parent=19 // pred_region
        %s357 = smul.u32 2, %s25
        %p358 = scmp.lt.s32.totalorder %s357, 3
        %s359 = scalar_select %p358, %s357, 3
        %s360 = scalar_lea.vmem %s3, %s359
        %s361 = smul.u32 2, %s25
      $region36: #{tpu_custom_call.1} parent=19 // pred_fallthru
        _
      // Predicated region
      $region37: #{tpu_custom_call.1} parent=19 // pred_check
        %p362 = pneg %p153
      $region38: #{tpu_custom_call.1} parent=19 // pred_check_branch
        %364 = sbr.rel (%p362) target = $region40
      $region39: #{tpu_custom_call.1} parent=19 // pred_region
        %p365 = scmp.lt.s32.totalorder %s24, 2
        %s366 = scalar_select %p365, %s24, 2
        %s367 = smul.addr %s366, 8
        %s368 = scalar_lea.vmem %s4, %s367
      $region40: #{tpu_custom_call.1} parent=19 // pred_fallthru
        _
      // Predicated region
      $region41: #{tpu_custom_call.1} parent=19 // pred_check
        %p369 = pneg %p179
      $region42: #{tpu_custom_call.1} parent=19 // pred_check_branch
        %371 = sbr.rel (%p369) target = $region44
      $region43: #{tpu_custom_call.1} parent=19 // pred_region
        %p372 = scmp.lt.s32.totalorder %s24, 2
        %s373 = scalar_select %p372, %s24, 2
        %s374 = smul.addr %s373, 4
        %s375 = smul.addr %s374, 8
        %s376 = scalar_lea.vmem %s5, %s375
      $region44: #{tpu_custom_call.1} parent=19 // pred_fallthru
        _
      // Predicated region
      $region45: #{tpu_custom_call.1} parent=19 // pred_check
        %p377 = pneg %p205
      $region46: #{tpu_custom_call.1} parent=19 // pred_check_branch
        %379 = sbr.rel (%p377) target = $region48
      $region47: #{tpu_custom_call.1} parent=19 // pred_region
        %p380 = scmp.lt.s32.totalorder %s24, 2
        %s381 = scalar_select %p380, %s24, 2
        %s382 = smul.addr %s381, 4
        %s383 = smul.addr %s382, 8
        %s384 = scalar_lea.vmem %s6, %s383
      $region48: #{tpu_custom_call.1} parent=19 // pred_fallthru
        _
      // Predicated region
      $region49: #{tpu_custom_call.1} parent=19 // pred_check
        %p385 = pneg %p231
      $region50: #{tpu_custom_call.1} parent=19 // pred_check_branch
        %387 = sbr.rel (%p385) target = $region52
      $region51: #{tpu_custom_call.1} parent=19 // pred_region
        %p388 = scmp.lt.s32.totalorder %s24, 2
        %s389 = scalar_select %p388, %s24, 2
        %s390 = smul.addr %s389, 2
        %s391 = smul.addr %s390, 8
        %s392 = scalar_lea.vmem %s7, %s391
      $region52: #{tpu_custom_call.1} parent=19 // pred_fallthru
        _
      // Predicated region
      $region53: #{tpu_custom_call.1} parent=19 // pred_check
        %p393 = pneg %p257
      $region54: #{tpu_custom_call.1} parent=19 // pred_check_branch
        %395 = sbr.rel (%p393) target = $region56
      $region55: #{tpu_custom_call.1} parent=19 // pred_region
        %p396 = scmp.lt.s32.totalorder %s24, 2
        %s397 = scalar_select %p396, %s24, 2
        %s398 = scalar_lea.vmem %s8, %s397
      $region56: #{tpu_custom_call.1} parent=19 // pred_fallthru
        _
    $region20: #{tpu_custom_call.1} parent=5 // pred_fallthru
      _
    %p399 = scmp.le.s32.totalorder 1, %s17
    %p400 = scmp.lt.s32.totalorder %s17, 7
    %p401 = pnand %p399, %p400
    %p402 = pneg %p401
    // Predicated region
    $region57: #{tpu_custom_call.1} parent=5 // pred_check
      _
    $region58: #{tpu_custom_call.1} parent=5 // pred_check_branch
      %404 = sbr.rel (%p401) target = $region60
    $region59: #{tpu_custom_call.1} parent=5 // pred_region
      %s405 = ssub.s32 %s17, 1
      %s406 = smul.u32 32, %s27
      %p407 = scmp.lt.s32.totalorder %s406, 63
      %s408 = scalar_select %p407, %s406, 63
      %s409 = smul.addr %s408, 8
      %s410 = scalar_lea.vmem %s0, %s409
      %p411 = pneg %p55
      %p412 = pneg %p52
      %s413 = smul.u32 32, %s27
      %p414 = scmp.lt.s32.totalorder %s413, 63
      %s415 = scalar_select %p414, %s413, 63
      %s416 = smul.addr %s415, 8
      %s417 = scalar_lea.vmem %s1, %s416
      %p418 = pneg %p81
      %p419 = pneg %p78
      %s420 = smul.u32 32, %s27
      %p421 = scmp.lt.s32.totalorder %s420, 63
      %s422 = scalar_select %p421, %s420, 63
      %s423 = smul.addr %s422, 8
      %s424 = scalar_lea.vmem %s2, %s423
      %p425 = pneg %p107
      %p426 = pneg %p104
      %s427 = smul.u32 2, %s27
      %p428 = scmp.lt.s32.totalorder %s427, 3
      %s429 = scalar_select %p428, %s427, 3
      %s430 = scalar_lea.vmem %s3, %s429
      %p431 = pneg %p133
      %p432 = pneg %p130
      %p433 = scmp.lt.s32.totalorder %s26, 2
      %s434 = scalar_select %p433, %s26, 2
      %s435 = smul.addr %s434, 8
      %s436 = scalar_lea.vmem %s4, %s435
      %p437 = pneg %p159
      %p438 = pneg %p156
      %p439 = scmp.lt.s32.totalorder %s26, 2
      %s440 = scalar_select %p439, %s26, 2
      %s441 = smul.addr %s440, 4
      %s442 = smul.addr %s441, 8
      %s443 = scalar_lea.vmem %s5, %s442
      %p444 = pneg %p185
      %p445 = pneg %p182
      %p446 = scmp.lt.s32.totalorder %s26, 2
      %s447 = scalar_select %p446, %s26, 2
      %s448 = smul.addr %s447, 4
      %s449 = smul.addr %s448, 8
      %s450 = scalar_lea.vmem %s6, %s449
      %p451 = pneg %p211
      %p452 = pneg %p208
      %p453 = scmp.lt.s32.totalorder %s26, 2
      %s454 = scalar_select %p453, %s26, 2
      %s455 = smul.addr %s454, 2
      %s456 = smul.addr %s455, 8
      %s457 = scalar_lea.vmem %s7, %s456
      %p458 = pneg %p237
      %p459 = pneg %p234
      %p460 = scmp.lt.s32.totalorder %s26, 2
      %s461 = scalar_select %p460, %s26, 2
      %s462 = scalar_lea.vmem %s8, %s461
      %p463 = pneg %p263
      %p464 = pneg %p260
      %p465 = pneg %p284
      %p466 = pneg %p281
      %p467 = pneg %p305
      %p468 = pneg %p302
      %s469 = smul.u32 32, %s27
      %p470 = scmp.lt.s32.totalorder %s469, 63
      %s471 = scalar_select %p470, %s469, 63
      %s472 = smul.addr %s471, 8
      %s473 = scalar_lea.vmem %s0, %s472
      %s474 = smul.u32 32, %s27
      %s475 = smul.u32 32, %s27
      %p476 = scmp.lt.s32.totalorder %s475, 63
      %s477 = scalar_select %p476, %s475, 63
      %s478 = smul.addr %s477, 8
      %s479 = scalar_lea.vmem %s1, %s478
      %s480 = smul.u32 32, %s27
      %s481 = smul.u32 32, %s27
      %p482 = scmp.lt.s32.totalorder %s481, 63
      %s483 = scalar_select %p482, %s481, 63
      %s484 = smul.addr %s483, 8
      %s485 = scalar_lea.vmem %s2, %s484
      %s486 = smul.u32 32, %s27
      %s487 = smul.u32 2, %s27
      %p488 = scmp.lt.s32.totalorder %s487, 3
      %s489 = scalar_select %p488, %s487, 3
      %s490 = scalar_lea.vmem %s3, %s489
      %s491 = smul.u32 2, %s27
      %p492 = scmp.lt.s32.totalorder %s26, 2
      %s493 = scalar_select %p492, %s26, 2
      %s494 = smul.addr %s493, 8
      %s495 = scalar_lea.vmem %s4, %s494
      %p496 = scmp.lt.s32.totalorder %s26, 2
      %s497 = scalar_select %p496, %s26, 2
      %s498 = smul.addr %s497, 4
      %s499 = smul.addr %s498, 8
      %s500 = scalar_lea.vmem %s5, %s499
      %p501 = scmp.lt.s32.totalorder %s26, 2
      %s502 = scalar_select %p501, %s26, 2
      %s503 = smul.addr %s502, 4
      %s504 = smul.addr %s503, 8
      %s505 = scalar_lea.vmem %s6, %s504
      %p506 = scmp.lt.s32.totalorder %s26, 2
      %s507 = scalar_select %p506, %s26, 2
      %s508 = smul.addr %s507, 2
      %s509 = smul.addr %s508, 8
      %s510 = scalar_lea.vmem %s7, %s509
      %p511 = scmp.lt.s32.totalorder %s26, 2
      %s512 = scalar_select %p511, %s26, 2
      %s513 = scalar_lea.vmem %s8, %s512
      %p514 = scmp.eq.s32.totalorder %s26, 0
      %p515 = scmp.eq.s32.totalorder %s27, 0
      %p516 = pnand %p514, %p515
      %p517 = pneg %p516
      // Predicated region
      $region61: #{tpu_custom_call.1} parent=59 // pred_check
        _
      $region62: #{tpu_custom_call.1} parent=59 // pred_check_branch
        %519 = sbr.rel (%p516) target = $region64
      $region63: #{tpu_custom_call.1} parent=59 // pred_region
        %p521 = scmp.lt.u32.totalorder 256, 8
        %p522 = pneg %p521
        // Predicated region
        $region65: #{tpu_custom_call.1} parent=63 // pred_check
          _
        $region66: #{tpu_custom_call.1} parent=63 // pred_check_branch
          %524 = sbr.rel (%p521) target = $region68
        $region67: #{tpu_custom_call.1} parent=63 // pred_region
          %s540 = sand.u32 256, 7
          %p541 = scmp.eq.s32.totalorder %s540, 0
          // Predicated region
          $region80: #{tpu_custom_call.1} parent=67 // pred_check
            %p542 = pneg %p541
          $region81: #{tpu_custom_call.1} parent=67 // pred_check_branch
            %544 = sbr.rel (%p542) target = $region83
          $region82: #{tpu_custom_call.1} parent=67 // pred_region
            loop: start=0, step=1, limit=1
            $region84: #{tpu_custom_call.1} parent=82 // loop_pre_header
              _
            $region85: #{tpu_custom_call.1} parent=82 // loop_header
              %s546 = sphi 0, %s550
              %p547 = scmp.ge.s32.totalorder %s546, 1
              %s551 = sphi %s10, %s10
              %s552 = sphi [#allocation2], [#allocation2]
            $region86: #{tpu_custom_call.1} parent=82 // loop_header_branch
              %549 = sbr.rel (%p547) target = $region90
            $region87: #{tpu_custom_call.1} parent=82 // loop_body
              %v553 = vld [vmem:[%s551] sm:$0xff]
              %554 = vst [vmem:[%s552] sm:$0xff] %v553
              %v555 = vld [vmem:[%s551 + $0x8] sm:$0xff]
              %556 = vst [vmem:[%s552 + $0x8] sm:$0xff] %v555
              %v557 = vld [vmem:[%s551 + $0x10] sm:$0xff]
              %558 = vst [vmem:[%s552 + $0x10] sm:$0xff] %v557
              %v559 = vld [vmem:[%s551 + $0x18] sm:$0xff]
              %560 = vst [vmem:[%s552 + $0x18] sm:$0xff] %v559
              %v561 = vld [vmem:[%s551 + $0x20] sm:$0xff]
              %562 = vst [vmem:[%s552 + $0x20] sm:$0xff] %v561
              %v563 = vld [vmem:[%s551 + $0x28] sm:$0xff]
              %564 = vst [vmem:[%s552 + $0x28] sm:$0xff] %v563
              %v565 = vld [vmem:[%s551 + $0x30] sm:$0xff]
              %566 = vst [vmem:[%s552 + $0x30] sm:$0xff] %v565
              %v567 = vld [vmem:[%s551 + $0x38] sm:$0xff]
              %568 = vst [vmem:[%s552 + $0x38] sm:$0xff] %v567
              %v569 = vld [vmem:[%s551 + $0x40] sm:$0xff]
              %570 = vst [vmem:[%s552 + $0x40] sm:$0xff] %v569
              %v571 = vld [vmem:[%s551 + $0x48] sm:$0xff]
              %572 = vst [vmem:[%s552 + $0x48] sm:$0xff] %v571
              %v573 = vld [vmem:[%s551 + $0x50] sm:$0xff]
              %574 = vst [vmem:[%s552 + $0x50] sm:$0xff] %v573
              %v575 = vld [vmem:[%s551 + $0x58] sm:$0xff]
              %576 = vst [vmem:[%s552 + $0x58] sm:$0xff] %v575
              %v577 = vld [vmem:[%s551 + $0x60] sm:$0xff]
              %578 = vst [vmem:[%s552 + $0x60] sm:$0xff] %v577
              %v579 = vld [vmem:[%s551 + $0x68] sm:$0xff]
              %580 = vst [vmem:[%s552 + $0x68] sm:$0xff] %v579
              %v581 = vld [vmem:[%s551 + $0x70] sm:$0xff]
              %582 = vst [vmem:[%s552 + $0x70] sm:$0xff] %v581
              %v583 = vld [vmem:[%s551 + $0x78] sm:$0xff]
              %584 = vst [vmem:[%s552 + $0x78] sm:$0xff] %v583
              %v585 = vld [vmem:[%s551 + $0x80] sm:$0xff]
              %586 = vst [vmem:[%s552 + $0x80] sm:$0xff] %v585
              %v587 = vld [vmem:[%s551 + $0x88] sm:$0xff]
              %588 = vst [vmem:[%s552 + $0x88] sm:$0xff] %v587
              %v589 = vld [vmem:[%s551 + $0x90] sm:$0xff]
              %590 = vst [vmem:[%s552 + $0x90] sm:$0xff] %v589
              %v591 = vld [vmem:[%s551 + $0x98] sm:$0xff]
              %592 = vst [vmem:[%s552 + $0x98] sm:$0xff] %v591
              %v593 = vld [vmem:[%s551 + $0xa0] sm:$0xff]
              %594 = vst [vmem:[%s552 + $0xa0] sm:$0xff] %v593
              %v595 = vld [vmem:[%s551 + $0xa8] sm:$0xff]
              %596 = vst [vmem:[%s552 + $0xa8] sm:$0xff] %v595
              %v597 = vld [vmem:[%s551 + $0xb0] sm:$0xff]
              %598 = vst [vmem:[%s552 + $0xb0] sm:$0xff] %v597
              %v599 = vld [vmem:[%s551 + $0xb8] sm:$0xff]
              %600 = vst [vmem:[%s552 + $0xb8] sm:$0xff] %v599
              %v601 = vld [vmem:[%s551 + $0xc0] sm:$0xff]
              %602 = vst [vmem:[%s552 + $0xc0] sm:$0xff] %v601
              %v603 = vld [vmem:[%s551 + $0xc8] sm:$0xff]
              %604 = vst [vmem:[%s552 + $0xc8] sm:$0xff] %v603
              %v605 = vld [vmem:[%s551 + $0xd0] sm:$0xff]
              %606 = vst [vmem:[%s552 + $0xd0] sm:$0xff] %v605
              %v607 = vld [vmem:[%s551 + $0xd8] sm:$0xff]
              %608 = vst [vmem:[%s552 + $0xd8] sm:$0xff] %v607
              %v609 = vld [vmem:[%s551 + $0xe0] sm:$0xff]
              %610 = vst [vmem:[%s552 + $0xe0] sm:$0xff] %v609
              %v611 = vld [vmem:[%s551 + $0xe8] sm:$0xff]
              %612 = vst [vmem:[%s552 + $0xe8] sm:$0xff] %v611
              %v613 = vld [vmem:[%s551 + $0xf0] sm:$0xff]
              %614 = vst [vmem:[%s552 + $0xf0] sm:$0xff] %v613
              %v615 = vld [vmem:[%s551 + $0xf8] sm:$0xff]
              %616 = vst [vmem:[%s552 + $0xf8] sm:$0xff] %v615
            $region88: #{tpu_custom_call.1} parent=82 // loop_footer
              %s550 = sadd.s32 1, %s546
            $region89: #{tpu_custom_call.1} parent=82 // loop_footer_branch
              %545 = sbr.rel target = $region85
            $region90: #{tpu_custom_call.1} parent=82 // loop_exit
              _
          $region83: #{tpu_custom_call.1} parent=67 // pred_fallthru
            _
          %p617 = pneg %p541
          // Predicated region
          $region91: #{tpu_custom_call.1} parent=67 // pred_check
            _
          $region92: #{tpu_custom_call.1} parent=67 // pred_check_branch
            %619 = sbr.rel (%p541) target = $region94
          $region93: #{tpu_custom_call.1} parent=67 // pred_region
            %s620 = sand.u32 256, 7
          $region94: #{tpu_custom_call.1} parent=67 // pred_fallthru
            _
        $region68: #{tpu_custom_call.1} parent=63 // pred_fallthru
          _
        // Predicated region
        $region69: #{tpu_custom_call.1} parent=63 // pred_check
          %p525 = pneg %p521
        $region70: #{tpu_custom_call.1} parent=63 // pred_check_branch
          %527 = sbr.rel (%p525) target = $region72
        $region71: #{tpu_custom_call.1} parent=63 // pred_region
          %s528 = sshll.u32 1, 256
          %s529 = ssub.s32 %s528, 1
          loop: start=0, step=1, limit=1
          $region73: #{tpu_custom_call.1} parent=71 // loop_pre_header
            _
          $region74: #{tpu_custom_call.1} parent=71 // loop_header
            %s531 = sphi 0, %s535
            %p532 = scmp.ge.s32.totalorder %s531, 1
            %s536 = sphi %s10, %s10
            %s537 = sphi [#allocation2], [#allocation2]
          $region75: #{tpu_custom_call.1} parent=71 // loop_header_branch
            %534 = sbr.rel (%p532) target = $region79
          $region76: #{tpu_custom_call.1} parent=71 // loop_body
            %v538 = vld [vmem:[%s536] sm:%s529]
            %539 = vst [vmem:[%s537] sm:%s529] %v538
          $region77: #{tpu_custom_call.1} parent=71 // loop_footer
            %s535 = sadd.s32 1, %s531
          $region78: #{tpu_custom_call.1} parent=71 // loop_footer_branch
            %530 = sbr.rel target = $region74
          $region79: #{tpu_custom_call.1} parent=71 // loop_exit
            _
        $region72: #{tpu_custom_call.1} parent=63 // pred_fallthru
          _
        // Predicated region
        $region95: #{tpu_custom_call.1} parent=63 // pred_check
          _
        $region96: #{tpu_custom_call.1} parent=63 // pred_check_branch
          %623 = sbr.rel (0) target = $region98
        $region97: #{tpu_custom_call.1} parent=63 // pred_region
          %624 = vsyncadd [#allocation6], 4096
        $region98: #{tpu_custom_call.1} parent=63 // pred_fallthru
          _
        %s625 = smul.u32 256, 1
        %s626 = sshll.u32 %s625, 4
        %627 = dma.done [#allocation6], %s626
      $region64: #{tpu_custom_call.1} parent=59 // pred_fallthru
        _
      // Predicated region
      $region99: #{tpu_custom_call.1} parent=59 // pred_check
        %p628 = pneg %p515
      $region100: #{tpu_custom_call.1} parent=59 // pred_check_branch
        %630 = sbr.rel (%p628) target = $region102
      $region101: #{tpu_custom_call.1} parent=59 // pred_region
        %vm631 = vcmask 130048
        %632 = vst.msk [vmem:[#allocation3] sm:$0xff] %vm631, 0.0
        %633 = vst.msk [vmem:[#allocation3 + $0x8] sm:$0xff] %vm631, 0.0
        %634 = vst.msk [vmem:[#allocation3 + $0x10] sm:$0xff] %vm631, 0.0
        %635 = vst.msk [vmem:[#allocation3 + $0x18] sm:$0xff] %vm631, 0.0
        %636 = vst.msk [vmem:[#allocation3 + $0x20] sm:$0xff] %vm631, 0.0
        %637 = vst.msk [vmem:[#allocation3 + $0x28] sm:$0xff] %vm631, 0.0
        %638 = vst.msk [vmem:[#allocation3 + $0x30] sm:$0xff] %vm631, 0.0
        %639 = vst.msk [vmem:[#allocation3 + $0x38] sm:$0xff] %vm631, 0.0
        %640 = vst.msk [vmem:[#allocation3 + $0x40] sm:$0xff] %vm631, 0.0
        %641 = vst.msk [vmem:[#allocation3 + $0x48] sm:$0xff] %vm631, 0.0
        %642 = vst.msk [vmem:[#allocation3 + $0x50] sm:$0xff] %vm631, 0.0
        %643 = vst.msk [vmem:[#allocation3 + $0x58] sm:$0xff] %vm631, 0.0
        %644 = vst.msk [vmem:[#allocation3 + $0x60] sm:$0xff] %vm631, 0.0
        %645 = vst.msk [vmem:[#allocation3 + $0x68] sm:$0xff] %vm631, 0.0
        %646 = vst.msk [vmem:[#allocation3 + $0x70] sm:$0xff] %vm631, 0.0
        %647 = vst.msk [vmem:[#allocation3 + $0x78] sm:$0xff] %vm631, 0.0
        %648 = vst.msk [vmem:[#allocation3 + $0x80] sm:$0xff] %vm631, 0.0
        %649 = vst.msk [vmem:[#allocation3 + $0x88] sm:$0xff] %vm631, 0.0
        %650 = vst.msk [vmem:[#allocation3 + $0x90] sm:$0xff] %vm631, 0.0
        %651 = vst.msk [vmem:[#allocation3 + $0x98] sm:$0xff] %vm631, 0.0
        %652 = vst.msk [vmem:[#allocation3 + $0xa0] sm:$0xff] %vm631, 0.0
        %653 = vst.msk [vmem:[#allocation3 + $0xa8] sm:$0xff] %vm631, 0.0
        %654 = vst.msk [vmem:[#allocation3 + $0xb0] sm:$0xff] %vm631, 0.0
        %655 = vst.msk [vmem:[#allocation3 + $0xb8] sm:$0xff] %vm631, 0.0
        %656 = vst.msk [vmem:[#allocation3 + $0xc0] sm:$0xff] %vm631, 0.0
        %657 = vst.msk [vmem:[#allocation3 + $0xc8] sm:$0xff] %vm631, 0.0
        %658 = vst.msk [vmem:[#allocation3 + $0xd0] sm:$0xff] %vm631, 0.0
        %659 = vst.msk [vmem:[#allocation3 + $0xd8] sm:$0xff] %vm631, 0.0
        %660 = vst.msk [vmem:[#allocation3 + $0xe0] sm:$0xff] %vm631, 0.0
        %661 = vst.msk [vmem:[#allocation3 + $0xe8] sm:$0xff] %vm631, 0.0
        %662 = vst.msk [vmem:[#allocation3 + $0xf0] sm:$0xff] %vm631, 0.0
        %663 = vst.msk [vmem:[#allocation3 + $0xf8] sm:$0xff] %vm631, 0.0
        %v664 = vld [vmem:[#allocation2] sm:$0xff]
        %v665 = vld [vmem:[#allocation2 + $0x8] sm:$0xff]
        %v666 = vld [vmem:[#allocation2 + $0x10] sm:$0xff]
        %v667 = vld [vmem:[#allocation2 + $0x18] sm:$0xff]
        %v668 = vld [vmem:[#allocation2 + $0x20] sm:$0xff]
        %v669 = vld [vmem:[#allocation2 + $0x28] sm:$0xff]
        %v670 = vld [vmem:[#allocation2 + $0x30] sm:$0xff]
        %v671 = vld [vmem:[#allocation2 + $0x38] sm:$0xff]
        %v672 = vld [vmem:[#allocation2 + $0x40] sm:$0xff]
        %v673 = vld [vmem:[#allocation2 + $0x48] sm:$0xff]
        %v674 = vld [vmem:[#allocation2 + $0x50] sm:$0xff]
        %v675 = vld [vmem:[#allocation2 + $0x58] sm:$0xff]
        %v676 = vld [vmem:[#allocation2 + $0x60] sm:$0xff]
        %v677 = vld [vmem:[#allocation2 + $0x68] sm:$0xff]
        %v678 = vld [vmem:[#allocation2 + $0x70] sm:$0xff]
        %v679 = vld [vmem:[#allocation2 + $0x78] sm:$0xff]
        %v680 = vld [vmem:[#allocation2 + $0x80] sm:$0xff]
        %v681 = vld [vmem:[#allocation2 + $0x88] sm:$0xff]
        %v682 = vld [vmem:[#allocation2 + $0x90] sm:$0xff]
        %v683 = vld [vmem:[#allocation2 + $0x98] sm:$0xff]
        %v684 = vld [vmem:[#allocation2 + $0xa0] sm:$0xff]
        %v685 = vld [vmem:[#allocation2 + $0xa8] sm:$0xff]
        %v686 = vld [vmem:[#allocation2 + $0xb0] sm:$0xff]
        %v687 = vld [vmem:[#allocation2 + $0xb8] sm:$0xff]
        %v688 = vld [vmem:[#allocation2 + $0xc0] sm:$0xff]
        %v689 = vld [vmem:[#allocation2 + $0xc8] sm:$0xff]
        %v690 = vld [vmem:[#allocation2 + $0xd0] sm:$0xff]
        %v691 = vld [vmem:[#allocation2 + $0xd8] sm:$0xff]
        %v692 = vld [vmem:[#allocation2 + $0xe0] sm:$0xff]
        %v693 = vld [vmem:[#allocation2 + $0xe8] sm:$0xff]
        %v694 = vld [vmem:[#allocation2 + $0xf0] sm:$0xff]
        %v695 = vld [vmem:[#allocation2 + $0xf8] sm:$0xff]
        %v696 = vld [vmem:[%s500] sm:$0xff]
        %v697 = vld [vmem:[%s500 + $0x8] sm:$0xff]
        %v698 = vld [vmem:[%s500 + $0x10] sm:$0xff]
        %v699 = vld [vmem:[%s500 + $0x18] sm:$0xff]
        %vm700 = vcmask 261120
        %v702 = vsel %vm700, %v664, 0
        %v705 = vsel %vm700, %v665, 0
        %v708 = vsel %vm700, %v666, 0
        %v711 = vsel %vm700, %v667, 0
        %v714 = vsel %vm700, %v668, 0
        %v717 = vsel %vm700, %v669, 0
        %v720 = vsel %vm700, %v670, 0
        %v723 = vsel %vm700, %v671, 0
        %v726 = vsel %vm700, %v672, 0
        %v729 = vsel %vm700, %v673, 0
        %v732 = vsel %vm700, %v674, 0
        %v735 = vsel %vm700, %v675, 0
        %v738 = vsel %vm700, %v676, 0
        %v741 = vsel %vm700, %v677, 0
        %v744 = vsel %vm700, %v678, 0
        %v747 = vsel %vm700, %v679, 0
        %v750 = vsel %vm700, %v680, 0
        %v753 = vsel %vm700, %v681, 0
        %v756 = vsel %vm700, %v682, 0
        %v759 = vsel %vm700, %v683, 0
        %v762 = vsel %vm700, %v684, 0
        %v765 = vsel %vm700, %v685, 0
        %v768 = vsel %vm700, %v686, 0
        %v771 = vsel %vm700, %v687, 0
        %v774 = vsel %vm700, %v688, 0
        %v777 = vsel %vm700, %v689, 0
        %v780 = vsel %vm700, %v690, 0
        %v783 = vsel %vm700, %v691, 0
        %v786 = vsel %vm700, %v692, 0
        %v789 = vsel %vm700, %v693, 0
        %v792 = vsel %vm700, %v694, 0
        %v795 = vsel %vm700, %v695, 0
        %797 = vmatprep.subr.mxu0 0.0
        %798 = vmatpush1.msra.mxu0 0.0
        %799 = vmatprep.subr.mxu0 0.0
        %800 = vmatpush1.msra.mxu0 0.0
        %801 = vmatprep.subr.mxu0 0.0
        %802 = vmatpush1.msra.mxu0 0.0
        %803 = vmatprep.subr.mxu0 0.0
        %804 = vmatpush1.msra.mxu0 0.0
        %805 = vmatprep.subr.mxu0 0.0
        %806 = vmatpush1.msra.mxu0 0.0
        %807 = vmatprep.subr.mxu0 0.0
        %808 = vmatpush1.msra.mxu0 0.0
        %809 = vmatprep.subr.mxu0 0.0
        %810 = vmatpush1.msra.mxu0 0.0
        %811 = vmatprep.subr.mxu0 0.0
        %812 = vmatpush1.msra.mxu0 0.0
        %813 = vmatprep.subr.mxu0 0.0
        %814 = vmatpush1.msra.mxu0 0.0
        %815 = vmatprep.subr.mxu0 0.0
        %816 = vmatpush1.msra.mxu0 0.0
        %817 = vmatprep.subr.mxu0 0.0
        %818 = vmatpush1.msra.mxu0 0.0
        %819 = vmatprep.subr.mxu0 0.0
        %820 = vmatpush1.msra.mxu0 0.0
        %821 = vmatprep.subr.mxu0 0.0
        %822 = vmatpush1.msra.mxu0 %v699
        %823 = vmatprep.subr.mxu0 0.0
        %824 = vmatpush1.msra.mxu0 %v698
        %825 = vmatprep.subr.mxu0 0.0
        %826 = vmatpush1.msra.mxu0 %v697
        %827 = vmatprep.subr.mxu0 0.0
        %828 = vmatpush1.msra.mxu0 %v696
        %829 = vmatprep.subr.mxu0 0.0
        %830 = vmatpush2.msra.mxu0 0.0
        %831 = vmatprep.subr.mxu0 0.0
        %832 = vmatpush2.msra.mxu0 0.0
        %833 = vmatprep.subr.mxu0 0.0
        %834 = vmatpush2.msra.mxu0 0.0
        %835 = vmatprep.subr.mxu0 0.0
        %836 = vmatpush2.msra.mxu0 0.0
        %837 = vmatprep.subr.mxu0 0.0
        %838 = vmatpush2.msra.mxu0 0.0
        %839 = vmatprep.subr.mxu0 0.0
        %840 = vmatpush2.msra.mxu0 0.0
        %841 = vmatprep.subr.mxu0 0.0
        %842 = vmatpush2.msra.mxu0 0.0
        %843 = vmatprep.subr.mxu0 0.0
        %844 = vmatpush2.msra.mxu0 0.0
        %845 = vmatprep.subr.mxu0 0.0
        %846 = vmatpush2.msra.mxu0 0.0
        %847 = vmatprep.subr.mxu0 0.0
        %848 = vmatpush2.msra.mxu0 0.0
        %849 = vmatprep.subr.mxu0 0.0
        %850 = vmatpush2.msra.mxu0 0.0
        %851 = vmatprep.subr.mxu0 0.0
        %852 = vmatpush2.msra.mxu0 0.0
        %853 = vmatprep.subr.mxu0 0.0
        %854 = vmatpush2.msra.mxu0 0.0
        %855 = vmatprep.subr.mxu0 0.0
        %856 = vmatpush2.msra.mxu0 0.0
        %857 = vmatprep.subr.mxu0 0.0
        %858 = vmatpush2.msra.mxu0 0.0
        %859 = vmatprep.subr.mxu0 0.0
        %860 = vmatpush2.msra.mxu0 0.0
        %861 = vmatprep.mubr.f32.mxu0 0.0
        %862 = vmatmul.mubr.f32.gmra.mxu0 %v702
        %v863 = vpop.f32.mrf.mxu0
        %v864 = vadd.f32 0.0, %v863
        %v865 = vpop.f32.mrf.mxu0
        %866 = vmatprep.mubr.f32.mxu0 0.0
        %867 = vmatmul.mubr.f32.gmra.mxu0 %v705
        %v868 = vpop.f32.mrf.mxu0
        %v869 = vadd.f32 0.0, %v868
        %v870 = vpop.f32.mrf.mxu0
        %871 = vmatprep.mubr.f32.mxu0 0.0
        %872 = vmatmul.mubr.f32.gmra.mxu0 %v708
        %v873 = vpop.f32.mrf.mxu0
        %v874 = vadd.f32 0.0, %v873
        %v875 = vpop.f32.mrf.mxu0
        %876 = vmatprep.mubr.f32.mxu0 0.0
        %877 = vmatmul.mubr.f32.gmra.mxu0 %v711
        %v878 = vpop.f32.mrf.mxu0
        %v879 = vadd.f32 0.0, %v878
        %v880 = vpop.f32.mrf.mxu0
        %881 = vmatprep.mubr.f32.mxu0 0.0
        %882 = vmatmul.mubr.f32.gmra.mxu0 %v714
        %v883 = vpop.f32.mrf.mxu0
        %v884 = vadd.f32 0.0, %v883
        %v885 = vpop.f32.mrf.mxu0
        %886 = vmatprep.mubr.f32.mxu0 0.0
        %887 = vmatmul.mubr.f32.gmra.mxu0 %v717
        %v888 = vpop.f32.mrf.mxu0
        %v889 = vadd.f32 0.0, %v888
        %v890 = vpop.f32.mrf.mxu0
        %891 = vmatprep.mubr.f32.mxu0 0.0
        %892 = vmatmul.mubr.f32.gmra.mxu0 %v720
        %v893 = vpop.f32.mrf.mxu0
        %v894 = vadd.f32 0.0, %v893
        %v895 = vpop.f32.mrf.mxu0
        %896 = vmatprep.mubr.f32.mxu0 0.0
        %897 = vmatmul.mubr.f32.gmra.mxu0 %v723
        %v898 = vpop.f32.mrf.mxu0
        %v899 = vadd.f32 0.0, %v898
        %v900 = vpop.f32.mrf.mxu0
        %901 = vmatprep.mubr.f32.mxu0 0.0
        %902 = vmatmul.mubr.f32.gmra.mxu0 %v726
        %v903 = vpop.f32.mrf.mxu0
        %v904 = vadd.f32 0.0, %v903
        %v905 = vpop.f32.mrf.mxu0
        %906 = vmatprep.mubr.f32.mxu0 0.0
        %907 = vmatmul.mubr.f32.gmra.mxu0 %v729
        %v908 = vpop.f32.mrf.mxu0
        %v909 = vadd.f32 0.0, %v908
        %v910 = vpop.f32.mrf.mxu0
        %911 = vmatprep.mubr.f32.mxu0 0.0
        %912 = vmatmul.mubr.f32.gmra.mxu0 %v732
        %v913 = vpop.f32.mrf.mxu0
        %v914 = vadd.f32 0.0, %v913
        %v915 = vpop.f32.mrf.mxu0
        %916 = vmatprep.mubr.f32.mxu0 0.0
        %917 = vmatmul.mubr.f32.gmra.mxu0 %v735
        %v918 = vpop.f32.mrf.mxu0
        %v919 = vadd.f32 0.0, %v918
        %v920 = vpop.f32.mrf.mxu0
        %921 = vmatprep.mubr.f32.mxu0 0.0
        %922 = vmatmul.mubr.f32.gmra.mxu0 %v738
        %v923 = vpop.f32.mrf.mxu0
        %v924 = vadd.f32 0.0, %v923
        %v925 = vpop.f32.mrf.mxu0
        %926 = vmatprep.mubr.f32.mxu0 0.0
        %927 = vmatmul.mubr.f32.gmra.mxu0 %v741
        %v928 = vpop.f32.mrf.mxu0
        %v929 = vadd.f32 0.0, %v928
        %v930 = vpop.f32.mrf.mxu0
        %931 = vmatprep.mubr.f32.mxu0 0.0
        %932 = vmatmul.mubr.f32.gmra.mxu0 %v744
        %v933 = vpop.f32.mrf.mxu0
        %v934 = vadd.f32 0.0, %v933
        %v935 = vpop.f32.mrf.mxu0
        %936 = vmatprep.mubr.f32.mxu0 0.0
        %937 = vmatmul.mubr.f32.gmra.mxu0 %v747
        %v938 = vpop.f32.mrf.mxu0
        %v939 = vadd.f32 0.0, %v938
        %v940 = vpop.f32.mrf.mxu0
        %941 = vmatprep.mubr.f32.mxu0 0.0
        %942 = vmatmul.mubr.f32.gmra.mxu0 %v750
        %v943 = vpop.f32.mrf.mxu0
        %v944 = vadd.f32 0.0, %v943
        %v945 = vpop.f32.mrf.mxu0
        %946 = vmatprep.mubr.f32.mxu0 0.0
        %947 = vmatmul.mubr.f32.gmra.mxu0 %v753
        %v948 = vpop.f32.mrf.mxu0
        %v949 = vadd.f32 0.0, %v948
        %v950 = vpop.f32.mrf.mxu0
        %951 = vmatprep.mubr.f32.mxu0 0.0
        %952 = vmatmul.mubr.f32.gmra.mxu0 %v756
        %v953 = vpop.f32.mrf.mxu0
        %v954 = vadd.f32 0.0, %v953
        %v955 = vpop.f32.mrf.mxu0
        %956 = vmatprep.mubr.f32.mxu0 0.0
        %957 = vmatmul.mubr.f32.gmra.mxu0 %v759
        %v958 = vpop.f32.mrf.mxu0
        %v959 = vadd.f32 0.0, %v958
        %v960 = vpop.f32.mrf.mxu0
        %961 = vmatprep.mubr.f32.mxu0 0.0
        %962 = vmatmul.mubr.f32.gmra.mxu0 %v762
        %v963 = vpop.f32.mrf.mxu0
        %v964 = vadd.f32 0.0, %v963
        %v965 = vpop.f32.mrf.mxu0
        %966 = vmatprep.mubr.f32.mxu0 0.0
        %967 = vmatmul.mubr.f32.gmra.mxu0 %v765
        %v968 = vpop.f32.mrf.mxu0
        %v969 = vadd.f32 0.0, %v968
        %v970 = vpop.f32.mrf.mxu0
        %971 = vmatprep.mubr.f32.mxu0 0.0
        %972 = vmatmul.mubr.f32.gmra.mxu0 %v768
        %v973 = vpop.f32.mrf.mxu0
        %v974 = vadd.f32 0.0, %v973
        %v975 = vpop.f32.mrf.mxu0
        %976 = vmatprep.mubr.f32.mxu0 0.0
        %977 = vmatmul.mubr.f32.gmra.mxu0 %v771
        %v978 = vpop.f32.mrf.mxu0
        %v979 = vadd.f32 0.0, %v978
        %v980 = vpop.f32.mrf.mxu0
        %981 = vmatprep.mubr.f32.mxu0 0.0
        %982 = vmatmul.mubr.f32.gmra.mxu0 %v774
        %v983 = vpop.f32.mrf.mxu0
        %v984 = vadd.f32 0.0, %v983
        %v985 = vpop.f32.mrf.mxu0
        %986 = vmatprep.mubr.f32.mxu0 0.0
        %987 = vmatmul.mubr.f32.gmra.mxu0 %v777
        %v988 = vpop.f32.mrf.mxu0
        %v989 = vadd.f32 0.0, %v988
        %v990 = vpop.f32.mrf.mxu0
        %991 = vmatprep.mubr.f32.mxu0 0.0
        %992 = vmatmul.mubr.f32.gmra.mxu0 %v780
        %v993 = vpop.f32.mrf.mxu0
        %v994 = vadd.f32 0.0, %v993
        %v995 = vpop.f32.mrf.mxu0
        %996 = vmatprep.mubr.f32.mxu0 0.0
        %997 = vmatmul.mubr.f32.gmra.mxu0 %v783
        %v998 = vpop.f32.mrf.mxu0
        %v999 = vadd.f32 0.0, %v998
        %v1000 = vpop.f32.mrf.mxu0
        %1001 = vmatprep.mubr.f32.mxu0 0.0
        %1002 = vmatmul.mubr.f32.gmra.mxu0 %v786
        %v1003 = vpop.f32.mrf.mxu0
        %v1004 = vadd.f32 0.0, %v1003
        %v1005 = vpop.f32.mrf.mxu0
        %1006 = vmatprep.mubr.f32.mxu0 0.0
        %1007 = vmatmul.mubr.f32.gmra.mxu0 %v789
        %v1008 = vpop.f32.mrf.mxu0
        %v1009 = vadd.f32 0.0, %v1008
        %v1010 = vpop.f32.mrf.mxu0
        %1011 = vmatprep.mubr.f32.mxu0 0.0
        %1012 = vmatmul.mubr.f32.gmra.mxu0 %v792
        %v1013 = vpop.f32.mrf.mxu0
        %v1014 = vadd.f32 0.0, %v1013
        %v1015 = vpop.f32.mrf.mxu0
        %1016 = vmatprep.mubr.f32.mxu0 0.0
        %1017 = vmatmul.mubr.f32.gmra.mxu0 %v795
        %v1018 = vpop.f32.mrf.mxu0
        %v1019 = vadd.f32 0.0, %v1018
        %v1020 = vpop.f32.mrf.mxu0
        %1021 = vdwg.mxu0
        %1022 = vst.msk [vmem:[#allocation4] sm:$0xff] %vm631, %v864
        %1023 = vst.msk [vmem:[#allocation4 + $0x8] sm:$0xff] %vm631, %v869
        %1024 = vst.msk [vmem:[#allocation4 + $0x10] sm:$0xff] %vm631, %v874
        %1025 = vst.msk [vmem:[#allocation4 + $0x18] sm:$0xff] %vm631, %v879
        %1026 = vst.msk [vmem:[#allocation4 + $0x20] sm:$0xff] %vm631, %v884
        %1027 = vst.msk [vmem:[#allocation4 + $0x28] sm:$0xff] %vm631, %v889
        %1028 = vst.msk [vmem:[#allocation4 + $0x30] sm:$0xff] %vm631, %v894
        %1029 = vst.msk [vmem:[#allocation4 + $0x38] sm:$0xff] %vm631, %v899
        %1030 = vst.msk [vmem:[#allocation4 + $0x40] sm:$0xff] %vm631, %v904
        %1031 = vst.msk [vmem:[#allocation4 + $0x48] sm:$0xff] %vm631, %v909
        %1032 = vst.msk [vmem:[#allocation4 + $0x50] sm:$0xff] %vm631, %v914
        %1033 = vst.msk [vmem:[#allocation4 + $0x58] sm:$0xff] %vm631, %v919
        %1034 = vst.msk [vmem:[#allocation4 + $0x60] sm:$0xff] %vm631, %v924
        %1035 = vst.msk [vmem:[#allocation4 + $0x68] sm:$0xff] %vm631, %v929
        %1036 = vst.msk [vmem:[#allocation4 + $0x70] sm:$0xff] %vm631, %v934
        %1037 = vst.msk [vmem:[#allocation4 + $0x78] sm:$0xff] %vm631, %v939
        %1038 = vst.msk [vmem:[#allocation4 + $0x80] sm:$0xff] %vm631, %v944
        %1039 = vst.msk [vmem:[#allocation4 + $0x88] sm:$0xff] %vm631, %v949
        %1040 = vst.msk [vmem:[#allocation4 + $0x90] sm:$0xff] %vm631, %v954
        %1041 = vst.msk [vmem:[#allocation4 + $0x98] sm:$0xff] %vm631, %v959
        %1042 = vst.msk [vmem:[#allocation4 + $0xa0] sm:$0xff] %vm631, %v964
        %1043 = vst.msk [vmem:[#allocation4 + $0xa8] sm:$0xff] %vm631, %v969
        %1044 = vst.msk [vmem:[#allocation4 + $0xb0] sm:$0xff] %vm631, %v974
        %1045 = vst.msk [vmem:[#allocation4 + $0xb8] sm:$0xff] %vm631, %v979
        %1046 = vst.msk [vmem:[#allocation4 + $0xc0] sm:$0xff] %vm631, %v984
        %1047 = vst.msk [vmem:[#allocation4 + $0xc8] sm:$0xff] %vm631, %v989
        %1048 = vst.msk [vmem:[#allocation4 + $0xd0] sm:$0xff] %vm631, %v994
        %1049 = vst.msk [vmem:[#allocation4 + $0xd8] sm:$0xff] %vm631, %v999
        %1050 = vst.msk [vmem:[#allocation4 + $0xe0] sm:$0xff] %vm631, %v1004
        %1051 = vst.msk [vmem:[#allocation4 + $0xe8] sm:$0xff] %vm631, %v1009
        %1052 = vst.msk [vmem:[#allocation4 + $0xf0] sm:$0xff] %vm631, %v1014
        %1053 = vst.msk [vmem:[#allocation4 + $0xf8] sm:$0xff] %vm631, %v1019
        %v1054 = vld [vmem:[%s505] sm:$0xff]
        %v1055 = vld [vmem:[%s505 + $0x8] sm:$0xff]
        %v1056 = vld [vmem:[%s505 + $0x10] sm:$0xff]
        %v1057 = vld [vmem:[%s505 + $0x18] sm:$0xff]
        %1058 = vmatprep.subr.mxu0 0.0
        %1059 = vmatpush1.msra.mxu0 0.0
        %1060 = vmatprep.subr.mxu0 0.0
        %1061 = vmatpush1.msra.mxu0 0.0
        %1062 = vmatprep.subr.mxu0 0.0
        %1063 = vmatpush1.msra.mxu0 0.0
        %1064 = vmatprep.subr.mxu0 0.0
        %1065 = vmatpush1.msra.mxu0 0.0
        %1066 = vmatprep.subr.mxu0 0.0
        %1067 = vmatpush1.msra.mxu0 0.0
        %1068 = vmatprep.subr.mxu0 0.0
        %1069 = vmatpush1.msra.mxu0 0.0
        %1070 = vmatprep.subr.mxu0 0.0
        %1071 = vmatpush1.msra.mxu0 0.0
        %1072 = vmatprep.subr.mxu0 0.0
        %1073 = vmatpush1.msra.mxu0 0.0
        %1074 = vmatprep.subr.mxu0 0.0
        %1075 = vmatpush1.msra.mxu0 0.0
        %1076 = vmatprep.subr.mxu0 0.0
        %1077 = vmatpush1.msra.mxu0 0.0
        %1078 = vmatprep.subr.mxu0 0.0
        %1079 = vmatpush1.msra.mxu0 0.0
        %1080 = vmatprep.subr.mxu0 0.0
        %1081 = vmatpush1.msra.mxu0 0.0
        %1082 = vmatprep.subr.mxu0 0.0
        %1083 = vmatpush1.msra.mxu0 %v1057
        %1084 = vmatprep.subr.mxu0 0.0
        %1085 = vmatpush1.msra.mxu0 %v1056
        %1086 = vmatprep.subr.mxu0 0.0
        %1087 = vmatpush1.msra.mxu0 %v1055
        %1088 = vmatprep.subr.mxu0 0.0
        %1089 = vmatpush1.msra.mxu0 %v1054
        %1090 = vmatprep.subr.mxu0 0.0
        %1091 = vmatpush2.msra.mxu0 0.0
        %1092 = vmatprep.subr.mxu0 0.0
        %1093 = vmatpush2.msra.mxu0 0.0
        %1094 = vmatprep.subr.mxu0 0.0
        %1095 = vmatpush2.msra.mxu0 0.0
        %1096 = vmatprep.subr.mxu0 0.0
        %1097 = vmatpush2.msra.mxu0 0.0
        %1098 = vmatprep.subr.mxu0 0.0
        %1099 = vmatpush2.msra.mxu0 0.0
        %1100 = vmatprep.subr.mxu0 0.0
        %1101 = vmatpush2.msra.mxu0 0.0
        %1102 = vmatprep.subr.mxu0 0.0
        %1103 = vmatpush2.msra.mxu0 0.0
        %1104 = vmatprep.subr.mxu0 0.0
        %1105 = vmatpush2.msra.mxu0 0.0
        %1106 = vmatprep.subr.mxu0 0.0
        %1107 = vmatpush2.msra.mxu0 0.0
        %1108 = vmatprep.subr.mxu0 0.0
        %1109 = vmatpush2.msra.mxu0 0.0
        %1110 = vmatprep.subr.mxu0 0.0
        %1111 = vmatpush2.msra.mxu0 0.0
        %1112 = vmatprep.subr.mxu0 0.0
        %1113 = vmatpush2.msra.mxu0 0.0
        %1114 = vmatprep.subr.mxu0 0.0
        %1115 = vmatpush2.msra.mxu0 0.0
        %1116 = vmatprep.subr.mxu0 0.0
        %1117 = vmatpush2.msra.mxu0 0.0
        %1118 = vmatprep.subr.mxu0 0.0
        %1119 = vmatpush2.msra.mxu0 0.0
        %1120 = vmatprep.subr.mxu0 0.0
        %1121 = vmatpush2.msra.mxu0 0.0
        %1122 = vmatprep.mubr.f32.mxu0 0.0
        %1123 = vmatmul.mubr.f32.gmra.mxu0 %v702
        %v1124 = vpop.f32.mrf.mxu0
        %v1125 = vadd.f32 0.0, %v1124
        %v1126 = vpop.f32.mrf.mxu0
        %1127 = vmatprep.mubr.f32.mxu0 0.0
        %1128 = vmatmul.mubr.f32.gmra.mxu0 %v705
        %v1129 = vpop.f32.mrf.mxu0
        %v1130 = vadd.f32 0.0, %v1129
        %v1131 = vpop.f32.mrf.mxu0
        %1132 = vmatprep.mubr.f32.mxu0 0.0
        %1133 = vmatmul.mubr.f32.gmra.mxu0 %v708
        %v1134 = vpop.f32.mrf.mxu0
        %v1135 = vadd.f32 0.0, %v1134
        %v1136 = vpop.f32.mrf.mxu0
        %1137 = vmatprep.mubr.f32.mxu0 0.0
        %1138 = vmatmul.mubr.f32.gmra.mxu0 %v711
        %v1139 = vpop.f32.mrf.mxu0
        %v1140 = vadd.f32 0.0, %v1139
        %v1141 = vpop.f32.mrf.mxu0
        %1142 = vmatprep.mubr.f32.mxu0 0.0
        %1143 = vmatmul.mubr.f32.gmra.mxu0 %v714
        %v1144 = vpop.f32.mrf.mxu0
        %v1145 = vadd.f32 0.0, %v1144
        %v1146 = vpop.f32.mrf.mxu0
        %1147 = vmatprep.mubr.f32.mxu0 0.0
        %1148 = vmatmul.mubr.f32.gmra.mxu0 %v717
        %v1149 = vpop.f32.mrf.mxu0
        %v1150 = vadd.f32 0.0, %v1149
        %v1151 = vpop.f32.mrf.mxu0
        %1152 = vmatprep.mubr.f32.mxu0 0.0
        %1153 = vmatmul.mubr.f32.gmra.mxu0 %v720
        %v1154 = vpop.f32.mrf.mxu0
        %v1155 = vadd.f32 0.0, %v1154
        %v1156 = vpop.f32.mrf.mxu0
        %1157 = vmatprep.mubr.f32.mxu0 0.0
        %1158 = vmatmul.mubr.f32.gmra.mxu0 %v723
        %v1159 = vpop.f32.mrf.mxu0
        %v1160 = vadd.f32 0.0, %v1159
        %v1161 = vpop.f32.mrf.mxu0
        %1162 = vmatprep.mubr.f32.mxu0 0.0
        %1163 = vmatmul.mubr.f32.gmra.mxu0 %v726
        %v1164 = vpop.f32.mrf.mxu0
        %v1165 = vadd.f32 0.0, %v1164
        %v1166 = vpop.f32.mrf.mxu0
        %1167 = vmatprep.mubr.f32.mxu0 0.0
        %1168 = vmatmul.mubr.f32.gmra.mxu0 %v729
        %v1169 = vpop.f32.mrf.mxu0
        %v1170 = vadd.f32 0.0, %v1169
        %v1171 = vpop.f32.mrf.mxu0
        %1172 = vmatprep.mubr.f32.mxu0 0.0
        %1173 = vmatmul.mubr.f32.gmra.mxu0 %v732
        %v1174 = vpop.f32.mrf.mxu0
        %v1175 = vadd.f32 0.0, %v1174
        %v1176 = vpop.f32.mrf.mxu0
        %1177 = vmatprep.mubr.f32.mxu0 0.0
        %1178 = vmatmul.mubr.f32.gmra.mxu0 %v735
        %v1179 = vpop.f32.mrf.mxu0
        %v1180 = vadd.f32 0.0, %v1179
        %v1181 = vpop.f32.mrf.mxu0
        %1182 = vmatprep.mubr.f32.mxu0 0.0
        %1183 = vmatmul.mubr.f32.gmra.mxu0 %v738
        %v1184 = vpop.f32.mrf.mxu0
        %v1185 = vadd.f32 0.0, %v1184
        %v1186 = vpop.f32.mrf.mxu0
        %1187 = vmatprep.mubr.f32.mxu0 0.0
        %1188 = vmatmul.mubr.f32.gmra.mxu0 %v741
        %v1189 = vpop.f32.mrf.mxu0
        %v1190 = vadd.f32 0.0, %v1189
        %v1191 = vpop.f32.mrf.mxu0
        %1192 = vmatprep.mubr.f32.mxu0 0.0
        %1193 = vmatmul.mubr.f32.gmra.mxu0 %v744
        %v1194 = vpop.f32.mrf.mxu0
        %v1195 = vadd.f32 0.0, %v1194
        %v1196 = vpop.f32.mrf.mxu0
        %1197 = vmatprep.mubr.f32.mxu0 0.0
        %1198 = vmatmul.mubr.f32.gmra.mxu0 %v747
        %v1199 = vpop.f32.mrf.mxu0
        %v1200 = vadd.f32 0.0, %v1199
        %v1201 = vpop.f32.mrf.mxu0
        %1202 = vmatprep.mubr.f32.mxu0 0.0
        %1203 = vmatmul.mubr.f32.gmra.mxu0 %v750
        %v1204 = vpop.f32.mrf.mxu0
        %v1205 = vadd.f32 0.0, %v1204
        %v1206 = vpop.f32.mrf.mxu0
        %1207 = vmatprep.mubr.f32.mxu0 0.0
        %1208 = vmatmul.mubr.f32.gmra.mxu0 %v753
        %v1209 = vpop.f32.mrf.mxu0
        %v1210 = vadd.f32 0.0, %v1209
        %v1211 = vpop.f32.mrf.mxu0
        %1212 = vmatprep.mubr.f32.mxu0 0.0
        %1213 = vmatmul.mubr.f32.gmra.mxu0 %v756
        %v1214 = vpop.f32.mrf.mxu0
        %v1215 = vadd.f32 0.0, %v1214
        %v1216 = vpop.f32.mrf.mxu0
        %1217 = vmatprep.mubr.f32.mxu0 0.0
        %1218 = vmatmul.mubr.f32.gmra.mxu0 %v759
        %v1219 = vpop.f32.mrf.mxu0
        %v1220 = vadd.f32 0.0, %v1219
        %v1221 = vpop.f32.mrf.mxu0
        %1222 = vmatprep.mubr.f32.mxu0 0.0
        %1223 = vmatmul.mubr.f32.gmra.mxu0 %v762
        %v1224 = vpop.f32.mrf.mxu0
        %v1225 = vadd.f32 0.0, %v1224
        %v1226 = vpop.f32.mrf.mxu0
        %1227 = vmatprep.mubr.f32.mxu0 0.0
        %1228 = vmatmul.mubr.f32.gmra.mxu0 %v765
        %v1229 = vpop.f32.mrf.mxu0
        %v1230 = vadd.f32 0.0, %v1229
        %v1231 = vpop.f32.mrf.mxu0
        %1232 = vmatprep.mubr.f32.mxu0 0.0
        %1233 = vmatmul.mubr.f32.gmra.mxu0 %v768
        %v1234 = vpop.f32.mrf.mxu0
        %v1235 = vadd.f32 0.0, %v1234
        %v1236 = vpop.f32.mrf.mxu0
        %1237 = vmatprep.mubr.f32.mxu0 0.0
        %1238 = vmatmul.mubr.f32.gmra.mxu0 %v771
        %v1239 = vpop.f32.mrf.mxu0
        %v1240 = vadd.f32 0.0, %v1239
        %v1241 = vpop.f32.mrf.mxu0
        %1242 = vmatprep.mubr.f32.mxu0 0.0
        %1243 = vmatmul.mubr.f32.gmra.mxu0 %v774
        %v1244 = vpop.f32.mrf.mxu0
        %v1245 = vadd.f32 0.0, %v1244
        %v1246 = vpop.f32.mrf.mxu0
        %1247 = vmatprep.mubr.f32.mxu0 0.0
        %1248 = vmatmul.mubr.f32.gmra.mxu0 %v777
        %v1249 = vpop.f32.mrf.mxu0
        %v1250 = vadd.f32 0.0, %v1249
        %v1251 = vpop.f32.mrf.mxu0
        %1252 = vmatprep.mubr.f32.mxu0 0.0
        %1253 = vmatmul.mubr.f32.gmra.mxu0 %v780
        %v1254 = vpop.f32.mrf.mxu0
        %v1255 = vadd.f32 0.0, %v1254
        %v1256 = vpop.f32.mrf.mxu0
        %1257 = vmatprep.mubr.f32.mxu0 0.0
        %1258 = vmatmul.mubr.f32.gmra.mxu0 %v783
        %v1259 = vpop.f32.mrf.mxu0
        %v1260 = vadd.f32 0.0, %v1259
        %v1261 = vpop.f32.mrf.mxu0
        %1262 = vmatprep.mubr.f32.mxu0 0.0
        %1263 = vmatmul.mubr.f32.gmra.mxu0 %v786
        %v1264 = vpop.f32.mrf.mxu0
        %v1265 = vadd.f32 0.0, %v1264
        %v1266 = vpop.f32.mrf.mxu0
        %1267 = vmatprep.mubr.f32.mxu0 0.0
        %1268 = vmatmul.mubr.f32.gmra.mxu0 %v789
        %v1269 = vpop.f32.mrf.mxu0
        %v1270 = vadd.f32 0.0, %v1269
        %v1271 = vpop.f32.mrf.mxu0
        %1272 = vmatprep.mubr.f32.mxu0 0.0
        %1273 = vmatmul.mubr.f32.gmra.mxu0 %v792
        %v1274 = vpop.f32.mrf.mxu0
        %v1275 = vadd.f32 0.0, %v1274
        %v1276 = vpop.f32.mrf.mxu0
        %1277 = vmatprep.mubr.f32.mxu0 0.0
        %1278 = vmatmul.mubr.f32.gmra.mxu0 %v795
        %v1279 = vpop.f32.mrf.mxu0
        %v1280 = vadd.f32 0.0, %v1279
        %v1281 = vpop.f32.mrf.mxu0
        %1282 = vdwg.mxu0
        %1283 = vst.msk [vmem:[#allocation5] sm:$0xff] %vm700, %v1125
        %1284 = vst.msk [vmem:[#allocation5 + $0x8] sm:$0xff] %vm700, %v1130
        %1285 = vst.msk [vmem:[#allocation5 + $0x10] sm:$0xff] %vm700, %v1135
        %1286 = vst.msk [vmem:[#allocation5 + $0x18] sm:$0xff] %vm700, %v1140
        %1287 = vst.msk [vmem:[#allocation5 + $0x20] sm:$0xff] %vm700, %v1145
        %1288 = vst.msk [vmem:[#allocation5 + $0x28] sm:$0xff] %vm700, %v1150
        %1289 = vst.msk [vmem:[#allocation5 + $0x30] sm:$0xff] %vm700, %v1155
        %1290 = vst.msk [vmem:[#allocation5 + $0x38] sm:$0xff] %vm700, %v1160
        %1291 = vst.msk [vmem:[#allocation5 + $0x40] sm:$0xff] %vm700, %v1165
        %1292 = vst.msk [vmem:[#allocation5 + $0x48] sm:$0xff] %vm700, %v1170
        %1293 = vst.msk [vmem:[#allocation5 + $0x50] sm:$0xff] %vm700, %v1175
        %1294 = vst.msk [vmem:[#allocation5 + $0x58] sm:$0xff] %vm700, %v1180
        %1295 = vst.msk [vmem:[#allocation5 + $0x60] sm:$0xff] %vm700, %v1185
        %1296 = vst.msk [vmem:[#allocation5 + $0x68] sm:$0xff] %vm700, %v1190
        %1297 = vst.msk [vmem:[#allocation5 + $0x70] sm:$0xff] %vm700, %v1195
        %1298 = vst.msk [vmem:[#allocation5 + $0x78] sm:$0xff] %vm700, %v1200
        %1299 = vst.msk [vmem:[#allocation5 + $0x80] sm:$0xff] %vm700, %v1205
        %1300 = vst.msk [vmem:[#allocation5 + $0x88] sm:$0xff] %vm700, %v1210
        %1301 = vst.msk [vmem:[#allocation5 + $0x90] sm:$0xff] %vm700, %v1215
        %1302 = vst.msk [vmem:[#allocation5 + $0x98] sm:$0xff] %vm700, %v1220
        %1303 = vst.msk [vmem:[#allocation5 + $0xa0] sm:$0xff] %vm700, %v1225
        %1304 = vst.msk [vmem:[#allocation5 + $0xa8] sm:$0xff] %vm700, %v1230
        %1305 = vst.msk [vmem:[#allocation5 + $0xb0] sm:$0xff] %vm700, %v1235
        %1306 = vst.msk [vmem:[#allocation5 + $0xb8] sm:$0xff] %vm700, %v1240
        %1307 = vst.msk [vmem:[#allocation5 + $0xc0] sm:$0xff] %vm700, %v1245
        %1308 = vst.msk [vmem:[#allocation5 + $0xc8] sm:$0xff] %vm700, %v1250
        %1309 = vst.msk [vmem:[#allocation5 + $0xd0] sm:$0xff] %vm700, %v1255
        %1310 = vst.msk [vmem:[#allocation5 + $0xd8] sm:$0xff] %vm700, %v1260
        %1311 = vst.msk [vmem:[#allocation5 + $0xe0] sm:$0xff] %vm700, %v1265
        %1312 = vst.msk [vmem:[#allocation5 + $0xe8] sm:$0xff] %vm700, %v1270
        %1313 = vst.msk [vmem:[#allocation5 + $0xf0] sm:$0xff] %vm700, %v1275
        %1314 = vst.msk [vmem:[#allocation5 + $0xf8] sm:$0xff] %vm700, %v1280
      $region102: #{tpu_custom_call.1} parent=59 // pred_fallthru
        _
      %v1315 = vld [vmem:[%s473] sm:$0xff]
      %v1316 = vld [vmem:[%s473 + $0x8] sm:$0xff]
      %v1317 = vld [vmem:[%s473 + $0x10] sm:$0xff]
      %v1318 = vld [vmem:[%s473 + $0x18] sm:$0xff]
      %v1319 = vld [vmem:[%s473 + $0x20] sm:$0xff]
      %v1320 = vld [vmem:[%s473 + $0x28] sm:$0xff]
      %v1321 = vld [vmem:[%s473 + $0x30] sm:$0xff]
      %v1322 = vld [vmem:[%s473 + $0x38] sm:$0xff]
      %v1323 = vld [vmem:[%s473 + $0x40] sm:$0xff]
      %v1324 = vld [vmem:[%s473 + $0x48] sm:$0xff]
      %v1325 = vld [vmem:[%s473 + $0x50] sm:$0xff]
      %v1326 = vld [vmem:[%s473 + $0x58] sm:$0xff]
      %v1327 = vld [vmem:[%s473 + $0x60] sm:$0xff]
      %v1328 = vld [vmem:[%s473 + $0x68] sm:$0xff]
      %v1329 = vld [vmem:[%s473 + $0x70] sm:$0xff]
      %v1330 = vld [vmem:[%s473 + $0x78] sm:$0xff]
      %v1331 = vld [vmem:[%s473 + $0x80] sm:$0xff]
      %v1332 = vld [vmem:[%s473 + $0x88] sm:$0xff]
      %v1333 = vld [vmem:[%s473 + $0x90] sm:$0xff]
      %v1334 = vld [vmem:[%s473 + $0x98] sm:$0xff]
      %v1335 = vld [vmem:[%s473 + $0xa0] sm:$0xff]
      %v1336 = vld [vmem:[%s473 + $0xa8] sm:$0xff]
      %v1337 = vld [vmem:[%s473 + $0xb0] sm:$0xff]
      %v1338 = vld [vmem:[%s473 + $0xb8] sm:$0xff]
      %v1339 = vld [vmem:[%s473 + $0xc0] sm:$0xff]
      %v1340 = vld [vmem:[%s473 + $0xc8] sm:$0xff]
      %v1341 = vld [vmem:[%s473 + $0xd0] sm:$0xff]
      %v1342 = vld [vmem:[%s473 + $0xd8] sm:$0xff]
      %v1343 = vld [vmem:[%s473 + $0xe0] sm:$0xff]
      %v1344 = vld [vmem:[%s473 + $0xe8] sm:$0xff]
      %v1345 = vld [vmem:[%s473 + $0xf0] sm:$0xff]
      %v1346 = vld [vmem:[%s473 + $0xf8] sm:$0xff]
      %v1347 = vld [vmem:[%s479] sm:$0xff]
      %v1348 = vld [vmem:[%s479 + $0x8] sm:$0xff]
      %v1349 = vld [vmem:[%s479 + $0x10] sm:$0xff]
      %v1350 = vld [vmem:[%s479 + $0x18] sm:$0xff]
      %v1351 = vld [vmem:[%s479 + $0x20] sm:$0xff]
      %v1352 = vld [vmem:[%s479 + $0x28] sm:$0xff]
      %v1353 = vld [vmem:[%s479 + $0x30] sm:$0xff]
      %v1354 = vld [vmem:[%s479 + $0x38] sm:$0xff]
      %v1355 = vld [vmem:[%s479 + $0x40] sm:$0xff]
      %v1356 = vld [vmem:[%s479 + $0x48] sm:$0xff]
      %v1357 = vld [vmem:[%s479 + $0x50] sm:$0xff]
      %v1358 = vld [vmem:[%s479 + $0x58] sm:$0xff]
      %v1359 = vld [vmem:[%s479 + $0x60] sm:$0xff]
      %v1360 = vld [vmem:[%s479 + $0x68] sm:$0xff]
      %v1361 = vld [vmem:[%s479 + $0x70] sm:$0xff]
      %v1362 = vld [vmem:[%s479 + $0x78] sm:$0xff]
      %v1363 = vld [vmem:[%s479 + $0x80] sm:$0xff]
      %v1364 = vld [vmem:[%s479 + $0x88] sm:$0xff]
      %v1365 = vld [vmem:[%s479 + $0x90] sm:$0xff]
      %v1366 = vld [vmem:[%s479 + $0x98] sm:$0xff]
      %v1367 = vld [vmem:[%s479 + $0xa0] sm:$0xff]
      %v1368 = vld [vmem:[%s479 + $0xa8] sm:$0xff]
      %v1369 = vld [vmem:[%s479 + $0xb0] sm:$0xff]
      %v1370 = vld [vmem:[%s479 + $0xb8] sm:$0xff]
      %v1371 = vld [vmem:[%s479 + $0xc0] sm:$0xff]
      %v1372 = vld [vmem:[%s479 + $0xc8] sm:$0xff]
      %v1373 = vld [vmem:[%s479 + $0xd0] sm:$0xff]
      %v1374 = vld [vmem:[%s479 + $0xd8] sm:$0xff]
      %v1375 = vld [vmem:[%s479 + $0xe0] sm:$0xff]
      %v1376 = vld [vmem:[%s479 + $0xe8] sm:$0xff]
      %v1377 = vld [vmem:[%s479 + $0xf0] sm:$0xff]
      %v1378 = vld [vmem:[%s479 + $0xf8] sm:$0xff]
      %v1379 = vld [vmem:[%s485] sm:$0xff]
      %v1380 = vld [vmem:[%s485 + $0x8] sm:$0xff]
      %v1381 = vld [vmem:[%s485 + $0x10] sm:$0xff]
      %v1382 = vld [vmem:[%s485 + $0x18] sm:$0xff]
      %v1383 = vld [vmem:[%s485 + $0x20] sm:$0xff]
      %v1384 = vld [vmem:[%s485 + $0x28] sm:$0xff]
      %v1385 = vld [vmem:[%s485 + $0x30] sm:$0xff]
      %v1386 = vld [vmem:[%s485 + $0x38] sm:$0xff]
      %v1387 = vld [vmem:[%s485 + $0x40] sm:$0xff]
      %v1388 = vld [vmem:[%s485 + $0x48] sm:$0xff]
      %v1389 = vld [vmem:[%s485 + $0x50] sm:$0xff]
      %v1390 = vld [vmem:[%s485 + $0x58] sm:$0xff]
      %v1391 = vld [vmem:[%s485 + $0x60] sm:$0xff]
      %v1392 = vld [vmem:[%s485 + $0x68] sm:$0xff]
      %v1393 = vld [vmem:[%s485 + $0x70] sm:$0xff]
      %v1394 = vld [vmem:[%s485 + $0x78] sm:$0xff]
      %v1395 = vld [vmem:[%s485 + $0x80] sm:$0xff]
      %v1396 = vld [vmem:[%s485 + $0x88] sm:$0xff]
      %v1397 = vld [vmem:[%s485 + $0x90] sm:$0xff]
      %v1398 = vld [vmem:[%s485 + $0x98] sm:$0xff]
      %v1399 = vld [vmem:[%s485 + $0xa0] sm:$0xff]
      %v1400 = vld [vmem:[%s485 + $0xa8] sm:$0xff]
      %v1401 = vld [vmem:[%s485 + $0xb0] sm:$0xff]
      %v1402 = vld [vmem:[%s485 + $0xb8] sm:$0xff]
      %v1403 = vld [vmem:[%s485 + $0xc0] sm:$0xff]
      %v1404 = vld [vmem:[%s485 + $0xc8] sm:$0xff]
      %v1405 = vld [vmem:[%s485 + $0xd0] sm:$0xff]
      %v1406 = vld [vmem:[%s485 + $0xd8] sm:$0xff]
      %v1407 = vld [vmem:[%s485 + $0xe0] sm:$0xff]
      %v1408 = vld [vmem:[%s485 + $0xe8] sm:$0xff]
      %v1409 = vld [vmem:[%s485 + $0xf0] sm:$0xff]
      %v1410 = vld [vmem:[%s485 + $0xf8] sm:$0xff]
      %v1411 = vld [vmem:[%s490] sm:$0x3]
      %v1412 = vlaneseq
      %v1413 = vand.u32 %v1412, 127
      %v1414 = vadd.s32 %v1413, 128
      %1415 = vset.pattern.permute.xlu0 0
      %1416 = vperm.xlu0 %1415, %v1315
      %v1417 = vpop.permute.xlu0 %1416
      %1418 = vset.pattern.permute.xlu0 0
      %1419 = vperm.xlu0 %1418, %v1316
      %v1420 = vpop.permute.xlu0 %1419
      %1421 = vset.pattern.permute.xlu0 0
      %1422 = vperm.xlu0 %1421, %v1317
      %v1423 = vpop.permute.xlu0 %1422
      %1424 = vset.pattern.permute.xlu0 0
      %1425 = vperm.xlu0 %1424, %v1318
      %v1426 = vpop.permute.xlu0 %1425
      %1427 = vset.pattern.permute.xlu0 0
      %1428 = vperm.xlu0 %1427, %v1319
      %v1429 = vpop.permute.xlu0 %1428
      %1430 = vset.pattern.permute.xlu0 0
      %1431 = vperm.xlu0 %1430, %v1320
      %v1432 = vpop.permute.xlu0 %1431
      %1433 = vset.pattern.permute.xlu0 0
      %1434 = vperm.xlu0 %1433, %v1321
      %v1435 = vpop.permute.xlu0 %1434
      %1436 = vset.pattern.permute.xlu0 0
      %1437 = vperm.xlu0 %1436, %v1322
      %v1438 = vpop.permute.xlu0 %1437
      %1439 = vset.pattern.permute.xlu0 0
      %1440 = vperm.xlu0 %1439, %v1323
      %v1441 = vpop.permute.xlu0 %1440
      %1442 = vset.pattern.permute.xlu0 0
      %1443 = vperm.xlu0 %1442, %v1324
      %v1444 = vpop.permute.xlu0 %1443
      %1445 = vset.pattern.permute.xlu0 0
      %1446 = vperm.xlu0 %1445, %v1325
      %v1447 = vpop.permute.xlu0 %1446
      %1448 = vset.pattern.permute.xlu0 0
      %1449 = vperm.xlu0 %1448, %v1326
      %v1450 = vpop.permute.xlu0 %1449
      %1451 = vset.pattern.permute.xlu0 0
      %1452 = vperm.xlu0 %1451, %v1327
      %v1453 = vpop.permute.xlu0 %1452
      %1454 = vset.pattern.permute.xlu0 0
      %1455 = vperm.xlu0 %1454, %v1328
      %v1456 = vpop.permute.xlu0 %1455
      %1457 = vset.pattern.permute.xlu0 0
      %1458 = vperm.xlu0 %1457, %v1329
      %v1459 = vpop.permute.xlu0 %1458
      %1460 = vset.pattern.permute.xlu0 0
      %1461 = vperm.xlu0 %1460, %v1330
      %v1462 = vpop.permute.xlu0 %1461
      %1463 = vset.pattern.permute.xlu0 0
      %1464 = vperm.xlu0 %1463, %v1331
      %v1465 = vpop.permute.xlu0 %1464
      %1466 = vset.pattern.permute.xlu0 0
      %1467 = vperm.xlu0 %1466, %v1332
      %v1468 = vpop.permute.xlu0 %1467
      %1469 = vset.pattern.permute.xlu0 0
      %1470 = vperm.xlu0 %1469, %v1333
      %v1471 = vpop.permute.xlu0 %1470
      %1472 = vset.pattern.permute.xlu0 0
      %1473 = vperm.xlu0 %1472, %v1334
      %v1474 = vpop.permute.xlu0 %1473
      %1475 = vset.pattern.permute.xlu0 0
      %1476 = vperm.xlu0 %1475, %v1335
      %v1477 = vpop.permute.xlu0 %1476
      %1478 = vset.pattern.permute.xlu0 0
      %1479 = vperm.xlu0 %1478, %v1336
      %v1480 = vpop.permute.xlu0 %1479
      %1481 = vset.pattern.permute.xlu0 0
      %1482 = vperm.xlu0 %1481, %v1337
      %v1483 = vpop.permute.xlu0 %1482
      %1484 = vset.pattern.permute.xlu0 0
      %1485 = vperm.xlu0 %1484, %v1338
      %v1486 = vpop.permute.xlu0 %1485
      %1487 = vset.pattern.permute.xlu0 0
      %1488 = vperm.xlu0 %1487, %v1339
      %v1489 = vpop.permute.xlu0 %1488
      %1490 = vset.pattern.permute.xlu0 0
      %1491 = vperm.xlu0 %1490, %v1340
      %v1492 = vpop.permute.xlu0 %1491
      %1493 = vset.pattern.permute.xlu0 0
      %1494 = vperm.xlu0 %1493, %v1341
      %v1495 = vpop.permute.xlu0 %1494
      %1496 = vset.pattern.permute.xlu0 0
      %1497 = vperm.xlu0 %1496, %v1342
      %v1498 = vpop.permute.xlu0 %1497
      %1499 = vset.pattern.permute.xlu0 0
      %1500 = vperm.xlu0 %1499, %v1343
      %v1501 = vpop.permute.xlu0 %1500
      %1502 = vset.pattern.permute.xlu0 0
      %1503 = vperm.xlu0 %1502, %v1344
      %v1504 = vpop.permute.xlu0 %1503
      %1505 = vset.pattern.permute.xlu0 0
      %1506 = vperm.xlu0 %1505, %v1345
      %v1507 = vpop.permute.xlu0 %1506
      %1508 = vset.pattern.permute.xlu0 0
      %1509 = vperm.xlu0 %1508, %v1346
      %v1510 = vpop.permute.xlu0 %1509
      %vm1511 = vcmp.eq.s32.totalorder %v1413, %v1417
      %vm1512 = vcmp.eq.s32.totalorder %v1414, %v1417
      %vm1513 = vcmp.eq.s32.totalorder %v1413, %v1420
      %vm1514 = vcmp.eq.s32.totalorder %v1414, %v1420
      %vm1515 = vcmp.eq.s32.totalorder %v1413, %v1423
      %vm1516 = vcmp.eq.s32.totalorder %v1414, %v1423
      %vm1517 = vcmp.eq.s32.totalorder %v1413, %v1426
      %vm1518 = vcmp.eq.s32.totalorder %v1414, %v1426
      %vm1519 = vcmp.eq.s32.totalorder %v1413, %v1429
      %vm1520 = vcmp.eq.s32.totalorder %v1414, %v1429
      %vm1521 = vcmp.eq.s32.totalorder %v1413, %v1432
      %vm1522 = vcmp.eq.s32.totalorder %v1414, %v1432
      %vm1523 = vcmp.eq.s32.totalorder %v1413, %v1435
      %vm1524 = vcmp.eq.s32.totalorder %v1414, %v1435
      %vm1525 = vcmp.eq.s32.totalorder %v1413, %v1438
      %vm1526 = vcmp.eq.s32.totalorder %v1414, %v1438
      %vm1527 = vcmp.eq.s32.totalorder %v1413, %v1441
      %vm1528 = vcmp.eq.s32.totalorder %v1414, %v1441
      %vm1529 = vcmp.eq.s32.totalorder %v1413, %v1444
      %vm1530 = vcmp.eq.s32.totalorder %v1414, %v1444
      %vm1531 = vcmp.eq.s32.totalorder %v1413, %v1447
      %vm1532 = vcmp.eq.s32.totalorder %v1414, %v1447
      %vm1533 = vcmp.eq.s32.totalorder %v1413, %v1450
      %vm1534 = vcmp.eq.s32.totalorder %v1414, %v1450
      %vm1535 = vcmp.eq.s32.totalorder %v1413, %v1453
      %vm1536 = vcmp.eq.s32.totalorder %v1414, %v1453
      %vm1537 = vcmp.eq.s32.totalorder %v1413, %v1456
      %vm1538 = vcmp.eq.s32.totalorder %v1414, %v1456
      %vm1539 = vcmp.eq.s32.totalorder %v1413, %v1459
      %vm1540 = vcmp.eq.s32.totalorder %v1414, %v1459
      %vm1541 = vcmp.eq.s32.totalorder %v1413, %v1462
      %vm1542 = vcmp.eq.s32.totalorder %v1414, %v1462
      %vm1543 = vcmp.eq.s32.totalorder %v1413, %v1465
      %vm1544 = vcmp.eq.s32.totalorder %v1414, %v1465
      %vm1545 = vcmp.eq.s32.totalorder %v1413, %v1468
      %vm1546 = vcmp.eq.s32.totalorder %v1414, %v1468
      %vm1547 = vcmp.eq.s32.totalorder %v1413, %v1471
      %vm1548 = vcmp.eq.s32.totalorder %v1414, %v1471
      %vm1549 = vcmp.eq.s32.totalorder %v1413, %v1474
      %vm1550 = vcmp.eq.s32.totalorder %v1414, %v1474
      %vm1551 = vcmp.eq.s32.totalorder %v1413, %v1477
      %vm1552 = vcmp.eq.s32.totalorder %v1414, %v1477
      %vm1553 = vcmp.eq.s32.totalorder %v1413, %v1480
      %vm1554 = vcmp.eq.s32.totalorder %v1414, %v1480
      %vm1555 = vcmp.eq.s32.totalorder %v1413, %v1483
      %vm1556 = vcmp.eq.s32.totalorder %v1414, %v1483
      %vm1557 = vcmp.eq.s32.totalorder %v1413, %v1486
      %vm1558 = vcmp.eq.s32.totalorder %v1414, %v1486
      %vm1559 = vcmp.eq.s32.totalorder %v1413, %v1489
      %vm1560 = vcmp.eq.s32.totalorder %v1414, %v1489
      %vm1561 = vcmp.eq.s32.totalorder %v1413, %v1492
      %vm1562 = vcmp.eq.s32.totalorder %v1414, %v1492
      %vm1563 = vcmp.eq.s32.totalorder %v1413, %v1495
      %vm1564 = vcmp.eq.s32.totalorder %v1414, %v1495
      %vm1565 = vcmp.eq.s32.totalorder %v1413, %v1498
      %vm1566 = vcmp.eq.s32.totalorder %v1414, %v1498
      %vm1567 = vcmp.eq.s32.totalorder %v1413, %v1501
      %vm1568 = vcmp.eq.s32.totalorder %v1414, %v1501
      %vm1569 = vcmp.eq.s32.totalorder %v1413, %v1504
      %vm1570 = vcmp.eq.s32.totalorder %v1414, %v1504
      %vm1571 = vcmp.eq.s32.totalorder %v1413, %v1507
      %vm1572 = vcmp.eq.s32.totalorder %v1414, %v1507
      %vm1573 = vcmp.eq.s32.totalorder %v1413, %v1510
      %vm1574 = vcmp.eq.s32.totalorder %v1414, %v1510
      %v1575 = vsel %vm1511, 1, 0
      %v1576 = vsel %vm1512, 1, 0
      %v1577 = vsel %vm1513, 1, 0
      %v1578 = vsel %vm1514, 1, 0
      %v1579 = vsel %vm1515, 1, 0
      %v1580 = vsel %vm1516, 1, 0
      %v1581 = vsel %vm1517, 1, 0
      %v1582 = vsel %vm1518, 1, 0
      %v1583 = vsel %vm1519, 1, 0
      %v1584 = vsel %vm1520, 1, 0
      %v1585 = vsel %vm1521, 1, 0
      %v1586 = vsel %vm1522, 1, 0
      %v1587 = vsel %vm1523, 1, 0
      %v1588 = vsel %vm1524, 1, 0
      %v1589 = vsel %vm1525, 1, 0
      %v1590 = vsel %vm1526, 1, 0
      %v1591 = vsel %vm1527, 1, 0
      %v1592 = vsel %vm1528, 1, 0
      %v1593 = vsel %vm1529, 1, 0
      %v1594 = vsel %vm1530, 1, 0
      %v1595 = vsel %vm1531, 1, 0
      %v1596 = vsel %vm1532, 1, 0
      %v1597 = vsel %vm1533, 1, 0
      %v1598 = vsel %vm1534, 1, 0
      %v1599 = vsel %vm1535, 1, 0
      %v1600 = vsel %vm1536, 1, 0
      %v1601 = vsel %vm1537, 1, 0
      %v1602 = vsel %vm1538, 1, 0
      %v1603 = vsel %vm1539, 1, 0
      %v1604 = vsel %vm1540, 1, 0
      %v1605 = vsel %vm1541, 1, 0
      %v1606 = vsel %vm1542, 1, 0
      %v1607 = vsel %vm1543, 1, 0
      %v1608 = vsel %vm1544, 1, 0
      %v1609 = vsel %vm1545, 1, 0
      %v1610 = vsel %vm1546, 1, 0
      %v1611 = vsel %vm1547, 1, 0
      %v1612 = vsel %vm1548, 1, 0
      %v1613 = vsel %vm1549, 1, 0
      %v1614 = vsel %vm1550, 1, 0
      %v1615 = vsel %vm1551, 1, 0
      %v1616 = vsel %vm1552, 1, 0
      %v1617 = vsel %vm1553, 1, 0
      %v1618 = vsel %vm1554, 1, 0
      %v1619 = vsel %vm1555, 1, 0
      %v1620 = vsel %vm1556, 1, 0
      %v1621 = vsel %vm1557, 1, 0
      %v1622 = vsel %vm1558, 1, 0
      %v1623 = vsel %vm1559, 1, 0
      %v1624 = vsel %vm1560, 1, 0
      %v1625 = vsel %vm1561, 1, 0
      %v1626 = vsel %vm1562, 1, 0
      %v1627 = vsel %vm1563, 1, 0
      %v1628 = vsel %vm1564, 1, 0
      %v1629 = vsel %vm1565, 1, 0
      %v1630 = vsel %vm1566, 1, 0
      %v1631 = vsel %vm1567, 1, 0
      %v1632 = vsel %vm1568, 1, 0
      %v1633 = vsel %vm1569, 1, 0
      %v1634 = vsel %vm1570, 1, 0
      %v1635 = vsel %vm1571, 1, 0
      %v1636 = vsel %vm1572, 1, 0
      %v1637 = vsel %vm1573, 1, 0
      %v1638 = vsel %vm1574, 1, 0
      %v1639 = vcvt.s32.f32 %v1575
      %v1640 = vcvt.s32.f32 %v1576
      %v1641 = vcvt.s32.f32 %v1577
      %v1642 = vcvt.s32.f32 %v1578
      %v1643 = vcvt.s32.f32 %v1579
      %v1644 = vcvt.s32.f32 %v1580
      %v1645 = vcvt.s32.f32 %v1581
      %v1646 = vcvt.s32.f32 %v1582
      %v1647 = vcvt.s32.f32 %v1583
      %v1648 = vcvt.s32.f32 %v1584
      %v1649 = vcvt.s32.f32 %v1585
      %v1650 = vcvt.s32.f32 %v1586
      %v1651 = vcvt.s32.f32 %v1587
      %v1652 = vcvt.s32.f32 %v1588
      %v1653 = vcvt.s32.f32 %v1589
      %v1654 = vcvt.s32.f32 %v1590
      %v1655 = vcvt.s32.f32 %v1591
      %v1656 = vcvt.s32.f32 %v1592
      %v1657 = vcvt.s32.f32 %v1593
      %v1658 = vcvt.s32.f32 %v1594
      %v1659 = vcvt.s32.f32 %v1595
      %v1660 = vcvt.s32.f32 %v1596
      %v1661 = vcvt.s32.f32 %v1597
      %v1662 = vcvt.s32.f32 %v1598
      %v1663 = vcvt.s32.f32 %v1599
      %v1664 = vcvt.s32.f32 %v1600
      %v1665 = vcvt.s32.f32 %v1601
      %v1666 = vcvt.s32.f32 %v1602
      %v1667 = vcvt.s32.f32 %v1603
      %v1668 = vcvt.s32.f32 %v1604
      %v1669 = vcvt.s32.f32 %v1605
      %v1670 = vcvt.s32.f32 %v1606
      %v1671 = vcvt.s32.f32 %v1607
      %v1672 = vcvt.s32.f32 %v1608
      %v1673 = vcvt.s32.f32 %v1609
      %v1674 = vcvt.s32.f32 %v1610
      %v1675 = vcvt.s32.f32 %v1611
      %v1676 = vcvt.s32.f32 %v1612
      %v1677 = vcvt.s32.f32 %v1613
      %v1678 = vcvt.s32.f32 %v1614
      %v1679 = vcvt.s32.f32 %v1615
      %v1680 = vcvt.s32.f32 %v1616
      %v1681 = vcvt.s32.f32 %v1617
      %v1682 = vcvt.s32.f32 %v1618
      %v1683 = vcvt.s32.f32 %v1619
      %v1684 = vcvt.s32.f32 %v1620
      %v1685 = vcvt.s32.f32 %v1621
      %v1686 = vcvt.s32.f32 %v1622
      %v1687 = vcvt.s32.f32 %v1623
      %v1688 = vcvt.s32.f32 %v1624
      %v1689 = vcvt.s32.f32 %v1625
      %v1690 = vcvt.s32.f32 %v1626
      %v1691 = vcvt.s32.f32 %v1627
      %v1692 = vcvt.s32.f32 %v1628
      %v1693 = vcvt.s32.f32 %v1629
      %v1694 = vcvt.s32.f32 %v1630
      %v1695 = vcvt.s32.f32 %v1631
      %v1696 = vcvt.s32.f32 %v1632
      %v1697 = vcvt.s32.f32 %v1633
      %v1698 = vcvt.s32.f32 %v1634
      %v1699 = vcvt.s32.f32 %v1635
      %v1700 = vcvt.s32.f32 %v1636
      %v1701 = vcvt.s32.f32 %v1637
      %v1702 = vcvt.s32.f32 %v1638
      %v1703 = vld [vmem:[#allocation4] sm:$0xff]
      %v1704 = vld [vmem:[#allocation4 + $0x8] sm:$0xff]
      %v1705 = vld [vmem:[#allocation4 + $0x10] sm:$0xff]
      %v1706 = vld [vmem:[#allocation4 + $0x18] sm:$0xff]
      %v1707 = vld [vmem:[#allocation4 + $0x20] sm:$0xff]
      %v1708 = vld [vmem:[#allocation4 + $0x28] sm:$0xff]
      %v1709 = vld [vmem:[#allocation4 + $0x30] sm:$0xff]
      %v1710 = vld [vmem:[#allocation4 + $0x38] sm:$0xff]
      %v1711 = vld [vmem:[#allocation4 + $0x40] sm:$0xff]
      %v1712 = vld [vmem:[#allocation4 + $0x48] sm:$0xff]
      %v1713 = vld [vmem:[#allocation4 + $0x50] sm:$0xff]
      %v1714 = vld [vmem:[#allocation4 + $0x58] sm:$0xff]
      %v1715 = vld [vmem:[#allocation4 + $0x60] sm:$0xff]
      %v1716 = vld [vmem:[#allocation4 + $0x68] sm:$0xff]
      %v1717 = vld [vmem:[#allocation4 + $0x70] sm:$0xff]
      %v1718 = vld [vmem:[#allocation4 + $0x78] sm:$0xff]
      %v1719 = vld [vmem:[#allocation4 + $0x80] sm:$0xff]
      %v1720 = vld [vmem:[#allocation4 + $0x88] sm:$0xff]
      %v1721 = vld [vmem:[#allocation4 + $0x90] sm:$0xff]
      %v1722 = vld [vmem:[#allocation4 + $0x98] sm:$0xff]
      %v1723 = vld [vmem:[#allocation4 + $0xa0] sm:$0xff]
      %v1724 = vld [vmem:[#allocation4 + $0xa8] sm:$0xff]
      %v1725 = vld [vmem:[#allocation4 + $0xb0] sm:$0xff]
      %v1726 = vld [vmem:[#allocation4 + $0xb8] sm:$0xff]
      %v1727 = vld [vmem:[#allocation4 + $0xc0] sm:$0xff]
      %v1728 = vld [vmem:[#allocation4 + $0xc8] sm:$0xff]
      %v1729 = vld [vmem:[#allocation4 + $0xd0] sm:$0xff]
      %v1730 = vld [vmem:[#allocation4 + $0xd8] sm:$0xff]
      %v1731 = vld [vmem:[#allocation4 + $0xe0] sm:$0xff]
      %v1732 = vld [vmem:[#allocation4 + $0xe8] sm:$0xff]
      %v1733 = vld [vmem:[#allocation4 + $0xf0] sm:$0xff]
      %v1734 = vld [vmem:[#allocation4 + $0xf8] sm:$0xff]
      %v1735 = vld [vmem:[%s495] sm:$0xff]
      %v1736 = vcvt.s32.f32 %v1315
      %v1737 = vcvt.s32.f32 %v1316
      %v1738 = vcvt.s32.f32 %v1317
      %v1739 = vcvt.s32.f32 %v1318
      %v1740 = vcvt.s32.f32 %v1319
      %v1741 = vcvt.s32.f32 %v1320
      %v1742 = vcvt.s32.f32 %v1321
      %v1743 = vcvt.s32.f32 %v1322
      %v1744 = vcvt.s32.f32 %v1323
      %v1745 = vcvt.s32.f32 %v1324
      %v1746 = vcvt.s32.f32 %v1325
      %v1747 = vcvt.s32.f32 %v1326
      %v1748 = vcvt.s32.f32 %v1327
      %v1749 = vcvt.s32.f32 %v1328
      %v1750 = vcvt.s32.f32 %v1329
      %v1751 = vcvt.s32.f32 %v1330
      %v1752 = vcvt.s32.f32 %v1331
      %v1753 = vcvt.s32.f32 %v1332
      %v1754 = vcvt.s32.f32 %v1333
      %v1755 = vcvt.s32.f32 %v1334
      %v1756 = vcvt.s32.f32 %v1335
      %v1757 = vcvt.s32.f32 %v1336
      %v1758 = vcvt.s32.f32 %v1337
      %v1759 = vcvt.s32.f32 %v1338
      %v1760 = vcvt.s32.f32 %v1339
      %v1761 = vcvt.s32.f32 %v1340
      %v1762 = vcvt.s32.f32 %v1341
      %v1763 = vcvt.s32.f32 %v1342
      %v1764 = vcvt.s32.f32 %v1343
      %v1765 = vcvt.s32.f32 %v1344
      %v1766 = vcvt.s32.f32 %v1345
      %v1767 = vcvt.s32.f32 %v1346
      %1769 = vset.pattern.permute.xlu0 0
      %1770 = vperm.xlu0 %1769, %v1736
      %v1771 = vpop.permute.xlu0 %1770
      %1774 = vset.pattern.permute.xlu0 0
      %1775 = vperm.xlu0 %1774, %v1737
      %v1776 = vpop.permute.xlu0 %1775
      %1779 = vset.pattern.permute.xlu0 0
      %1780 = vperm.xlu0 %1779, %v1738
      %v1781 = vpop.permute.xlu0 %1780
      %1784 = vset.pattern.permute.xlu0 0
      %1785 = vperm.xlu0 %1784, %v1739
      %v1786 = vpop.permute.xlu0 %1785
      %1789 = vset.pattern.permute.xlu0 0
      %1790 = vperm.xlu0 %1789, %v1740
      %v1791 = vpop.permute.xlu0 %1790
      %1794 = vset.pattern.permute.xlu0 0
      %1795 = vperm.xlu0 %1794, %v1741
      %v1796 = vpop.permute.xlu0 %1795
      %1799 = vset.pattern.permute.xlu0 0
      %1800 = vperm.xlu0 %1799, %v1742
      %v1801 = vpop.permute.xlu0 %1800
      %1804 = vset.pattern.permute.xlu0 0
      %1805 = vperm.xlu0 %1804, %v1743
      %v1806 = vpop.permute.xlu0 %1805
      %1809 = vset.pattern.permute.xlu0 0
      %1810 = vperm.xlu0 %1809, %v1744
      %v1811 = vpop.permute.xlu0 %1810
      %1814 = vset.pattern.permute.xlu0 0
      %1815 = vperm.xlu0 %1814, %v1745
      %v1816 = vpop.permute.xlu0 %1815
      %1819 = vset.pattern.permute.xlu0 0
      %1820 = vperm.xlu0 %1819, %v1746
      %v1821 = vpop.permute.xlu0 %1820
      %1824 = vset.pattern.permute.xlu0 0
      %1825 = vperm.xlu0 %1824, %v1747
      %v1826 = vpop.permute.xlu0 %1825
      %1829 = vset.pattern.permute.xlu0 0
      %1830 = vperm.xlu0 %1829, %v1748
      %v1831 = vpop.permute.xlu0 %1830
      %1834 = vset.pattern.permute.xlu0 0
      %1835 = vperm.xlu0 %1834, %v1749
      %v1836 = vpop.permute.xlu0 %1835
      %1839 = vset.pattern.permute.xlu0 0
      %1840 = vperm.xlu0 %1839, %v1750
      %v1841 = vpop.permute.xlu0 %1840
      %1844 = vset.pattern.permute.xlu0 0
      %1845 = vperm.xlu0 %1844, %v1751
      %v1846 = vpop.permute.xlu0 %1845
      %1849 = vset.pattern.permute.xlu0 0
      %1850 = vperm.xlu0 %1849, %v1752
      %v1851 = vpop.permute.xlu0 %1850
      %1854 = vset.pattern.permute.xlu0 0
      %1855 = vperm.xlu0 %1854, %v1753
      %v1856 = vpop.permute.xlu0 %1855
      %1859 = vset.pattern.permute.xlu0 0
      %1860 = vperm.xlu0 %1859, %v1754
      %v1861 = vpop.permute.xlu0 %1860
      %1864 = vset.pattern.permute.xlu0 0
      %1865 = vperm.xlu0 %1864, %v1755
      %v1866 = vpop.permute.xlu0 %1865
      %1869 = vset.pattern.permute.xlu0 0
      %1870 = vperm.xlu0 %1869, %v1756
      %v1871 = vpop.permute.xlu0 %1870
      %1874 = vset.pattern.permute.xlu0 0
      %1875 = vperm.xlu0 %1874, %v1757
      %v1876 = vpop.permute.xlu0 %1875
      %1879 = vset.pattern.permute.xlu0 0
      %1880 = vperm.xlu0 %1879, %v1758
      %v1881 = vpop.permute.xlu0 %1880
      %1884 = vset.pattern.permute.xlu0 0
      %1885 = vperm.xlu0 %1884, %v1759
      %v1886 = vpop.permute.xlu0 %1885
      %1889 = vset.pattern.permute.xlu0 0
      %1890 = vperm.xlu0 %1889, %v1760
      %v1891 = vpop.permute.xlu0 %1890
      %1894 = vset.pattern.permute.xlu0 0
      %1895 = vperm.xlu0 %1894, %v1761
      %v1896 = vpop.permute.xlu0 %1895
      %1899 = vset.pattern.permute.xlu0 0
      %1900 = vperm.xlu0 %1899, %v1762
      %v1901 = vpop.permute.xlu0 %1900
      %1904 = vset.pattern.permute.xlu0 0
      %1905 = vperm.xlu0 %1904, %v1763
      %v1906 = vpop.permute.xlu0 %1905
      %1909 = vset.pattern.permute.xlu0 0
      %1910 = vperm.xlu0 %1909, %v1764
      %v1911 = vpop.permute.xlu0 %1910
      %1914 = vset.pattern.permute.xlu0 0
      %1915 = vperm.xlu0 %1914, %v1765
      %v1916 = vpop.permute.xlu0 %1915
      %1919 = vset.pattern.permute.xlu0 0
      %1920 = vperm.xlu0 %1919, %v1766
      %v1921 = vpop.permute.xlu0 %1920
      %1924 = vset.pattern.permute.xlu0 0
      %1925 = vperm.xlu0 %1924, %v1767
      %v1926 = vpop.permute.xlu0 %1925
      %v1928 = vlaneseq
      %v1929 = vshrl.u32 %v1928, 7
      %v1930 = vsub.s32 0, %v1929
      %v1931 = vrot.slane %v1735, %v1930
      %v1932 = vmul.f32 %v1771, %v1931
      %v1933 = vmul.f32 %v1776, %v1931
      %v1934 = vmul.f32 %v1781, %v1931
      %v1935 = vmul.f32 %v1786, %v1931
      %v1936 = vmul.f32 %v1791, %v1931
      %v1937 = vmul.f32 %v1796, %v1931
      %v1938 = vmul.f32 %v1801, %v1931
      %v1939 = vmul.f32 %v1806, %v1931
      %v1940 = vmul.f32 %v1811, %v1931
      %v1941 = vmul.f32 %v1816, %v1931
      %v1942 = vmul.f32 %v1821, %v1931
      %v1943 = vmul.f32 %v1826, %v1931
      %v1944 = vmul.f32 %v1831, %v1931
      %v1945 = vmul.f32 %v1836, %v1931
      %v1946 = vmul.f32 %v1841, %v1931
      %v1947 = vmul.f32 %v1846, %v1931
      %v1948 = vmul.f32 %v1851, %v1931
      %v1949 = vmul.f32 %v1856, %v1931
      %v1950 = vmul.f32 %v1861, %v1931
      %v1951 = vmul.f32 %v1866, %v1931
      %v1952 = vmul.f32 %v1871, %v1931
      %v1953 = vmul.f32 %v1876, %v1931
      %v1954 = vmul.f32 %v1881, %v1931
      %v1955 = vmul.f32 %v1886, %v1931
      %v1956 = vmul.f32 %v1891, %v1931
      %v1957 = vmul.f32 %v1896, %v1931
      %v1958 = vmul.f32 %v1901, %v1931
      %v1959 = vmul.f32 %v1906, %v1931
      %v1960 = vmul.f32 %v1911, %v1931
      %v1961 = vmul.f32 %v1916, %v1931
      %v1962 = vmul.f32 %v1921, %v1931
      %v1963 = vmul.f32 %v1926, %v1931
      %1964 = vmatprep.subr.mxu0 0.0
      %1965 = vmatpush1.msra.mxu0 %v1718
      %1966 = vmatprep.subr.mxu0 0.0
      %1967 = vmatpush1.msra.mxu0 %v1717
      %1968 = vmatprep.subr.mxu0 0.0
      %1969 = vmatpush1.msra.mxu0 %v1716
      %1970 = vmatprep.subr.mxu0 0.0
      %1971 = vmatpush1.msra.mxu0 %v1715
      %1972 = vmatprep.subr.mxu0 0.0
      %1973 = vmatpush1.msra.mxu0 %v1714
      %1974 = vmatprep.subr.mxu0 0.0
      %1975 = vmatpush1.msra.mxu0 %v1713
      %1976 = vmatprep.subr.mxu0 0.0
      %1977 = vmatpush1.msra.mxu0 %v1712
      %1978 = vmatprep.subr.mxu0 0.0
      %1979 = vmatpush1.msra.mxu0 %v1711
      %1980 = vmatprep.subr.mxu0 0.0
      %1981 = vmatpush1.msra.mxu0 %v1710
      %1982 = vmatprep.subr.mxu0 0.0
      %1983 = vmatpush1.msra.mxu0 %v1709
      %1984 = vmatprep.subr.mxu0 0.0
      %1985 = vmatpush1.msra.mxu0 %v1708
      %1986 = vmatprep.subr.mxu0 0.0
      %1987 = vmatpush1.msra.mxu0 %v1707
      %1988 = vmatprep.subr.mxu0 0.0
      %1989 = vmatpush1.msra.mxu0 %v1706
      %1990 = vmatprep.subr.mxu0 0.0
      %1991 = vmatpush1.msra.mxu0 %v1705
      %1992 = vmatprep.subr.mxu0 0.0
      %1993 = vmatpush1.msra.mxu0 %v1704
      %1994 = vmatprep.subr.mxu0 0.0
      %1995 = vmatpush1.msra.mxu0 %v1703
      %1996 = vmatprep.subr.mxu0 0.0
      %1997 = vmatpush2.msra.mxu0 %v1734
      %1998 = vmatprep.subr.mxu0 0.0
      %1999 = vmatpush2.msra.mxu0 %v1733
      %2000 = vmatprep.subr.mxu0 0.0
      %2001 = vmatpush2.msra.mxu0 %v1732
      %2002 = vmatprep.subr.mxu0 0.0
      %2003 = vmatpush2.msra.mxu0 %v1731
      %2004 = vmatprep.subr.mxu0 0.0
      %2005 = vmatpush2.msra.mxu0 %v1730
      %2006 = vmatprep.subr.mxu0 0.0
      %2007 = vmatpush2.msra.mxu0 %v1729
      %2008 = vmatprep.subr.mxu0 0.0
      %2009 = vmatpush2.msra.mxu0 %v1728
      %2010 = vmatprep.subr.mxu0 0.0
      %2011 = vmatpush2.msra.mxu0 %v1727
      %2012 = vmatprep.subr.mxu0 0.0
      %2013 = vmatpush2.msra.mxu0 %v1726
      %2014 = vmatprep.subr.mxu0 0.0
      %2015 = vmatpush2.msra.mxu0 %v1725
      %2016 = vmatprep.subr.mxu0 0.0
      %2017 = vmatpush2.msra.mxu0 %v1724
      %2018 = vmatprep.subr.mxu0 0.0
      %2019 = vmatpush2.msra.mxu0 %v1723
      %2020 = vmatprep.subr.mxu0 0.0
      %2021 = vmatpush2.msra.mxu0 %v1722
      %2022 = vmatprep.subr.mxu0 0.0
      %2023 = vmatpush2.msra.mxu0 %v1721
      %2024 = vmatprep.subr.mxu0 0.0
      %2025 = vmatpush2.msra.mxu0 %v1720
      %2026 = vmatprep.subr.mxu0 0.0
      %2027 = vmatpush2.msra.mxu0 %v1719
      %2028 = vmatprep.mubr.f32.mxu0 %v1640
      %2029 = vmatmul.mubr.f32.gmra.mxu0 %v1639
      %v2030 = vpop.f32.mrf.mxu0
      %v2031 = vadd.f32 %v1932, %v2030
      %v2032 = vpop.f32.mrf.mxu0
      %2033 = vmatprep.mubr.f32.mxu0 %v1642
      %2034 = vmatmul.mubr.f32.gmra.mxu0 %v1641
      %v2035 = vpop.f32.mrf.mxu0
      %v2036 = vadd.f32 %v1933, %v2035
      %v2037 = vpop.f32.mrf.mxu0
      %2038 = vmatprep.mubr.f32.mxu0 %v1644
      %2039 = vmatmul.mubr.f32.gmra.mxu0 %v1643
      %v2040 = vpop.f32.mrf.mxu0
      %v2041 = vadd.f32 %v1934, %v2040
      %v2042 = vpop.f32.mrf.mxu0
      %2043 = vmatprep.mubr.f32.mxu0 %v1646
      %2044 = vmatmul.mubr.f32.gmra.mxu0 %v1645
      %v2045 = vpop.f32.mrf.mxu0
      %v2046 = vadd.f32 %v1935, %v2045
      %v2047 = vpop.f32.mrf.mxu0
      %2048 = vmatprep.mubr.f32.mxu0 %v1648
      %2049 = vmatmul.mubr.f32.gmra.mxu0 %v1647
      %v2050 = vpop.f32.mrf.mxu0
      %v2051 = vadd.f32 %v1936, %v2050
      %v2052 = vpop.f32.mrf.mxu0
      %2053 = vmatprep.mubr.f32.mxu0 %v1650
      %2054 = vmatmul.mubr.f32.gmra.mxu0 %v1649
      %v2055 = vpop.f32.mrf.mxu0
      %v2056 = vadd.f32 %v1937, %v2055
      %v2057 = vpop.f32.mrf.mxu0
      %2058 = vmatprep.mubr.f32.mxu0 %v1652
      %2059 = vmatmul.mubr.f32.gmra.mxu0 %v1651
      %v2060 = vpop.f32.mrf.mxu0
      %v2061 = vadd.f32 %v1938, %v2060
      %v2062 = vpop.f32.mrf.mxu0
      %2063 = vmatprep.mubr.f32.mxu0 %v1654
      %2064 = vmatmul.mubr.f32.gmra.mxu0 %v1653
      %v2065 = vpop.f32.mrf.mxu0
      %v2066 = vadd.f32 %v1939, %v2065
      %v2067 = vpop.f32.mrf.mxu0
      %2068 = vmatprep.mubr.f32.mxu0 %v1656
      %2069 = vmatmul.mubr.f32.gmra.mxu0 %v1655
      %v2070 = vpop.f32.mrf.mxu0
      %v2071 = vadd.f32 %v1940, %v2070
      %v2072 = vpop.f32.mrf.mxu0
      %2073 = vmatprep.mubr.f32.mxu0 %v1658
      %2074 = vmatmul.mubr.f32.gmra.mxu0 %v1657
      %v2075 = vpop.f32.mrf.mxu0
      %v2076 = vadd.f32 %v1941, %v2075
      %v2077 = vpop.f32.mrf.mxu0
      %2078 = vmatprep.mubr.f32.mxu0 %v1660
      %2079 = vmatmul.mubr.f32.gmra.mxu0 %v1659
      %v2080 = vpop.f32.mrf.mxu0
      %v2081 = vadd.f32 %v1942, %v2080
      %v2082 = vpop.f32.mrf.mxu0
      %2083 = vmatprep.mubr.f32.mxu0 %v1662
      %2084 = vmatmul.mubr.f32.gmra.mxu0 %v1661
      %v2085 = vpop.f32.mrf.mxu0
      %v2086 = vadd.f32 %v1943, %v2085
      %v2087 = vpop.f32.mrf.mxu0
      %2088 = vmatprep.mubr.f32.mxu0 %v1664
      %2089 = vmatmul.mubr.f32.gmra.mxu0 %v1663
      %v2090 = vpop.f32.mrf.mxu0
      %v2091 = vadd.f32 %v1944, %v2090
      %v2092 = vpop.f32.mrf.mxu0
      %2093 = vmatprep.mubr.f32.mxu0 %v1666
      %2094 = vmatmul.mubr.f32.gmra.mxu0 %v1665
      %v2095 = vpop.f32.mrf.mxu0
      %v2096 = vadd.f32 %v1945, %v2095
      %v2097 = vpop.f32.mrf.mxu0
      %2098 = vmatprep.mubr.f32.mxu0 %v1668
      %2099 = vmatmul.mubr.f32.gmra.mxu0 %v1667
      %v2100 = vpop.f32.mrf.mxu0
      %v2101 = vadd.f32 %v1946, %v2100
      %v2102 = vpop.f32.mrf.mxu0
      %2103 = vmatprep.mubr.f32.mxu0 %v1670
      %2104 = vmatmul.mubr.f32.gmra.mxu0 %v1669
      %v2105 = vpop.f32.mrf.mxu0
      %v2106 = vadd.f32 %v1947, %v2105
      %v2107 = vpop.f32.mrf.mxu0
      %2108 = vmatprep.mubr.f32.mxu0 %v1672
      %2109 = vmatmul.mubr.f32.gmra.mxu0 %v1671
      %v2110 = vpop.f32.mrf.mxu0
      %v2111 = vadd.f32 %v1948, %v2110
      %v2112 = vpop.f32.mrf.mxu0
      %2113 = vmatprep.mubr.f32.mxu0 %v1674
      %2114 = vmatmul.mubr.f32.gmra.mxu0 %v1673
      %v2115 = vpop.f32.mrf.mxu0
      %v2116 = vadd.f32 %v1949, %v2115
      %v2117 = vpop.f32.mrf.mxu0
      %2118 = vmatprep.mubr.f32.mxu0 %v1676
      %2119 = vmatmul.mubr.f32.gmra.mxu0 %v1675
      %v2120 = vpop.f32.mrf.mxu0
      %v2121 = vadd.f32 %v1950, %v2120
      %v2122 = vpop.f32.mrf.mxu0
      %2123 = vmatprep.mubr.f32.mxu0 %v1678
      %2124 = vmatmul.mubr.f32.gmra.mxu0 %v1677
      %v2125 = vpop.f32.mrf.mxu0
      %v2126 = vadd.f32 %v1951, %v2125
      %v2127 = vpop.f32.mrf.mxu0
      %2128 = vmatprep.mubr.f32.mxu0 %v1680
      %2129 = vmatmul.mubr.f32.gmra.mxu0 %v1679
      %v2130 = vpop.f32.mrf.mxu0
      %v2131 = vadd.f32 %v1952, %v2130
      %v2132 = vpop.f32.mrf.mxu0
      %2133 = vmatprep.mubr.f32.mxu0 %v1682
      %2134 = vmatmul.mubr.f32.gmra.mxu0 %v1681
      %v2135 = vpop.f32.mrf.mxu0
      %v2136 = vadd.f32 %v1953, %v2135
      %v2137 = vpop.f32.mrf.mxu0
      %2138 = vmatprep.mubr.f32.mxu0 %v1684
      %2139 = vmatmul.mubr.f32.gmra.mxu0 %v1683
      %v2140 = vpop.f32.mrf.mxu0
      %v2141 = vadd.f32 %v1954, %v2140
      %v2142 = vpop.f32.mrf.mxu0
      %2143 = vmatprep.mubr.f32.mxu0 %v1686
      %2144 = vmatmul.mubr.f32.gmra.mxu0 %v1685
      %v2145 = vpop.f32.mrf.mxu0
      %v2146 = vadd.f32 %v1955, %v2145
      %v2147 = vpop.f32.mrf.mxu0
      %2148 = vmatprep.mubr.f32.mxu0 %v1688
      %2149 = vmatmul.mubr.f32.gmra.mxu0 %v1687
      %v2150 = vpop.f32.mrf.mxu0
      %v2151 = vadd.f32 %v1956, %v2150
      %v2152 = vpop.f32.mrf.mxu0
      %2153 = vmatprep.mubr.f32.mxu0 %v1690
      %2154 = vmatmul.mubr.f32.gmra.mxu0 %v1689
      %v2155 = vpop.f32.mrf.mxu0
      %v2156 = vadd.f32 %v1957, %v2155
      %v2157 = vpop.f32.mrf.mxu0
      %2158 = vmatprep.mubr.f32.mxu0 %v1692
      %2159 = vmatmul.mubr.f32.gmra.mxu0 %v1691
      %v2160 = vpop.f32.mrf.mxu0
      %v2161 = vadd.f32 %v1958, %v2160
      %v2162 = vpop.f32.mrf.mxu0
      %2163 = vmatprep.mubr.f32.mxu0 %v1694
      %2164 = vmatmul.mubr.f32.gmra.mxu0 %v1693
      %v2165 = vpop.f32.mrf.mxu0
      %v2166 = vadd.f32 %v1959, %v2165
      %v2167 = vpop.f32.mrf.mxu0
      %2168 = vmatprep.mubr.f32.mxu0 %v1696
      %2169 = vmatmul.mubr.f32.gmra.mxu0 %v1695
      %v2170 = vpop.f32.mrf.mxu0
      %v2171 = vadd.f32 %v1960, %v2170
      %v2172 = vpop.f32.mrf.mxu0
      %2173 = vmatprep.mubr.f32.mxu0 %v1698
      %2174 = vmatmul.mubr.f32.gmra.mxu0 %v1697
      %v2175 = vpop.f32.mrf.mxu0
      %v2176 = vadd.f32 %v1961, %v2175
      %v2177 = vpop.f32.mrf.mxu0
      %2178 = vmatprep.mubr.f32.mxu0 %v1700
      %2179 = vmatmul.mubr.f32.gmra.mxu0 %v1699
      %v2180 = vpop.f32.mrf.mxu0
      %v2181 = vadd.f32 %v1962, %v2180
      %v2182 = vpop.f32.mrf.mxu0
      %2183 = vmatprep.mubr.f32.mxu0 %v1702
      %2184 = vmatmul.mubr.f32.gmra.mxu0 %v1701
      %v2185 = vpop.f32.mrf.mxu0
      %v2186 = vadd.f32 %v1963, %v2185
      %v2187 = vpop.f32.mrf.mxu0
      %2188 = vdwg.mxu0
      %v2189 = vcvt.s32.f32 %v1347
      %v2190 = vcvt.s32.f32 %v1348
      %v2191 = vcvt.s32.f32 %v1349
      %v2192 = vcvt.s32.f32 %v1350
      %v2193 = vcvt.s32.f32 %v1351
      %v2194 = vcvt.s32.f32 %v1352
      %v2195 = vcvt.s32.f32 %v1353
      %v2196 = vcvt.s32.f32 %v1354
      %v2197 = vcvt.s32.f32 %v1355
      %v2198 = vcvt.s32.f32 %v1356
      %v2199 = vcvt.s32.f32 %v1357
      %v2200 = vcvt.s32.f32 %v1358
      %v2201 = vcvt.s32.f32 %v1359
      %v2202 = vcvt.s32.f32 %v1360
      %v2203 = vcvt.s32.f32 %v1361
      %v2204 = vcvt.s32.f32 %v1362
      %v2205 = vcvt.s32.f32 %v1363
      %v2206 = vcvt.s32.f32 %v1364
      %v2207 = vcvt.s32.f32 %v1365
      %v2208 = vcvt.s32.f32 %v1366
      %v2209 = vcvt.s32.f32 %v1367
      %v2210 = vcvt.s32.f32 %v1368
      %v2211 = vcvt.s32.f32 %v1369
      %v2212 = vcvt.s32.f32 %v1370
      %v2213 = vcvt.s32.f32 %v1371
      %v2214 = vcvt.s32.f32 %v1372
      %v2215 = vcvt.s32.f32 %v1373
      %v2216 = vcvt.s32.f32 %v1374
      %v2217 = vcvt.s32.f32 %v1375
      %v2218 = vcvt.s32.f32 %v1376
      %v2219 = vcvt.s32.f32 %v1377
      %v2220 = vcvt.s32.f32 %v1378
      %2222 = vset.pattern.permute.xlu0 0
      %2223 = vperm.xlu0 %2222, %v2189
      %v2224 = vpop.permute.xlu0 %2223
      %2227 = vset.pattern.permute.xlu0 0
      %2228 = vperm.xlu0 %2227, %v2190
      %v2229 = vpop.permute.xlu0 %2228
      %2232 = vset.pattern.permute.xlu0 0
      %2233 = vperm.xlu0 %2232, %v2191
      %v2234 = vpop.permute.xlu0 %2233
      %2237 = vset.pattern.permute.xlu0 0
      %2238 = vperm.xlu0 %2237, %v2192
      %v2239 = vpop.permute.xlu0 %2238
      %2242 = vset.pattern.permute.xlu0 0
      %2243 = vperm.xlu0 %2242, %v2193
      %v2244 = vpop.permute.xlu0 %2243
      %2247 = vset.pattern.permute.xlu0 0
      %2248 = vperm.xlu0 %2247, %v2194
      %v2249 = vpop.permute.xlu0 %2248
      %2252 = vset.pattern.permute.xlu0 0
      %2253 = vperm.xlu0 %2252, %v2195
      %v2254 = vpop.permute.xlu0 %2253
      %2257 = vset.pattern.permute.xlu0 0
      %2258 = vperm.xlu0 %2257, %v2196
      %v2259 = vpop.permute.xlu0 %2258
      %2262 = vset.pattern.permute.xlu0 0
      %2263 = vperm.xlu0 %2262, %v2197
      %v2264 = vpop.permute.xlu0 %2263
      %2267 = vset.pattern.permute.xlu0 0
      %2268 = vperm.xlu0 %2267, %v2198
      %v2269 = vpop.permute.xlu0 %2268
      %2272 = vset.pattern.permute.xlu0 0
      %2273 = vperm.xlu0 %2272, %v2199
      %v2274 = vpop.permute.xlu0 %2273
      %2277 = vset.pattern.permute.xlu0 0
      %2278 = vperm.xlu0 %2277, %v2200
      %v2279 = vpop.permute.xlu0 %2278
      %2282 = vset.pattern.permute.xlu0 0
      %2283 = vperm.xlu0 %2282, %v2201
      %v2284 = vpop.permute.xlu0 %2283
      %2287 = vset.pattern.permute.xlu0 0
      %2288 = vperm.xlu0 %2287, %v2202
      %v2289 = vpop.permute.xlu0 %2288
      %2292 = vset.pattern.permute.xlu0 0
      %2293 = vperm.xlu0 %2292, %v2203
      %v2294 = vpop.permute.xlu0 %2293
      %2297 = vset.pattern.permute.xlu0 0
      %2298 = vperm.xlu0 %2297, %v2204
      %v2299 = vpop.permute.xlu0 %2298
      %2302 = vset.pattern.permute.xlu0 0
      %2303 = vperm.xlu0 %2302, %v2205
      %v2304 = vpop.permute.xlu0 %2303
      %2307 = vset.pattern.permute.xlu0 0
      %2308 = vperm.xlu0 %2307, %v2206
      %v2309 = vpop.permute.xlu0 %2308
      %2312 = vset.pattern.permute.xlu0 0
      %2313 = vperm.xlu0 %2312, %v2207
      %v2314 = vpop.permute.xlu0 %2313
      %2317 = vset.pattern.permute.xlu0 0
      %2318 = vperm.xlu0 %2317, %v2208
      %v2319 = vpop.permute.xlu0 %2318
      %2322 = vset.pattern.permute.xlu0 0
      %2323 = vperm.xlu0 %2322, %v2209
      %v2324 = vpop.permute.xlu0 %2323
      %2327 = vset.pattern.permute.xlu0 0
      %2328 = vperm.xlu0 %2327, %v2210
      %v2329 = vpop.permute.xlu0 %2328
      %2332 = vset.pattern.permute.xlu0 0
      %2333 = vperm.xlu0 %2332, %v2211
      %v2334 = vpop.permute.xlu0 %2333
      %2337 = vset.pattern.permute.xlu0 0
      %2338 = vperm.xlu0 %2337, %v2212
      %v2339 = vpop.permute.xlu0 %2338
      %2342 = vset.pattern.permute.xlu0 0
      %2343 = vperm.xlu0 %2342, %v2213
      %v2344 = vpop.permute.xlu0 %2343
      %2347 = vset.pattern.permute.xlu0 0
      %2348 = vperm.xlu0 %2347, %v2214
      %v2349 = vpop.permute.xlu0 %2348
      %2352 = vset.pattern.permute.xlu0 0
      %2353 = vperm.xlu0 %2352, %v2215
      %v2354 = vpop.permute.xlu0 %2353
      %2357 = vset.pattern.permute.xlu0 0
      %2358 = vperm.xlu0 %2357, %v2216
      %v2359 = vpop.permute.xlu0 %2358
      %2362 = vset.pattern.permute.xlu0 0
      %2363 = vperm.xlu0 %2362, %v2217
      %v2364 = vpop.permute.xlu0 %2363
      %2367 = vset.pattern.permute.xlu0 0
      %2368 = vperm.xlu0 %2367, %v2218
      %v2369 = vpop.permute.xlu0 %2368
      %2372 = vset.pattern.permute.xlu0 0
      %2373 = vperm.xlu0 %2372, %v2219
      %v2374 = vpop.permute.xlu0 %2373
      %2377 = vset.pattern.permute.xlu0 0
      %2378 = vperm.xlu0 %2377, %v2220
      %v2379 = vpop.permute.xlu0 %2378
      %v2381 = vlaneseq
      %v2382 = vshrl.u32 %v2381, 7
      %v2383 = vsub.s32 1, %v2382
      %v2384 = vrot.slane %v1735, %v2383
      %v2385 = vmul.f32 %v2224, %v2384
      %v2386 = vmul.f32 %v2229, %v2384
      %v2387 = vmul.f32 %v2234, %v2384
      %v2388 = vmul.f32 %v2239, %v2384
      %v2389 = vmul.f32 %v2244, %v2384
      %v2390 = vmul.f32 %v2249, %v2384
      %v2391 = vmul.f32 %v2254, %v2384
      %v2392 = vmul.f32 %v2259, %v2384
      %v2393 = vmul.f32 %v2264, %v2384
      %v2394 = vmul.f32 %v2269, %v2384
      %v2395 = vmul.f32 %v2274, %v2384
      %v2396 = vmul.f32 %v2279, %v2384
      %v2397 = vmul.f32 %v2284, %v2384
      %v2398 = vmul.f32 %v2289, %v2384
      %v2399 = vmul.f32 %v2294, %v2384
      %v2400 = vmul.f32 %v2299, %v2384
      %v2401 = vmul.f32 %v2304, %v2384
      %v2402 = vmul.f32 %v2309, %v2384
      %v2403 = vmul.f32 %v2314, %v2384
      %v2404 = vmul.f32 %v2319, %v2384
      %v2405 = vmul.f32 %v2324, %v2384
      %v2406 = vmul.f32 %v2329, %v2384
      %v2407 = vmul.f32 %v2334, %v2384
      %v2408 = vmul.f32 %v2339, %v2384
      %v2409 = vmul.f32 %v2344, %v2384
      %v2410 = vmul.f32 %v2349, %v2384
      %v2411 = vmul.f32 %v2354, %v2384
      %v2412 = vmul.f32 %v2359, %v2384
      %v2413 = vmul.f32 %v2364, %v2384
      %v2414 = vmul.f32 %v2369, %v2384
      %v2415 = vmul.f32 %v2374, %v2384
      %v2416 = vmul.f32 %v2379, %v2384
      %v2417 = vadd.f32 %v2031, %v2385
      %v2418 = vadd.f32 %v2036, %v2386
      %v2419 = vadd.f32 %v2041, %v2387
      %v2420 = vadd.f32 %v2046, %v2388
      %v2421 = vadd.f32 %v2051, %v2389
      %v2422 = vadd.f32 %v2056, %v2390
      %v2423 = vadd.f32 %v2061, %v2391
      %v2424 = vadd.f32 %v2066, %v2392
      %v2425 = vadd.f32 %v2071, %v2393
      %v2426 = vadd.f32 %v2076, %v2394
      %v2427 = vadd.f32 %v2081, %v2395
      %v2428 = vadd.f32 %v2086, %v2396
      %v2429 = vadd.f32 %v2091, %v2397
      %v2430 = vadd.f32 %v2096, %v2398
      %v2431 = vadd.f32 %v2101, %v2399
      %v2432 = vadd.f32 %v2106, %v2400
      %v2433 = vadd.f32 %v2111, %v2401
      %v2434 = vadd.f32 %v2116, %v2402
      %v2435 = vadd.f32 %v2121, %v2403
      %v2436 = vadd.f32 %v2126, %v2404
      %v2437 = vadd.f32 %v2131, %v2405
      %v2438 = vadd.f32 %v2136, %v2406
      %v2439 = vadd.f32 %v2141, %v2407
      %v2440 = vadd.f32 %v2146, %v2408
      %v2441 = vadd.f32 %v2151, %v2409
      %v2442 = vadd.f32 %v2156, %v2410
      %v2443 = vadd.f32 %v2161, %v2411
      %v2444 = vadd.f32 %v2166, %v2412
      %v2445 = vadd.f32 %v2171, %v2413
      %v2446 = vadd.f32 %v2176, %v2414
      %v2447 = vadd.f32 %v2181, %v2415
      %v2448 = vadd.f32 %v2186, %v2416
      %v2449 = vcvt.s32.f32 %v1379
      %v2450 = vcvt.s32.f32 %v1380
      %v2451 = vcvt.s32.f32 %v1381
      %v2452 = vcvt.s32.f32 %v1382
      %v2453 = vcvt.s32.f32 %v1383
      %v2454 = vcvt.s32.f32 %v1384
      %v2455 = vcvt.s32.f32 %v1385
      %v2456 = vcvt.s32.f32 %v1386
      %v2457 = vcvt.s32.f32 %v1387
      %v2458 = vcvt.s32.f32 %v1388
      %v2459 = vcvt.s32.f32 %v1389
      %v2460 = vcvt.s32.f32 %v1390
      %v2461 = vcvt.s32.f32 %v1391
      %v2462 = vcvt.s32.f32 %v1392
      %v2463 = vcvt.s32.f32 %v1393
      %v2464 = vcvt.s32.f32 %v1394
      %v2465 = vcvt.s32.f32 %v1395
      %v2466 = vcvt.s32.f32 %v1396
      %v2467 = vcvt.s32.f32 %v1397
      %v2468 = vcvt.s32.f32 %v1398
      %v2469 = vcvt.s32.f32 %v1399
      %v2470 = vcvt.s32.f32 %v1400
      %v2471 = vcvt.s32.f32 %v1401
      %v2472 = vcvt.s32.f32 %v1402
      %v2473 = vcvt.s32.f32 %v1403
      %v2474 = vcvt.s32.f32 %v1404
      %v2475 = vcvt.s32.f32 %v1405
      %v2476 = vcvt.s32.f32 %v1406
      %v2477 = vcvt.s32.f32 %v1407
      %v2478 = vcvt.s32.f32 %v1408
      %v2479 = vcvt.s32.f32 %v1409
      %v2480 = vcvt.s32.f32 %v1410
      %2482 = vset.pattern.permute.xlu0 0
      %2483 = vperm.xlu0 %2482, %v2449
      %v2484 = vpop.permute.xlu0 %2483
      %2487 = vset.pattern.permute.xlu0 0
      %2488 = vperm.xlu0 %2487, %v2450
      %v2489 = vpop.permute.xlu0 %2488
      %2492 = vset.pattern.permute.xlu0 0
      %2493 = vperm.xlu0 %2492, %v2451
      %v2494 = vpop.permute.xlu0 %2493
      %2497 = vset.pattern.permute.xlu0 0
      %2498 = vperm.xlu0 %2497, %v2452
      %v2499 = vpop.permute.xlu0 %2498
      %2502 = vset.pattern.permute.xlu0 0
      %2503 = vperm.xlu0 %2502, %v2453
      %v2504 = vpop.permute.xlu0 %2503
      %2507 = vset.pattern.permute.xlu0 0
      %2508 = vperm.xlu0 %2507, %v2454
      %v2509 = vpop.permute.xlu0 %2508
      %2512 = vset.pattern.permute.xlu0 0
      %2513 = vperm.xlu0 %2512, %v2455
      %v2514 = vpop.permute.xlu0 %2513
      %2517 = vset.pattern.permute.xlu0 0
      %2518 = vperm.xlu0 %2517, %v2456
      %v2519 = vpop.permute.xlu0 %2518
      %2522 = vset.pattern.permute.xlu0 0
      %2523 = vperm.xlu0 %2522, %v2457
      %v2524 = vpop.permute.xlu0 %2523
      %2527 = vset.pattern.permute.xlu0 0
      %2528 = vperm.xlu0 %2527, %v2458
      %v2529 = vpop.permute.xlu0 %2528
      %2532 = vset.pattern.permute.xlu0 0
      %2533 = vperm.xlu0 %2532, %v2459
      %v2534 = vpop.permute.xlu0 %2533
      %2537 = vset.pattern.permute.xlu0 0
      %2538 = vperm.xlu0 %2537, %v2460
      %v2539 = vpop.permute.xlu0 %2538
      %2542 = vset.pattern.permute.xlu0 0
      %2543 = vperm.xlu0 %2542, %v2461
      %v2544 = vpop.permute.xlu0 %2543
      %2547 = vset.pattern.permute.xlu0 0
      %2548 = vperm.xlu0 %2547, %v2462
      %v2549 = vpop.permute.xlu0 %2548
      %2552 = vset.pattern.permute.xlu0 0
      %2553 = vperm.xlu0 %2552, %v2463
      %v2554 = vpop.permute.xlu0 %2553
      %2557 = vset.pattern.permute.xlu0 0
      %2558 = vperm.xlu0 %2557, %v2464
      %v2559 = vpop.permute.xlu0 %2558
      %2562 = vset.pattern.permute.xlu0 0
      %2563 = vperm.xlu0 %2562, %v2465
      %v2564 = vpop.permute.xlu0 %2563
      %2567 = vset.pattern.permute.xlu0 0
      %2568 = vperm.xlu0 %2567, %v2466
      %v2569 = vpop.permute.xlu0 %2568
      %2572 = vset.pattern.permute.xlu0 0
      %2573 = vperm.xlu0 %2572, %v2467
      %v2574 = vpop.permute.xlu0 %2573
      %2577 = vset.pattern.permute.xlu0 0
      %2578 = vperm.xlu0 %2577, %v2468
      %v2579 = vpop.permute.xlu0 %2578
      %2582 = vset.pattern.permute.xlu0 0
      %2583 = vperm.xlu0 %2582, %v2469
      %v2584 = vpop.permute.xlu0 %2583
      %2587 = vset.pattern.permute.xlu0 0
      %2588 = vperm.xlu0 %2587, %v2470
      %v2589 = vpop.permute.xlu0 %2588
      %2592 = vset.pattern.permute.xlu0 0
      %2593 = vperm.xlu0 %2592, %v2471
      %v2594 = vpop.permute.xlu0 %2593
      %2597 = vset.pattern.permute.xlu0 0
      %2598 = vperm.xlu0 %2597, %v2472
      %v2599 = vpop.permute.xlu0 %2598
      %2602 = vset.pattern.permute.xlu0 0
      %2603 = vperm.xlu0 %2602, %v2473
      %v2604 = vpop.permute.xlu0 %2603
      %2607 = vset.pattern.permute.xlu0 0
      %2608 = vperm.xlu0 %2607, %v2474
      %v2609 = vpop.permute.xlu0 %2608
      %2612 = vset.pattern.permute.xlu0 0
      %2613 = vperm.xlu0 %2612, %v2475
      %v2614 = vpop.permute.xlu0 %2613
      %2617 = vset.pattern.permute.xlu0 0
      %2618 = vperm.xlu0 %2617, %v2476
      %v2619 = vpop.permute.xlu0 %2618
      %2622 = vset.pattern.permute.xlu0 0
      %2623 = vperm.xlu0 %2622, %v2477
      %v2624 = vpop.permute.xlu0 %2623
      %2627 = vset.pattern.permute.xlu0 0
      %2628 = vperm.xlu0 %2627, %v2478
      %v2629 = vpop.permute.xlu0 %2628
      %2632 = vset.pattern.permute.xlu0 0
      %2633 = vperm.xlu0 %2632, %v2479
      %v2634 = vpop.permute.xlu0 %2633
      %2637 = vset.pattern.permute.xlu0 0
      %2638 = vperm.xlu0 %2637, %v2480
      %v2639 = vpop.permute.xlu0 %2638
      %v2641 = vlaneseq
      %v2642 = vshrl.u32 %v2641, 7
      %v2643 = vsub.s32 2, %v2642
      %v2644 = vrot.slane %v1735, %v2643
      %v2645 = vmul.f32 %v2484, %v2644
      %v2646 = vmul.f32 %v2489, %v2644
      %v2647 = vmul.f32 %v2494, %v2644
      %v2648 = vmul.f32 %v2499, %v2644
      %v2649 = vmul.f32 %v2504, %v2644
      %v2650 = vmul.f32 %v2509, %v2644
      %v2651 = vmul.f32 %v2514, %v2644
      %v2652 = vmul.f32 %v2519, %v2644
      %v2653 = vmul.f32 %v2524, %v2644
      %v2654 = vmul.f32 %v2529, %v2644
      %v2655 = vmul.f32 %v2534, %v2644
      %v2656 = vmul.f32 %v2539, %v2644
      %v2657 = vmul.f32 %v2544, %v2644
      %v2658 = vmul.f32 %v2549, %v2644
      %v2659 = vmul.f32 %v2554, %v2644
      %v2660 = vmul.f32 %v2559, %v2644
      %v2661 = vmul.f32 %v2564, %v2644
      %v2662 = vmul.f32 %v2569, %v2644
      %v2663 = vmul.f32 %v2574, %v2644
      %v2664 = vmul.f32 %v2579, %v2644
      %v2665 = vmul.f32 %v2584, %v2644
      %v2666 = vmul.f32 %v2589, %v2644
      %v2667 = vmul.f32 %v2594, %v2644
      %v2668 = vmul.f32 %v2599, %v2644
      %v2669 = vmul.f32 %v2604, %v2644
      %v2670 = vmul.f32 %v2609, %v2644
      %v2671 = vmul.f32 %v2614, %v2644
      %v2672 = vmul.f32 %v2619, %v2644
      %v2673 = vmul.f32 %v2624, %v2644
      %v2674 = vmul.f32 %v2629, %v2644
      %v2675 = vmul.f32 %v2634, %v2644
      %v2676 = vmul.f32 %v2639, %v2644
      %v2677 = vadd.f32 %v2417, %v2645
      %v2678 = vadd.f32 %v2418, %v2646
      %v2679 = vadd.f32 %v2419, %v2647
      %v2680 = vadd.f32 %v2420, %v2648
      %v2681 = vadd.f32 %v2421, %v2649
      %v2682 = vadd.f32 %v2422, %v2650
      %v2683 = vadd.f32 %v2423, %v2651
      %v2684 = vadd.f32 %v2424, %v2652
      %v2685 = vadd.f32 %v2425, %v2653
      %v2686 = vadd.f32 %v2426, %v2654
      %v2687 = vadd.f32 %v2427, %v2655
      %v2688 = vadd.f32 %v2428, %v2656
      %v2689 = vadd.f32 %v2429, %v2657
      %v2690 = vadd.f32 %v2430, %v2658
      %v2691 = vadd.f32 %v2431, %v2659
      %v2692 = vadd.f32 %v2432, %v2660
      %v2693 = vadd.f32 %v2433, %v2661
      %v2694 = vadd.f32 %v2434, %v2662
      %v2695 = vadd.f32 %v2435, %v2663
      %v2696 = vadd.f32 %v2436, %v2664
      %v2697 = vadd.f32 %v2437, %v2665
      %v2698 = vadd.f32 %v2438, %v2666
      %v2699 = vadd.f32 %v2439, %v2667
      %v2700 = vadd.f32 %v2440, %v2668
      %v2701 = vadd.f32 %v2441, %v2669
      %v2702 = vadd.f32 %v2442, %v2670
      %v2703 = vadd.f32 %v2443, %v2671
      %v2704 = vadd.f32 %v2444, %v2672
      %v2705 = vadd.f32 %v2445, %v2673
      %v2706 = vadd.f32 %v2446, %v2674
      %v2707 = vadd.f32 %v2447, %v2675
      %v2708 = vadd.f32 %v2448, %v2676
      %vm2709 = vcmp.gt.f32.partialorder %v2677, 0.0
      %vm2710 = vcmp.gt.f32.partialorder %v2678, 0.0
      %vm2711 = vcmp.gt.f32.partialorder %v2679, 0.0
      %vm2712 = vcmp.gt.f32.partialorder %v2680, 0.0
      %vm2713 = vcmp.gt.f32.partialorder %v2681, 0.0
      %vm2714 = vcmp.gt.f32.partialorder %v2682, 0.0
      %vm2715 = vcmp.gt.f32.partialorder %v2683, 0.0
      %vm2716 = vcmp.gt.f32.partialorder %v2684, 0.0
      %vm2717 = vcmp.gt.f32.partialorder %v2685, 0.0
      %vm2718 = vcmp.gt.f32.partialorder %v2686, 0.0
      %vm2719 = vcmp.gt.f32.partialorder %v2687, 0.0
      %vm2720 = vcmp.gt.f32.partialorder %v2688, 0.0
      %vm2721 = vcmp.gt.f32.partialorder %v2689, 0.0
      %vm2722 = vcmp.gt.f32.partialorder %v2690, 0.0
      %vm2723 = vcmp.gt.f32.partialorder %v2691, 0.0
      %vm2724 = vcmp.gt.f32.partialorder %v2692, 0.0
      %vm2725 = vcmp.gt.f32.partialorder %v2693, 0.0
      %vm2726 = vcmp.gt.f32.partialorder %v2694, 0.0
      %vm2727 = vcmp.gt.f32.partialorder %v2695, 0.0
      %vm2728 = vcmp.gt.f32.partialorder %v2696, 0.0
      %vm2729 = vcmp.gt.f32.partialorder %v2697, 0.0
      %vm2730 = vcmp.gt.f32.partialorder %v2698, 0.0
      %vm2731 = vcmp.gt.f32.partialorder %v2699, 0.0
      %vm2732 = vcmp.gt.f32.partialorder %v2700, 0.0
      %vm2733 = vcmp.gt.f32.partialorder %v2701, 0.0
      %vm2734 = vcmp.gt.f32.partialorder %v2702, 0.0
      %vm2735 = vcmp.gt.f32.partialorder %v2703, 0.0
      %vm2736 = vcmp.gt.f32.partialorder %v2704, 0.0
      %vm2737 = vcmp.gt.f32.partialorder %v2705, 0.0
      %vm2738 = vcmp.gt.f32.partialorder %v2706, 0.0
      %vm2739 = vcmp.gt.f32.partialorder %v2707, 0.0
      %vm2740 = vcmp.gt.f32.partialorder %v2708, 0.0
      %v2741 = vmul.f32 %v2677, 0.01
      %v2742 = vmul.f32 %v2678, 0.01
      %v2743 = vmul.f32 %v2679, 0.01
      %v2744 = vmul.f32 %v2680, 0.01
      %v2745 = vmul.f32 %v2681, 0.01
      %v2746 = vmul.f32 %v2682, 0.01
      %v2747 = vmul.f32 %v2683, 0.01
      %v2748 = vmul.f32 %v2684, 0.01
      %v2749 = vmul.f32 %v2685, 0.01
      %v2750 = vmul.f32 %v2686, 0.01
      %v2751 = vmul.f32 %v2687, 0.01
      %v2752 = vmul.f32 %v2688, 0.01
      %v2753 = vmul.f32 %v2689, 0.01
      %v2754 = vmul.f32 %v2690, 0.01
      %v2755 = vmul.f32 %v2691, 0.01
      %v2756 = vmul.f32 %v2692, 0.01
      %v2757 = vmul.f32 %v2693, 0.01
      %v2758 = vmul.f32 %v2694, 0.01
      %v2759 = vmul.f32 %v2695, 0.01
      %v2760 = vmul.f32 %v2696, 0.01
      %v2761 = vmul.f32 %v2697, 0.01
      %v2762 = vmul.f32 %v2698, 0.01
      %v2763 = vmul.f32 %v2699, 0.01
      %v2764 = vmul.f32 %v2700, 0.01
      %v2765 = vmul.f32 %v2701, 0.01
      %v2766 = vmul.f32 %v2702, 0.01
      %v2767 = vmul.f32 %v2703, 0.01
      %v2768 = vmul.f32 %v2704, 0.01
      %v2769 = vmul.f32 %v2705, 0.01
      %v2770 = vmul.f32 %v2706, 0.01
      %v2771 = vmul.f32 %v2707, 0.01
      %v2772 = vmul.f32 %v2708, 0.01
      %v2773 = vsel %vm2709, %v2677, %v2741
      %v2774 = vsel %vm2710, %v2678, %v2742
      %v2775 = vsel %vm2711, %v2679, %v2743
      %v2776 = vsel %vm2712, %v2680, %v2744
      %v2777 = vsel %vm2713, %v2681, %v2745
      %v2778 = vsel %vm2714, %v2682, %v2746
      %v2779 = vsel %vm2715, %v2683, %v2747
      %v2780 = vsel %vm2716, %v2684, %v2748
      %v2781 = vsel %vm2717, %v2685, %v2749
      %v2782 = vsel %vm2718, %v2686, %v2750
      %v2783 = vsel %vm2719, %v2687, %v2751
      %v2784 = vsel %vm2720, %v2688, %v2752
      %v2785 = vsel %vm2721, %v2689, %v2753
      %v2786 = vsel %vm2722, %v2690, %v2754
      %v2787 = vsel %vm2723, %v2691, %v2755
      %v2788 = vsel %vm2724, %v2692, %v2756
      %v2789 = vsel %vm2725, %v2693, %v2757
      %v2790 = vsel %vm2726, %v2694, %v2758
      %v2791 = vsel %vm2727, %v2695, %v2759
      %v2792 = vsel %vm2728, %v2696, %v2760
      %v2793 = vsel %vm2729, %v2697, %v2761
      %v2794 = vsel %vm2730, %v2698, %v2762
      %v2795 = vsel %vm2731, %v2699, %v2763
      %v2796 = vsel %vm2732, %v2700, %v2764
      %v2797 = vsel %vm2733, %v2701, %v2765
      %v2798 = vsel %vm2734, %v2702, %v2766
      %v2799 = vsel %vm2735, %v2703, %v2767
      %v2800 = vsel %vm2736, %v2704, %v2768
      %v2801 = vsel %vm2737, %v2705, %v2769
      %v2802 = vsel %vm2738, %v2706, %v2770
      %v2803 = vsel %vm2739, %v2707, %v2771
      %v2804 = vsel %vm2740, %v2708, %v2772
      %v2805 = vlaneseq
      %v2806 = vshrl.u32 %v2805, 7
      %v2807 = vadd.s32 %v2806, 8
      %v2808 = vadd.s32 %v2806, 16
      %v2809 = vadd.s32 %v2806, 24
      %v2810 = vadd.s32 %v2806, 32
      %v2811 = vadd.s32 %v2806, 40
      %v2812 = vadd.s32 %v2806, 48
      %v2813 = vadd.s32 %v2806, 56
      %v2814 = vadd.s32 %v2806, 64
      %v2815 = vadd.s32 %v2806, 72
      %v2816 = vadd.s32 %v2806, 80
      %v2817 = vadd.s32 %v2806, 88
      %v2818 = vadd.s32 %v2806, 96
      %v2819 = vadd.s32 %v2806, 104
      %v2820 = vadd.s32 %v2806, 112
      %v2821 = vadd.s32 %v2806, 120
      %v2822 = vadd.s32 %v2806, 128
      %v2823 = vadd.s32 %v2806, 136
      %v2824 = vadd.s32 %v2806, 144
      %v2825 = vadd.s32 %v2806, 152
      %v2826 = vadd.s32 %v2806, 160
      %v2827 = vadd.s32 %v2806, 168
      %v2828 = vadd.s32 %v2806, 176
      %v2829 = vadd.s32 %v2806, 184
      %v2830 = vadd.s32 %v2806, 192
      %v2831 = vadd.s32 %v2806, 200
      %v2832 = vadd.s32 %v2806, 208
      %v2833 = vadd.s32 %v2806, 216
      %v2834 = vadd.s32 %v2806, 224
      %v2835 = vadd.s32 %v2806, 232
      %v2836 = vadd.s32 %v2806, 240
      %v2837 = vadd.s32 %v2806, 248
      %v2838 = vlaneseq
      %v2839 = vshrl.u32 %v2838, 7
      %v2840 = vsub.s32 0, %v2839
      %v2841 = vrot.slane %v1411, %v2840
      %v2842 = vlaneseq
      %v2843 = vshrl.u32 %v2842, 7
      %v2844 = vsub.s32 1, %v2843
      %v2845 = vrot.slane %v1411, %v2844
      %vm2846 = vcmp.eq.s32.totalorder %v2806, %v2841
      %vm2847 = vcmp.eq.s32.totalorder %v2806, %v2845
      %vm2848 = vcmp.eq.s32.totalorder %v2807, %v2841
      %vm2849 = vcmp.eq.s32.totalorder %v2807, %v2845
      %vm2850 = vcmp.eq.s32.totalorder %v2808, %v2841
      %vm2851 = vcmp.eq.s32.totalorder %v2808, %v2845
      %vm2852 = vcmp.eq.s32.totalorder %v2809, %v2841
      %vm2853 = vcmp.eq.s32.totalorder %v2809, %v2845
      %vm2854 = vcmp.eq.s32.totalorder %v2810, %v2841
      %vm2855 = vcmp.eq.s32.totalorder %v2810, %v2845
      %vm2856 = vcmp.eq.s32.totalorder %v2811, %v2841
      %vm2857 = vcmp.eq.s32.totalorder %v2811, %v2845
      %vm2858 = vcmp.eq.s32.totalorder %v2812, %v2841
      %vm2859 = vcmp.eq.s32.totalorder %v2812, %v2845
      %vm2860 = vcmp.eq.s32.totalorder %v2813, %v2841
      %vm2861 = vcmp.eq.s32.totalorder %v2813, %v2845
      %vm2862 = vcmp.eq.s32.totalorder %v2814, %v2841
      %vm2863 = vcmp.eq.s32.totalorder %v2814, %v2845
      %vm2864 = vcmp.eq.s32.totalorder %v2815, %v2841
      %vm2865 = vcmp.eq.s32.totalorder %v2815, %v2845
      %vm2866 = vcmp.eq.s32.totalorder %v2816, %v2841
      %vm2867 = vcmp.eq.s32.totalorder %v2816, %v2845
      %vm2868 = vcmp.eq.s32.totalorder %v2817, %v2841
      %vm2869 = vcmp.eq.s32.totalorder %v2817, %v2845
      %vm2870 = vcmp.eq.s32.totalorder %v2818, %v2841
      %vm2871 = vcmp.eq.s32.totalorder %v2818, %v2845
      %vm2872 = vcmp.eq.s32.totalorder %v2819, %v2841
      %vm2873 = vcmp.eq.s32.totalorder %v2819, %v2845
      %vm2874 = vcmp.eq.s32.totalorder %v2820, %v2841
      %vm2875 = vcmp.eq.s32.totalorder %v2820, %v2845
      %vm2876 = vcmp.eq.s32.totalorder %v2821, %v2841
      %vm2877 = vcmp.eq.s32.totalorder %v2821, %v2845
      %vm2878 = vcmp.eq.s32.totalorder %v2822, %v2841
      %vm2879 = vcmp.eq.s32.totalorder %v2822, %v2845
      %vm2880 = vcmp.eq.s32.totalorder %v2823, %v2841
      %vm2881 = vcmp.eq.s32.totalorder %v2823, %v2845
      %vm2882 = vcmp.eq.s32.totalorder %v2824, %v2841
      %vm2883 = vcmp.eq.s32.totalorder %v2824, %v2845
      %vm2884 = vcmp.eq.s32.totalorder %v2825, %v2841
      %vm2885 = vcmp.eq.s32.totalorder %v2825, %v2845
      %vm2886 = vcmp.eq.s32.totalorder %v2826, %v2841
      %vm2887 = vcmp.eq.s32.totalorder %v2826, %v2845
      %vm2888 = vcmp.eq.s32.totalorder %v2827, %v2841
      %vm2889 = vcmp.eq.s32.totalorder %v2827, %v2845
      %vm2890 = vcmp.eq.s32.totalorder %v2828, %v2841
      %vm2891 = vcmp.eq.s32.totalorder %v2828, %v2845
      %vm2892 = vcmp.eq.s32.totalorder %v2829, %v2841
      %vm2893 = vcmp.eq.s32.totalorder %v2829, %v2845
      %vm2894 = vcmp.eq.s32.totalorder %v2830, %v2841
      %vm2895 = vcmp.eq.s32.totalorder %v2830, %v2845
      %vm2896 = vcmp.eq.s32.totalorder %v2831, %v2841
      %vm2897 = vcmp.eq.s32.totalorder %v2831, %v2845
      %vm2898 = vcmp.eq.s32.totalorder %v2832, %v2841
      %vm2899 = vcmp.eq.s32.totalorder %v2832, %v2845
      %vm2900 = vcmp.eq.s32.totalorder %v2833, %v2841
      %vm2901 = vcmp.eq.s32.totalorder %v2833, %v2845
      %vm2902 = vcmp.eq.s32.totalorder %v2834, %v2841
      %vm2903 = vcmp.eq.s32.totalorder %v2834, %v2845
      %vm2904 = vcmp.eq.s32.totalorder %v2835, %v2841
      %vm2905 = vcmp.eq.s32.totalorder %v2835, %v2845
      %vm2906 = vcmp.eq.s32.totalorder %v2836, %v2841
      %vm2907 = vcmp.eq.s32.totalorder %v2836, %v2845
      %vm2908 = vcmp.eq.s32.totalorder %v2837, %v2841
      %vm2909 = vcmp.eq.s32.totalorder %v2837, %v2845
      %v2910 = vsel %vm2846, 1, 0
      %v2911 = vsel %vm2847, 1, 0
      %v2912 = vsel %vm2848, 1, 0
      %v2913 = vsel %vm2849, 1, 0
      %v2914 = vsel %vm2850, 1, 0
      %v2915 = vsel %vm2851, 1, 0
      %v2916 = vsel %vm2852, 1, 0
      %v2917 = vsel %vm2853, 1, 0
      %v2918 = vsel %vm2854, 1, 0
      %v2919 = vsel %vm2855, 1, 0
      %v2920 = vsel %vm2856, 1, 0
      %v2921 = vsel %vm2857, 1, 0
      %v2922 = vsel %vm2858, 1, 0
      %v2923 = vsel %vm2859, 1, 0
      %v2924 = vsel %vm2860, 1, 0
      %v2925 = vsel %vm2861, 1, 0
      %v2926 = vsel %vm2862, 1, 0
      %v2927 = vsel %vm2863, 1, 0
      %v2928 = vsel %vm2864, 1, 0
      %v2929 = vsel %vm2865, 1, 0
      %v2930 = vsel %vm2866, 1, 0
      %v2931 = vsel %vm2867, 1, 0
      %v2932 = vsel %vm2868, 1, 0
      %v2933 = vsel %vm2869, 1, 0
      %v2934 = vsel %vm2870, 1, 0
      %v2935 = vsel %vm2871, 1, 0
      %v2936 = vsel %vm2872, 1, 0
      %v2937 = vsel %vm2873, 1, 0
      %v2938 = vsel %vm2874, 1, 0
      %v2939 = vsel %vm2875, 1, 0
      %v2940 = vsel %vm2876, 1, 0
      %v2941 = vsel %vm2877, 1, 0
      %v2942 = vsel %vm2878, 1, 0
      %v2943 = vsel %vm2879, 1, 0
      %v2944 = vsel %vm2880, 1, 0
      %v2945 = vsel %vm2881, 1, 0
      %v2946 = vsel %vm2882, 1, 0
      %v2947 = vsel %vm2883, 1, 0
      %v2948 = vsel %vm2884, 1, 0
      %v2949 = vsel %vm2885, 1, 0
      %v2950 = vsel %vm2886, 1, 0
      %v2951 = vsel %vm2887, 1, 0
      %v2952 = vsel %vm2888, 1, 0
      %v2953 = vsel %vm2889, 1, 0
      %v2954 = vsel %vm2890, 1, 0
      %v2955 = vsel %vm2891, 1, 0
      %v2956 = vsel %vm2892, 1, 0
      %v2957 = vsel %vm2893, 1, 0
      %v2958 = vsel %vm2894, 1, 0
      %v2959 = vsel %vm2895, 1, 0
      %v2960 = vsel %vm2896, 1, 0
      %v2961 = vsel %vm2897, 1, 0
      %v2962 = vsel %vm2898, 1, 0
      %v2963 = vsel %vm2899, 1, 0
      %v2964 = vsel %vm2900, 1, 0
      %v2965 = vsel %vm2901, 1, 0
      %v2966 = vsel %vm2902, 1, 0
      %v2967 = vsel %vm2903, 1, 0
      %v2968 = vsel %vm2904, 1, 0
      %v2969 = vsel %vm2905, 1, 0
      %v2970 = vsel %vm2906, 1, 0
      %v2971 = vsel %vm2907, 1, 0
      %v2972 = vsel %vm2908, 1, 0
      %v2973 = vsel %vm2909, 1, 0
      %v2974 = vcvt.s32.f32 %v2910
      %v2975 = vcvt.s32.f32 %v2911
      %v2976 = vcvt.s32.f32 %v2912
      %v2977 = vcvt.s32.f32 %v2913
      %v2978 = vcvt.s32.f32 %v2914
      %v2979 = vcvt.s32.f32 %v2915
      %v2980 = vcvt.s32.f32 %v2916
      %v2981 = vcvt.s32.f32 %v2917
      %v2982 = vcvt.s32.f32 %v2918
      %v2983 = vcvt.s32.f32 %v2919
      %v2984 = vcvt.s32.f32 %v2920
      %v2985 = vcvt.s32.f32 %v2921
      %v2986 = vcvt.s32.f32 %v2922
      %v2987 = vcvt.s32.f32 %v2923
      %v2988 = vcvt.s32.f32 %v2924
      %v2989 = vcvt.s32.f32 %v2925
      %v2990 = vcvt.s32.f32 %v2926
      %v2991 = vcvt.s32.f32 %v2927
      %v2992 = vcvt.s32.f32 %v2928
      %v2993 = vcvt.s32.f32 %v2929
      %v2994 = vcvt.s32.f32 %v2930
      %v2995 = vcvt.s32.f32 %v2931
      %v2996 = vcvt.s32.f32 %v2932
      %v2997 = vcvt.s32.f32 %v2933
      %v2998 = vcvt.s32.f32 %v2934
      %v2999 = vcvt.s32.f32 %v2935
      %v3000 = vcvt.s32.f32 %v2936
      %v3001 = vcvt.s32.f32 %v2937
      %v3002 = vcvt.s32.f32 %v2938
      %v3003 = vcvt.s32.f32 %v2939
      %v3004 = vcvt.s32.f32 %v2940
      %v3005 = vcvt.s32.f32 %v2941
      %v3006 = vcvt.s32.f32 %v2942
      %v3007 = vcvt.s32.f32 %v2943
      %v3008 = vcvt.s32.f32 %v2944
      %v3009 = vcvt.s32.f32 %v2945
      %v3010 = vcvt.s32.f32 %v2946
      %v3011 = vcvt.s32.f32 %v2947
      %v3012 = vcvt.s32.f32 %v2948
      %v3013 = vcvt.s32.f32 %v2949
      %v3014 = vcvt.s32.f32 %v2950
      %v3015 = vcvt.s32.f32 %v2951
      %v3016 = vcvt.s32.f32 %v2952
      %v3017 = vcvt.s32.f32 %v2953
      %v3018 = vcvt.s32.f32 %v2954
      %v3019 = vcvt.s32.f32 %v2955
      %v3020 = vcvt.s32.f32 %v2956
      %v3021 = vcvt.s32.f32 %v2957
      %v3022 = vcvt.s32.f32 %v2958
      %v3023 = vcvt.s32.f32 %v2959
      %v3024 = vcvt.s32.f32 %v2960
      %v3025 = vcvt.s32.f32 %v2961
      %v3026 = vcvt.s32.f32 %v2962
      %v3027 = vcvt.s32.f32 %v2963
      %v3028 = vcvt.s32.f32 %v2964
      %v3029 = vcvt.s32.f32 %v2965
      %v3030 = vcvt.s32.f32 %v2966
      %v3031 = vcvt.s32.f32 %v2967
      %v3032 = vcvt.s32.f32 %v2968
      %v3033 = vcvt.s32.f32 %v2969
      %v3034 = vcvt.s32.f32 %v2970
      %v3035 = vcvt.s32.f32 %v2971
      %v3036 = vcvt.s32.f32 %v2972
      %v3037 = vcvt.s32.f32 %v2973
      %v3038 = vld [vmem:[#allocation3] sm:$0xff]
      %v3039 = vld [vmem:[#allocation3 + $0x8] sm:$0xff]
      %v3040 = vld [vmem:[#allocation3 + $0x10] sm:$0xff]
      %v3041 = vld [vmem:[#allocation3 + $0x18] sm:$0xff]
      %v3042 = vld [vmem:[#allocation3 + $0x20] sm:$0xff]
      %v3043 = vld [vmem:[#allocation3 + $0x28] sm:$0xff]
      %v3044 = vld [vmem:[#allocation3 + $0x30] sm:$0xff]
      %v3045 = vld [vmem:[#allocation3 + $0x38] sm:$0xff]
      %v3046 = vld [vmem:[#allocation3 + $0x40] sm:$0xff]
      %v3047 = vld [vmem:[#allocation3 + $0x48] sm:$0xff]
      %v3048 = vld [vmem:[#allocation3 + $0x50] sm:$0xff]
      %v3049 = vld [vmem:[#allocation3 + $0x58] sm:$0xff]
      %v3050 = vld [vmem:[#allocation3 + $0x60] sm:$0xff]
      %v3051 = vld [vmem:[#allocation3 + $0x68] sm:$0xff]
      %v3052 = vld [vmem:[#allocation3 + $0x70] sm:$0xff]
      %v3053 = vld [vmem:[#allocation3 + $0x78] sm:$0xff]
      %v3054 = vld [vmem:[#allocation3 + $0x80] sm:$0xff]
      %v3055 = vld [vmem:[#allocation3 + $0x88] sm:$0xff]
      %v3056 = vld [vmem:[#allocation3 + $0x90] sm:$0xff]
      %v3057 = vld [vmem:[#allocation3 + $0x98] sm:$0xff]
      %v3058 = vld [vmem:[#allocation3 + $0xa0] sm:$0xff]
      %v3059 = vld [vmem:[#allocation3 + $0xa8] sm:$0xff]
      %v3060 = vld [vmem:[#allocation3 + $0xb0] sm:$0xff]
      %v3061 = vld [vmem:[#allocation3 + $0xb8] sm:$0xff]
      %v3062 = vld [vmem:[#allocation3 + $0xc0] sm:$0xff]
      %v3063 = vld [vmem:[#allocation3 + $0xc8] sm:$0xff]
      %v3064 = vld [vmem:[#allocation3 + $0xd0] sm:$0xff]
      %v3065 = vld [vmem:[#allocation3 + $0xd8] sm:$0xff]
      %v3066 = vld [vmem:[#allocation3 + $0xe0] sm:$0xff]
      %v3067 = vld [vmem:[#allocation3 + $0xe8] sm:$0xff]
      %v3068 = vld [vmem:[#allocation3 + $0xf0] sm:$0xff]
      %v3069 = vld [vmem:[#allocation3 + $0xf8] sm:$0xff]
      %3070 = vmatprep.subr.mxu0 0.0
      %3071 = vmatpush1.msra.mxu0 %v2788
      %3072 = vmatprep.subr.mxu0 0.0
      %3073 = vmatpush1.msra.mxu0 %v2787
      %3074 = vmatprep.subr.mxu0 0.0
      %3075 = vmatpush1.msra.mxu0 %v2786
      %3076 = vmatprep.subr.mxu0 0.0
      %3077 = vmatpush1.msra.mxu0 %v2785
      %3078 = vmatprep.subr.mxu0 0.0
      %3079 = vmatpush1.msra.mxu0 %v2784
      %3080 = vmatprep.subr.mxu0 0.0
      %3081 = vmatpush1.msra.mxu0 %v2783
      %3082 = vmatprep.subr.mxu0 0.0
      %3083 = vmatpush1.msra.mxu0 %v2782
      %3084 = vmatprep.subr.mxu0 0.0
      %3085 = vmatpush1.msra.mxu0 %v2781
      %3086 = vmatprep.subr.mxu0 0.0
      %3087 = vmatpush1.msra.mxu0 %v2780
      %3088 = vmatprep.subr.mxu0 0.0
      %3089 = vmatpush1.msra.mxu0 %v2779
      %3090 = vmatprep.subr.mxu0 0.0
      %3091 = vmatpush1.msra.mxu0 %v2778
      %3092 = vmatprep.subr.mxu0 0.0
      %3093 = vmatpush1.msra.mxu0 %v2777
      %3094 = vmatprep.subr.mxu0 0.0
      %3095 = vmatpush1.msra.mxu0 %v2776
      %3096 = vmatprep.subr.mxu0 0.0
      %3097 = vmatpush1.msra.mxu0 %v2775
      %3098 = vmatprep.subr.mxu0 0.0
      %3099 = vmatpush1.msra.mxu0 %v2774
      %3100 = vmatprep.subr.mxu0 0.0
      %3101 = vmatpush1.msra.mxu0 %v2773
      %3102 = vmatprep.subr.mxu0 0.0
      %3103 = vmatpush2.msra.mxu0 %v2804
      %3104 = vmatprep.subr.mxu0 0.0
      %3105 = vmatpush2.msra.mxu0 %v2803
      %3106 = vmatprep.subr.mxu0 0.0
      %3107 = vmatpush2.msra.mxu0 %v2802
      %3108 = vmatprep.subr.mxu0 0.0
      %3109 = vmatpush2.msra.mxu0 %v2801
      %3110 = vmatprep.subr.mxu0 0.0
      %3111 = vmatpush2.msra.mxu0 %v2800
      %3112 = vmatprep.subr.mxu0 0.0
      %3113 = vmatpush2.msra.mxu0 %v2799
      %3114 = vmatprep.subr.mxu0 0.0
      %3115 = vmatpush2.msra.mxu0 %v2798
      %3116 = vmatprep.subr.mxu0 0.0
      %3117 = vmatpush2.msra.mxu0 %v2797
      %3118 = vmatprep.subr.mxu0 0.0
      %3119 = vmatpush2.msra.mxu0 %v2796
      %3120 = vmatprep.subr.mxu0 0.0
      %3121 = vmatpush2.msra.mxu0 %v2795
      %3122 = vmatprep.subr.mxu0 0.0
      %3123 = vmatpush2.msra.mxu0 %v2794
      %3124 = vmatprep.subr.mxu0 0.0
      %3125 = vmatpush2.msra.mxu0 %v2793
      %3126 = vmatprep.subr.mxu0 0.0
      %3127 = vmatpush2.msra.mxu0 %v2792
      %3128 = vmatprep.subr.mxu0 0.0
      %3129 = vmatpush2.msra.mxu0 %v2791
      %3130 = vmatprep.subr.mxu0 0.0
      %3131 = vmatpush2.msra.mxu0 %v2790
      %3132 = vmatprep.subr.mxu0 0.0
      %3133 = vmatpush2.msra.mxu0 %v2789
      %3134 = vmatprep.mubr.f32.mxu0 %v2975
      %3135 = vmatmul.mubr.f32.gmra.mxu0 %v2974
      %v3136 = vpop.f32.mrf.mxu0
      %v3137 = vadd.f32 0.0, %v3136
      %v3138 = vpop.f32.mrf.mxu0
      %3139 = vmatprep.mubr.f32.mxu0 %v2977
      %3140 = vmatmul.mubr.f32.gmra.mxu0 %v2976
      %v3141 = vpop.f32.mrf.mxu0
      %v3142 = vadd.f32 0.0, %v3141
      %v3143 = vpop.f32.mrf.mxu0
      %3144 = vmatprep.mubr.f32.mxu0 %v2979
      %3145 = vmatmul.mubr.f32.gmra.mxu0 %v2978
      %v3146 = vpop.f32.mrf.mxu0
      %v3147 = vadd.f32 0.0, %v3146
      %v3148 = vpop.f32.mrf.mxu0
      %3149 = vmatprep.mubr.f32.mxu0 %v2981
      %3150 = vmatmul.mubr.f32.gmra.mxu0 %v2980
      %v3151 = vpop.f32.mrf.mxu0
      %v3152 = vadd.f32 0.0, %v3151
      %v3153 = vpop.f32.mrf.mxu0
      %3154 = vmatprep.mubr.f32.mxu0 %v2983
      %3155 = vmatmul.mubr.f32.gmra.mxu0 %v2982
      %v3156 = vpop.f32.mrf.mxu0
      %v3157 = vadd.f32 0.0, %v3156
      %v3158 = vpop.f32.mrf.mxu0
      %3159 = vmatprep.mubr.f32.mxu0 %v2985
      %3160 = vmatmul.mubr.f32.gmra.mxu0 %v2984
      %v3161 = vpop.f32.mrf.mxu0
      %v3162 = vadd.f32 0.0, %v3161
      %v3163 = vpop.f32.mrf.mxu0
      %3164 = vmatprep.mubr.f32.mxu0 %v2987
      %3165 = vmatmul.mubr.f32.gmra.mxu0 %v2986
      %v3166 = vpop.f32.mrf.mxu0
      %v3167 = vadd.f32 0.0, %v3166
      %v3168 = vpop.f32.mrf.mxu0
      %3169 = vmatprep.mubr.f32.mxu0 %v2989
      %3170 = vmatmul.mubr.f32.gmra.mxu0 %v2988
      %v3171 = vpop.f32.mrf.mxu0
      %v3172 = vadd.f32 0.0, %v3171
      %v3173 = vpop.f32.mrf.mxu0
      %3174 = vmatprep.mubr.f32.mxu0 %v2991
      %3175 = vmatmul.mubr.f32.gmra.mxu0 %v2990
      %v3176 = vpop.f32.mrf.mxu0
      %v3177 = vadd.f32 0.0, %v3176
      %v3178 = vpop.f32.mrf.mxu0
      %3179 = vmatprep.mubr.f32.mxu0 %v2993
      %3180 = vmatmul.mubr.f32.gmra.mxu0 %v2992
      %v3181 = vpop.f32.mrf.mxu0
      %v3182 = vadd.f32 0.0, %v3181
      %v3183 = vpop.f32.mrf.mxu0
      %3184 = vmatprep.mubr.f32.mxu0 %v2995
      %3185 = vmatmul.mubr.f32.gmra.mxu0 %v2994
      %v3186 = vpop.f32.mrf.mxu0
      %v3187 = vadd.f32 0.0, %v3186
      %v3188 = vpop.f32.mrf.mxu0
      %3189 = vmatprep.mubr.f32.mxu0 %v2997
      %3190 = vmatmul.mubr.f32.gmra.mxu0 %v2996
      %v3191 = vpop.f32.mrf.mxu0
      %v3192 = vadd.f32 0.0, %v3191
      %v3193 = vpop.f32.mrf.mxu0
      %3194 = vmatprep.mubr.f32.mxu0 %v2999
      %3195 = vmatmul.mubr.f32.gmra.mxu0 %v2998
      %v3196 = vpop.f32.mrf.mxu0
      %v3197 = vadd.f32 0.0, %v3196
      %v3198 = vpop.f32.mrf.mxu0
      %3199 = vmatprep.mubr.f32.mxu0 %v3001
      %3200 = vmatmul.mubr.f32.gmra.mxu0 %v3000
      %v3201 = vpop.f32.mrf.mxu0
      %v3202 = vadd.f32 0.0, %v3201
      %v3203 = vpop.f32.mrf.mxu0
      %3204 = vmatprep.mubr.f32.mxu0 %v3003
      %3205 = vmatmul.mubr.f32.gmra.mxu0 %v3002
      %v3206 = vpop.f32.mrf.mxu0
      %v3207 = vadd.f32 0.0, %v3206
      %v3208 = vpop.f32.mrf.mxu0
      %3209 = vmatprep.mubr.f32.mxu0 %v3005
      %3210 = vmatmul.mubr.f32.gmra.mxu0 %v3004
      %v3211 = vpop.f32.mrf.mxu0
      %v3212 = vadd.f32 0.0, %v3211
      %v3213 = vpop.f32.mrf.mxu0
      %3214 = vmatprep.mubr.f32.mxu0 %v3007
      %3215 = vmatmul.mubr.f32.gmra.mxu0 %v3006
      %v3216 = vpop.f32.mrf.mxu0
      %v3217 = vadd.f32 0.0, %v3216
      %v3218 = vpop.f32.mrf.mxu0
      %3219 = vmatprep.mubr.f32.mxu0 %v3009
      %3220 = vmatmul.mubr.f32.gmra.mxu0 %v3008
      %v3221 = vpop.f32.mrf.mxu0
      %v3222 = vadd.f32 0.0, %v3221
      %v3223 = vpop.f32.mrf.mxu0
      %3224 = vmatprep.mubr.f32.mxu0 %v3011
      %3225 = vmatmul.mubr.f32.gmra.mxu0 %v3010
      %v3226 = vpop.f32.mrf.mxu0
      %v3227 = vadd.f32 0.0, %v3226
      %v3228 = vpop.f32.mrf.mxu0
      %3229 = vmatprep.mubr.f32.mxu0 %v3013
      %3230 = vmatmul.mubr.f32.gmra.mxu0 %v3012
      %v3231 = vpop.f32.mrf.mxu0
      %v3232 = vadd.f32 0.0, %v3231
      %v3233 = vpop.f32.mrf.mxu0
      %3234 = vmatprep.mubr.f32.mxu0 %v3015
      %3235 = vmatmul.mubr.f32.gmra.mxu0 %v3014
      %v3236 = vpop.f32.mrf.mxu0
      %v3237 = vadd.f32 0.0, %v3236
      %v3238 = vpop.f32.mrf.mxu0
      %3239 = vmatprep.mubr.f32.mxu0 %v3017
      %3240 = vmatmul.mubr.f32.gmra.mxu0 %v3016
      %v3241 = vpop.f32.mrf.mxu0
      %v3242 = vadd.f32 0.0, %v3241
      %v3243 = vpop.f32.mrf.mxu0
      %3244 = vmatprep.mubr.f32.mxu0 %v3019
      %3245 = vmatmul.mubr.f32.gmra.mxu0 %v3018
      %v3246 = vpop.f32.mrf.mxu0
      %v3247 = vadd.f32 0.0, %v3246
      %v3248 = vpop.f32.mrf.mxu0
      %3249 = vmatprep.mubr.f32.mxu0 %v3021
      %3250 = vmatmul.mubr.f32.gmra.mxu0 %v3020
      %v3251 = vpop.f32.mrf.mxu0
      %v3252 = vadd.f32 0.0, %v3251
      %v3253 = vpop.f32.mrf.mxu0
      %3254 = vmatprep.mubr.f32.mxu0 %v3023
      %3255 = vmatmul.mubr.f32.gmra.mxu0 %v3022
      %v3256 = vpop.f32.mrf.mxu0
      %v3257 = vadd.f32 0.0, %v3256
      %v3258 = vpop.f32.mrf.mxu0
      %3259 = vmatprep.mubr.f32.mxu0 %v3025
      %3260 = vmatmul.mubr.f32.gmra.mxu0 %v3024
      %v3261 = vpop.f32.mrf.mxu0
      %v3262 = vadd.f32 0.0, %v3261
      %v3263 = vpop.f32.mrf.mxu0
      %3264 = vmatprep.mubr.f32.mxu0 %v3027
      %3265 = vmatmul.mubr.f32.gmra.mxu0 %v3026
      %v3266 = vpop.f32.mrf.mxu0
      %v3267 = vadd.f32 0.0, %v3266
      %v3268 = vpop.f32.mrf.mxu0
      %3269 = vmatprep.mubr.f32.mxu0 %v3029
      %3270 = vmatmul.mubr.f32.gmra.mxu0 %v3028
      %v3271 = vpop.f32.mrf.mxu0
      %v3272 = vadd.f32 0.0, %v3271
      %v3273 = vpop.f32.mrf.mxu0
      %3274 = vmatprep.mubr.f32.mxu0 %v3031
      %3275 = vmatmul.mubr.f32.gmra.mxu0 %v3030
      %v3276 = vpop.f32.mrf.mxu0
      %v3277 = vadd.f32 0.0, %v3276
      %v3278 = vpop.f32.mrf.mxu0
      %3279 = vmatprep.mubr.f32.mxu0 %v3033
      %3280 = vmatmul.mubr.f32.gmra.mxu0 %v3032
      %v3281 = vpop.f32.mrf.mxu0
      %v3282 = vadd.f32 0.0, %v3281
      %v3283 = vpop.f32.mrf.mxu0
      %3284 = vmatprep.mubr.f32.mxu0 %v3035
      %3285 = vmatmul.mubr.f32.gmra.mxu0 %v3034
      %v3286 = vpop.f32.mrf.mxu0
      %v3287 = vadd.f32 0.0, %v3286
      %v3288 = vpop.f32.mrf.mxu0
      %3289 = vmatprep.mubr.f32.mxu0 %v3037
      %3290 = vmatmul.mubr.f32.gmra.mxu0 %v3036
      %v3291 = vpop.f32.mrf.mxu0
      %v3292 = vadd.f32 0.0, %v3291
      %v3293 = vpop.f32.mrf.mxu0
      %3294 = vdwg.mxu0
      %v3295 = vadd.f32 %v3038, %v3137
      %v3296 = vadd.f32 %v3039, %v3142
      %v3297 = vadd.f32 %v3040, %v3147
      %v3298 = vadd.f32 %v3041, %v3152
      %v3299 = vadd.f32 %v3042, %v3157
      %v3300 = vadd.f32 %v3043, %v3162
      %v3301 = vadd.f32 %v3044, %v3167
      %v3302 = vadd.f32 %v3045, %v3172
      %v3303 = vadd.f32 %v3046, %v3177
      %v3304 = vadd.f32 %v3047, %v3182
      %v3305 = vadd.f32 %v3048, %v3187
      %v3306 = vadd.f32 %v3049, %v3192
      %v3307 = vadd.f32 %v3050, %v3197
      %v3308 = vadd.f32 %v3051, %v3202
      %v3309 = vadd.f32 %v3052, %v3207
      %v3310 = vadd.f32 %v3053, %v3212
      %v3311 = vadd.f32 %v3054, %v3217
      %v3312 = vadd.f32 %v3055, %v3222
      %v3313 = vadd.f32 %v3056, %v3227
      %v3314 = vadd.f32 %v3057, %v3232
      %v3315 = vadd.f32 %v3058, %v3237
      %v3316 = vadd.f32 %v3059, %v3242
      %v3317 = vadd.f32 %v3060, %v3247
      %v3318 = vadd.f32 %v3061, %v3252
      %v3319 = vadd.f32 %v3062, %v3257
      %v3320 = vadd.f32 %v3063, %v3262
      %v3321 = vadd.f32 %v3064, %v3267
      %v3322 = vadd.f32 %v3065, %v3272
      %v3323 = vadd.f32 %v3066, %v3277
      %v3324 = vadd.f32 %v3067, %v3282
      %v3325 = vadd.f32 %v3068, %v3287
      %v3326 = vadd.f32 %v3069, %v3292
      %vm3327 = vcmask 130048
      %3328 = vst.msk [vmem:[#allocation3] sm:$0xff] %vm3327, %v3295
      %3329 = vst.msk [vmem:[#allocation3 + $0x8] sm:$0xff] %vm3327, %v3296
      %3330 = vst.msk [vmem:[#allocation3 + $0x10] sm:$0xff] %vm3327, %v3297
      %3331 = vst.msk [vmem:[#allocation3 + $0x18] sm:$0xff] %vm3327, %v3298
      %3332 = vst.msk [vmem:[#allocation3 + $0x20] sm:$0xff] %vm3327, %v3299
      %3333 = vst.msk [vmem:[#allocation3 + $0x28] sm:$0xff] %vm3327, %v3300
      %3334 = vst.msk [vmem:[#allocation3 + $0x30] sm:$0xff] %vm3327, %v3301
      %3335 = vst.msk [vmem:[#allocation3 + $0x38] sm:$0xff] %vm3327, %v3302
      %3336 = vst.msk [vmem:[#allocation3 + $0x40] sm:$0xff] %vm3327, %v3303
      %3337 = vst.msk [vmem:[#allocation3 + $0x48] sm:$0xff] %vm3327, %v3304
      %3338 = vst.msk [vmem:[#allocation3 + $0x50] sm:$0xff] %vm3327, %v3305
      %3339 = vst.msk [vmem:[#allocation3 + $0x58] sm:$0xff] %vm3327, %v3306
      %3340 = vst.msk [vmem:[#allocation3 + $0x60] sm:$0xff] %vm3327, %v3307
      %3341 = vst.msk [vmem:[#allocation3 + $0x68] sm:$0xff] %vm3327, %v3308
      %3342 = vst.msk [vmem:[#allocation3 + $0x70] sm:$0xff] %vm3327, %v3309
      %3343 = vst.msk [vmem:[#allocation3 + $0x78] sm:$0xff] %vm3327, %v3310
      %3344 = vst.msk [vmem:[#allocation3 + $0x80] sm:$0xff] %vm3327, %v3311
      %3345 = vst.msk [vmem:[#allocation3 + $0x88] sm:$0xff] %vm3327, %v3312
      %3346 = vst.msk [vmem:[#allocation3 + $0x90] sm:$0xff] %vm3327, %v3313
      %3347 = vst.msk [vmem:[#allocation3 + $0x98] sm:$0xff] %vm3327, %v3314
      %3348 = vst.msk [vmem:[#allocation3 + $0xa0] sm:$0xff] %vm3327, %v3315
      %3349 = vst.msk [vmem:[#allocation3 + $0xa8] sm:$0xff] %vm3327, %v3316
      %3350 = vst.msk [vmem:[#allocation3 + $0xb0] sm:$0xff] %vm3327, %v3317
      %3351 = vst.msk [vmem:[#allocation3 + $0xb8] sm:$0xff] %vm3327, %v3318
      %3352 = vst.msk [vmem:[#allocation3 + $0xc0] sm:$0xff] %vm3327, %v3319
      %3353 = vst.msk [vmem:[#allocation3 + $0xc8] sm:$0xff] %vm3327, %v3320
      %3354 = vst.msk [vmem:[#allocation3 + $0xd0] sm:$0xff] %vm3327, %v3321
      %3355 = vst.msk [vmem:[#allocation3 + $0xd8] sm:$0xff] %vm3327, %v3322
      %3356 = vst.msk [vmem:[#allocation3 + $0xe0] sm:$0xff] %vm3327, %v3323
      %3357 = vst.msk [vmem:[#allocation3 + $0xe8] sm:$0xff] %vm3327, %v3324
      %3358 = vst.msk [vmem:[#allocation3 + $0xf0] sm:$0xff] %vm3327, %v3325
      %3359 = vst.msk [vmem:[#allocation3 + $0xf8] sm:$0xff] %vm3327, %v3326
      %p3360 = scmp.eq.s32.totalorder %s27, 1
      // Predicated region
      $region103: #{tpu_custom_call.1} parent=59 // pred_check
        %p3361 = pneg %p3360
      $region104: #{tpu_custom_call.1} parent=59 // pred_check_branch
        %3363 = sbr.rel (%p3361) target = $region106
      $region105: #{tpu_custom_call.1} parent=59 // pred_region
        %v3364 = vld [vmem:[#allocation3] sm:$0xff]
        %v3365 = vld [vmem:[#allocation3 + $0x8] sm:$0xff]
        %v3366 = vld [vmem:[#allocation3 + $0x10] sm:$0xff]
        %v3367 = vld [vmem:[#allocation3 + $0x18] sm:$0xff]
        %v3368 = vld [vmem:[#allocation3 + $0x20] sm:$0xff]
        %v3369 = vld [vmem:[#allocation3 + $0x28] sm:$0xff]
        %v3370 = vld [vmem:[#allocation3 + $0x30] sm:$0xff]
        %v3371 = vld [vmem:[#allocation3 + $0x38] sm:$0xff]
        %v3372 = vld [vmem:[#allocation3 + $0x40] sm:$0xff]
        %v3373 = vld [vmem:[#allocation3 + $0x48] sm:$0xff]
        %v3374 = vld [vmem:[#allocation3 + $0x50] sm:$0xff]
        %v3375 = vld [vmem:[#allocation3 + $0x58] sm:$0xff]
        %v3376 = vld [vmem:[#allocation3 + $0x60] sm:$0xff]
        %v3377 = vld [vmem:[#allocation3 + $0x68] sm:$0xff]
        %v3378 = vld [vmem:[#allocation3 + $0x70] sm:$0xff]
        %v3379 = vld [vmem:[#allocation3 + $0x78] sm:$0xff]
        %v3380 = vld [vmem:[#allocation3 + $0x80] sm:$0xff]
        %v3381 = vld [vmem:[#allocation3 + $0x88] sm:$0xff]
        %v3382 = vld [vmem:[#allocation3 + $0x90] sm:$0xff]
        %v3383 = vld [vmem:[#allocation3 + $0x98] sm:$0xff]
        %v3384 = vld [vmem:[#allocation3 + $0xa0] sm:$0xff]
        %v3385 = vld [vmem:[#allocation3 + $0xa8] sm:$0xff]
        %v3386 = vld [vmem:[#allocation3 + $0xb0] sm:$0xff]
        %v3387 = vld [vmem:[#allocation3 + $0xb8] sm:$0xff]
        %v3388 = vld [vmem:[#allocation3 + $0xc0] sm:$0xff]
        %v3389 = vld [vmem:[#allocation3 + $0xc8] sm:$0xff]
        %v3390 = vld [vmem:[#allocation3 + $0xd0] sm:$0xff]
        %v3391 = vld [vmem:[#allocation3 + $0xd8] sm:$0xff]
        %v3392 = vld [vmem:[#allocation3 + $0xe0] sm:$0xff]
        %v3393 = vld [vmem:[#allocation3 + $0xe8] sm:$0xff]
        %v3394 = vld [vmem:[#allocation3 + $0xf0] sm:$0xff]
        %v3395 = vld [vmem:[#allocation3 + $0xf8] sm:$0xff]
        %v3396 = vld [vmem:[%s9] sm:$0xff]
        %v3397 = vld [vmem:[%s9 + $0x8] sm:$0xff]
        %v3398 = vld [vmem:[%s9 + $0x10] sm:$0xff]
        %v3399 = vld [vmem:[%s9 + $0x18] sm:$0xff]
        %v3400 = vld [vmem:[%s9 + $0x20] sm:$0xff]
        %v3401 = vld [vmem:[%s9 + $0x28] sm:$0xff]
        %v3402 = vld [vmem:[%s9 + $0x30] sm:$0xff]
        %v3403 = vld [vmem:[%s9 + $0x38] sm:$0xff]
        %v3404 = vld [vmem:[%s9 + $0x40] sm:$0xff]
        %v3405 = vld [vmem:[%s9 + $0x48] sm:$0xff]
        %v3406 = vld [vmem:[%s9 + $0x50] sm:$0xff]
        %v3407 = vld [vmem:[%s9 + $0x58] sm:$0xff]
        %v3408 = vld [vmem:[%s9 + $0x60] sm:$0xff]
        %v3409 = vld [vmem:[%s9 + $0x68] sm:$0xff]
        %v3410 = vld [vmem:[%s9 + $0x70] sm:$0xff]
        %v3411 = vld [vmem:[%s9 + $0x78] sm:$0xff]
        %v3412 = vld [vmem:[%s9 + $0x80] sm:$0xff]
        %v3413 = vld [vmem:[%s9 + $0x88] sm:$0xff]
        %v3414 = vld [vmem:[%s9 + $0x90] sm:$0xff]
        %v3415 = vld [vmem:[%s9 + $0x98] sm:$0xff]
        %v3416 = vld [vmem:[%s9 + $0xa0] sm:$0xff]
        %v3417 = vld [vmem:[%s9 + $0xa8] sm:$0xff]
        %v3418 = vld [vmem:[%s9 + $0xb0] sm:$0xff]
        %v3419 = vld [vmem:[%s9 + $0xb8] sm:$0xff]
        %v3420 = vld [vmem:[%s9 + $0xc0] sm:$0xff]
        %v3421 = vld [vmem:[%s9 + $0xc8] sm:$0xff]
        %v3422 = vld [vmem:[%s9 + $0xd0] sm:$0xff]
        %v3423 = vld [vmem:[%s9 + $0xd8] sm:$0xff]
        %v3424 = vld [vmem:[%s9 + $0xe0] sm:$0xff]
        %v3425 = vld [vmem:[%s9 + $0xe8] sm:$0xff]
        %v3426 = vld [vmem:[%s9 + $0xf0] sm:$0xff]
        %v3427 = vld [vmem:[%s9 + $0xf8] sm:$0xff]
        %3429 = vset.pattern.permute.xlu0 0
        %3430 = vperm.xlu0 %3429, %v3396
        %v3431 = vpop.permute.xlu0 %3430
        %3434 = vset.pattern.permute.xlu0 0
        %3435 = vperm.xlu0 %3434, %v3397
        %v3436 = vpop.permute.xlu0 %3435
        %3439 = vset.pattern.permute.xlu0 0
        %3440 = vperm.xlu0 %3439, %v3398
        %v3441 = vpop.permute.xlu0 %3440
        %3444 = vset.pattern.permute.xlu0 0
        %3445 = vperm.xlu0 %3444, %v3399
        %v3446 = vpop.permute.xlu0 %3445
        %3449 = vset.pattern.permute.xlu0 0
        %3450 = vperm.xlu0 %3449, %v3400
        %v3451 = vpop.permute.xlu0 %3450
        %3454 = vset.pattern.permute.xlu0 0
        %3455 = vperm.xlu0 %3454, %v3401
        %v3456 = vpop.permute.xlu0 %3455
        %3459 = vset.pattern.permute.xlu0 0
        %3460 = vperm.xlu0 %3459, %v3402
        %v3461 = vpop.permute.xlu0 %3460
        %3464 = vset.pattern.permute.xlu0 0
        %3465 = vperm.xlu0 %3464, %v3403
        %v3466 = vpop.permute.xlu0 %3465
        %3469 = vset.pattern.permute.xlu0 0
        %3470 = vperm.xlu0 %3469, %v3404
        %v3471 = vpop.permute.xlu0 %3470
        %3474 = vset.pattern.permute.xlu0 0
        %3475 = vperm.xlu0 %3474, %v3405
        %v3476 = vpop.permute.xlu0 %3475
        %3479 = vset.pattern.permute.xlu0 0
        %3480 = vperm.xlu0 %3479, %v3406
        %v3481 = vpop.permute.xlu0 %3480
        %3484 = vset.pattern.permute.xlu0 0
        %3485 = vperm.xlu0 %3484, %v3407
        %v3486 = vpop.permute.xlu0 %3485
        %3489 = vset.pattern.permute.xlu0 0
        %3490 = vperm.xlu0 %3489, %v3408
        %v3491 = vpop.permute.xlu0 %3490
        %3494 = vset.pattern.permute.xlu0 0
        %3495 = vperm.xlu0 %3494, %v3409
        %v3496 = vpop.permute.xlu0 %3495
        %3499 = vset.pattern.permute.xlu0 0
        %3500 = vperm.xlu0 %3499, %v3410
        %v3501 = vpop.permute.xlu0 %3500
        %3504 = vset.pattern.permute.xlu0 0
        %3505 = vperm.xlu0 %3504, %v3411
        %v3506 = vpop.permute.xlu0 %3505
        %3509 = vset.pattern.permute.xlu0 0
        %3510 = vperm.xlu0 %3509, %v3412
        %v3511 = vpop.permute.xlu0 %3510
        %3514 = vset.pattern.permute.xlu0 0
        %3515 = vperm.xlu0 %3514, %v3413
        %v3516 = vpop.permute.xlu0 %3515
        %3519 = vset.pattern.permute.xlu0 0
        %3520 = vperm.xlu0 %3519, %v3414
        %v3521 = vpop.permute.xlu0 %3520
        %3524 = vset.pattern.permute.xlu0 0
        %3525 = vperm.xlu0 %3524, %v3415
        %v3526 = vpop.permute.xlu0 %3525
        %3529 = vset.pattern.permute.xlu0 0
        %3530 = vperm.xlu0 %3529, %v3416
        %v3531 = vpop.permute.xlu0 %3530
        %3534 = vset.pattern.permute.xlu0 0
        %3535 = vperm.xlu0 %3534, %v3417
        %v3536 = vpop.permute.xlu0 %3535
        %3539 = vset.pattern.permute.xlu0 0
        %3540 = vperm.xlu0 %3539, %v3418
        %v3541 = vpop.permute.xlu0 %3540
        %3544 = vset.pattern.permute.xlu0 0
        %3545 = vperm.xlu0 %3544, %v3419
        %v3546 = vpop.permute.xlu0 %3545
        %3549 = vset.pattern.permute.xlu0 0
        %3550 = vperm.xlu0 %3549, %v3420
        %v3551 = vpop.permute.xlu0 %3550
        %3554 = vset.pattern.permute.xlu0 0
        %3555 = vperm.xlu0 %3554, %v3421
        %v3556 = vpop.permute.xlu0 %3555
        %3559 = vset.pattern.permute.xlu0 0
        %3560 = vperm.xlu0 %3559, %v3422
        %v3561 = vpop.permute.xlu0 %3560
        %3564 = vset.pattern.permute.xlu0 0
        %3565 = vperm.xlu0 %3564, %v3423
        %v3566 = vpop.permute.xlu0 %3565
        %3569 = vset.pattern.permute.xlu0 0
        %3570 = vperm.xlu0 %3569, %v3424
        %v3571 = vpop.permute.xlu0 %3570
        %3574 = vset.pattern.permute.xlu0 0
        %3575 = vperm.xlu0 %3574, %v3425
        %v3576 = vpop.permute.xlu0 %3575
        %3579 = vset.pattern.permute.xlu0 0
        %3580 = vperm.xlu0 %3579, %v3426
        %v3581 = vpop.permute.xlu0 %3580
        %3584 = vset.pattern.permute.xlu0 0
        %3585 = vperm.xlu0 %3584, %v3427
        %v3586 = vpop.permute.xlu0 %3585
        %v3588 = vmul.f32 %v3364, %v3431
        %v3589 = vmul.f32 %v3365, %v3436
        %v3590 = vmul.f32 %v3366, %v3441
        %v3591 = vmul.f32 %v3367, %v3446
        %v3592 = vmul.f32 %v3368, %v3451
        %v3593 = vmul.f32 %v3369, %v3456
        %v3594 = vmul.f32 %v3370, %v3461
        %v3595 = vmul.f32 %v3371, %v3466
        %v3596 = vmul.f32 %v3372, %v3471
        %v3597 = vmul.f32 %v3373, %v3476
        %v3598 = vmul.f32 %v3374, %v3481
        %v3599 = vmul.f32 %v3375, %v3486
        %v3600 = vmul.f32 %v3376, %v3491
        %v3601 = vmul.f32 %v3377, %v3496
        %v3602 = vmul.f32 %v3378, %v3501
        %v3603 = vmul.f32 %v3379, %v3506
        %v3604 = vmul.f32 %v3380, %v3511
        %v3605 = vmul.f32 %v3381, %v3516
        %v3606 = vmul.f32 %v3382, %v3521
        %v3607 = vmul.f32 %v3383, %v3526
        %v3608 = vmul.f32 %v3384, %v3531
        %v3609 = vmul.f32 %v3385, %v3536
        %v3610 = vmul.f32 %v3386, %v3541
        %v3611 = vmul.f32 %v3387, %v3546
        %v3612 = vmul.f32 %v3388, %v3551
        %v3613 = vmul.f32 %v3389, %v3556
        %v3614 = vmul.f32 %v3390, %v3561
        %v3615 = vmul.f32 %v3391, %v3566
        %v3616 = vmul.f32 %v3392, %v3571
        %v3617 = vmul.f32 %v3393, %v3576
        %v3618 = vmul.f32 %v3394, %v3581
        %v3619 = vmul.f32 %v3395, %v3586
        %v3620 = vld [vmem:[#allocation5] sm:$0xff]
        %v3621 = vld [vmem:[#allocation5 + $0x8] sm:$0xff]
        %v3622 = vld [vmem:[#allocation5 + $0x10] sm:$0xff]
        %v3623 = vld [vmem:[#allocation5 + $0x18] sm:$0xff]
        %v3624 = vld [vmem:[#allocation5 + $0x20] sm:$0xff]
        %v3625 = vld [vmem:[#allocation5 + $0x28] sm:$0xff]
        %v3626 = vld [vmem:[#allocation5 + $0x30] sm:$0xff]
        %v3627 = vld [vmem:[#allocation5 + $0x38] sm:$0xff]
        %v3628 = vld [vmem:[#allocation5 + $0x40] sm:$0xff]
        %v3629 = vld [vmem:[#allocation5 + $0x48] sm:$0xff]
        %v3630 = vld [vmem:[#allocation5 + $0x50] sm:$0xff]
        %v3631 = vld [vmem:[#allocation5 + $0x58] sm:$0xff]
        %v3632 = vld [vmem:[#allocation5 + $0x60] sm:$0xff]
        %v3633 = vld [vmem:[#allocation5 + $0x68] sm:$0xff]
        %v3634 = vld [vmem:[#allocation5 + $0x70] sm:$0xff]
        %v3635 = vld [vmem:[#allocation5 + $0x78] sm:$0xff]
        %v3636 = vld [vmem:[#allocation5 + $0x80] sm:$0xff]
        %v3637 = vld [vmem:[#allocation5 + $0x88] sm:$0xff]
        %v3638 = vld [vmem:[#allocation5 + $0x90] sm:$0xff]
        %v3639 = vld [vmem:[#allocation5 + $0x98] sm:$0xff]
        %v3640 = vld [vmem:[#allocation5 + $0xa0] sm:$0xff]
        %v3641 = vld [vmem:[#allocation5 + $0xa8] sm:$0xff]
        %v3642 = vld [vmem:[#allocation5 + $0xb0] sm:$0xff]
        %v3643 = vld [vmem:[#allocation5 + $0xb8] sm:$0xff]
        %v3644 = vld [vmem:[#allocation5 + $0xc0] sm:$0xff]
        %v3645 = vld [vmem:[#allocation5 + $0xc8] sm:$0xff]
        %v3646 = vld [vmem:[#allocation5 + $0xd0] sm:$0xff]
        %v3647 = vld [vmem:[#allocation5 + $0xd8] sm:$0xff]
        %v3648 = vld [vmem:[#allocation5 + $0xe0] sm:$0xff]
        %v3649 = vld [vmem:[#allocation5 + $0xe8] sm:$0xff]
        %v3650 = vld [vmem:[#allocation5 + $0xf0] sm:$0xff]
        %v3651 = vld [vmem:[#allocation5 + $0xf8] sm:$0xff]
        %v3652 = vld [vmem:[%s510] sm:$0xff]
        %v3653 = vld [vmem:[%s510 + $0x8] sm:$0xff]
        %v3655 = vsel %vm3327, %v3588, 0
        %v3658 = vsel %vm3327, %v3589, 0
        %v3661 = vsel %vm3327, %v3590, 0
        %v3664 = vsel %vm3327, %v3591, 0
        %v3667 = vsel %vm3327, %v3592, 0
        %v3670 = vsel %vm3327, %v3593, 0
        %v3673 = vsel %vm3327, %v3594, 0
        %v3676 = vsel %vm3327, %v3595, 0
        %v3679 = vsel %vm3327, %v3596, 0
        %v3682 = vsel %vm3327, %v3597, 0
        %v3685 = vsel %vm3327, %v3598, 0
        %v3688 = vsel %vm3327, %v3599, 0
        %v3691 = vsel %vm3327, %v3600, 0
        %v3694 = vsel %vm3327, %v3601, 0
        %v3697 = vsel %vm3327, %v3602, 0
        %v3700 = vsel %vm3327, %v3603, 0
        %v3703 = vsel %vm3327, %v3604, 0
        %v3706 = vsel %vm3327, %v3605, 0
        %v3709 = vsel %vm3327, %v3606, 0
        %v3712 = vsel %vm3327, %v3607, 0
        %v3715 = vsel %vm3327, %v3608, 0
        %v3718 = vsel %vm3327, %v3609, 0
        %v3721 = vsel %vm3327, %v3610, 0
        %v3724 = vsel %vm3327, %v3611, 0
        %v3727 = vsel %vm3327, %v3612, 0
        %v3730 = vsel %vm3327, %v3613, 0
        %v3733 = vsel %vm3327, %v3614, 0
        %v3736 = vsel %vm3327, %v3615, 0
        %v3739 = vsel %vm3327, %v3616, 0
        %v3742 = vsel %vm3327, %v3617, 0
        %v3745 = vsel %vm3327, %v3618, 0
        %v3748 = vsel %vm3327, %v3619, 0
        %3750 = vmatprep.subr.mxu0 0.0
        %3751 = vmatpush1.msra.mxu0 0.0
        %3752 = vmatprep.subr.mxu0 0.0
        %3753 = vmatpush1.msra.mxu0 0.0
        %3754 = vmatprep.subr.mxu0 0.0
        %3755 = vmatpush1.msra.mxu0 0.0
        %3756 = vmatprep.subr.mxu0 0.0
        %3757 = vmatpush1.msra.mxu0 0.0
        %3758 = vmatprep.subr.mxu0 0.0
        %3759 = vmatpush1.msra.mxu0 0.0
        %3760 = vmatprep.subr.mxu0 0.0
        %3761 = vmatpush1.msra.mxu0 0.0
        %3762 = vmatprep.subr.mxu0 0.0
        %3763 = vmatpush1.msra.mxu0 0.0
        %3764 = vmatprep.subr.mxu0 0.0
        %3765 = vmatpush1.msra.mxu0 0.0
        %3766 = vmatprep.subr.mxu0 0.0
        %3767 = vmatpush1.msra.mxu0 0.0
        %3768 = vmatprep.subr.mxu0 0.0
        %3769 = vmatpush1.msra.mxu0 0.0
        %3770 = vmatprep.subr.mxu0 0.0
        %3771 = vmatpush1.msra.mxu0 0.0
        %3772 = vmatprep.subr.mxu0 0.0
        %3773 = vmatpush1.msra.mxu0 0.0
        %3774 = vmatprep.subr.mxu0 0.0
        %3775 = vmatpush1.msra.mxu0 0.0
        %3776 = vmatprep.subr.mxu0 0.0
        %3777 = vmatpush1.msra.mxu0 0.0
        %3778 = vmatprep.subr.mxu0 0.0
        %3779 = vmatpush1.msra.mxu0 %v3653
        %3780 = vmatprep.subr.mxu0 0.0
        %3781 = vmatpush1.msra.mxu0 %v3652
        %3782 = vmatprep.subr.mxu0 0.0
        %3783 = vmatpush2.msra.mxu0 0.0
        %3784 = vmatprep.subr.mxu0 0.0
        %3785 = vmatpush2.msra.mxu0 0.0
        %3786 = vmatprep.subr.mxu0 0.0
        %3787 = vmatpush2.msra.mxu0 0.0
        %3788 = vmatprep.subr.mxu0 0.0
        %3789 = vmatpush2.msra.mxu0 0.0
        %3790 = vmatprep.subr.mxu0 0.0
        %3791 = vmatpush2.msra.mxu0 0.0
        %3792 = vmatprep.subr.mxu0 0.0
        %3793 = vmatpush2.msra.mxu0 0.0
        %3794 = vmatprep.subr.mxu0 0.0
        %3795 = vmatpush2.msra.mxu0 0.0
        %3796 = vmatprep.subr.mxu0 0.0
        %3797 = vmatpush2.msra.mxu0 0.0
        %3798 = vmatprep.subr.mxu0 0.0
        %3799 = vmatpush2.msra.mxu0 0.0
        %3800 = vmatprep.subr.mxu0 0.0
        %3801 = vmatpush2.msra.mxu0 0.0
        %3802 = vmatprep.subr.mxu0 0.0
        %3803 = vmatpush2.msra.mxu0 0.0
        %3804 = vmatprep.subr.mxu0 0.0
        %3805 = vmatpush2.msra.mxu0 0.0
        %3806 = vmatprep.subr.mxu0 0.0
        %3807 = vmatpush2.msra.mxu0 0.0
        %3808 = vmatprep.subr.mxu0 0.0
        %3809 = vmatpush2.msra.mxu0 0.0
        %3810 = vmatprep.subr.mxu0 0.0
        %3811 = vmatpush2.msra.mxu0 0.0
        %3812 = vmatprep.subr.mxu0 0.0
        %3813 = vmatpush2.msra.mxu0 0.0
        %3814 = vmatprep.mubr.f32.mxu0 0.0
        %3815 = vmatmul.mubr.f32.gmra.mxu0 %v3655
        %v3816 = vpop.f32.mrf.mxu0
        %v3817 = vadd.f32 0.0, %v3816
        %v3818 = vpop.f32.mrf.mxu0
        %3819 = vmatprep.mubr.f32.mxu0 0.0
        %3820 = vmatmul.mubr.f32.gmra.mxu0 %v3658
        %v3821 = vpop.f32.mrf.mxu0
        %v3822 = vadd.f32 0.0, %v3821
        %v3823 = vpop.f32.mrf.mxu0
        %3824 = vmatprep.mubr.f32.mxu0 0.0
        %3825 = vmatmul.mubr.f32.gmra.mxu0 %v3661
        %v3826 = vpop.f32.mrf.mxu0
        %v3827 = vadd.f32 0.0, %v3826
        %v3828 = vpop.f32.mrf.mxu0
        %3829 = vmatprep.mubr.f32.mxu0 0.0
        %3830 = vmatmul.mubr.f32.gmra.mxu0 %v3664
        %v3831 = vpop.f32.mrf.mxu0
        %v3832 = vadd.f32 0.0, %v3831
        %v3833 = vpop.f32.mrf.mxu0
        %3834 = vmatprep.mubr.f32.mxu0 0.0
        %3835 = vmatmul.mubr.f32.gmra.mxu0 %v3667
        %v3836 = vpop.f32.mrf.mxu0
        %v3837 = vadd.f32 0.0, %v3836
        %v3838 = vpop.f32.mrf.mxu0
        %3839 = vmatprep.mubr.f32.mxu0 0.0
        %3840 = vmatmul.mubr.f32.gmra.mxu0 %v3670
        %v3841 = vpop.f32.mrf.mxu0
        %v3842 = vadd.f32 0.0, %v3841
        %v3843 = vpop.f32.mrf.mxu0
        %3844 = vmatprep.mubr.f32.mxu0 0.0
        %3845 = vmatmul.mubr.f32.gmra.mxu0 %v3673
        %v3846 = vpop.f32.mrf.mxu0
        %v3847 = vadd.f32 0.0, %v3846
        %v3848 = vpop.f32.mrf.mxu0
        %3849 = vmatprep.mubr.f32.mxu0 0.0
        %3850 = vmatmul.mubr.f32.gmra.mxu0 %v3676
        %v3851 = vpop.f32.mrf.mxu0
        %v3852 = vadd.f32 0.0, %v3851
        %v3853 = vpop.f32.mrf.mxu0
        %3854 = vmatprep.mubr.f32.mxu0 0.0
        %3855 = vmatmul.mubr.f32.gmra.mxu0 %v3679
        %v3856 = vpop.f32.mrf.mxu0
        %v3857 = vadd.f32 0.0, %v3856
        %v3858 = vpop.f32.mrf.mxu0
        %3859 = vmatprep.mubr.f32.mxu0 0.0
        %3860 = vmatmul.mubr.f32.gmra.mxu0 %v3682
        %v3861 = vpop.f32.mrf.mxu0
        %v3862 = vadd.f32 0.0, %v3861
        %v3863 = vpop.f32.mrf.mxu0
        %3864 = vmatprep.mubr.f32.mxu0 0.0
        %3865 = vmatmul.mubr.f32.gmra.mxu0 %v3685
        %v3866 = vpop.f32.mrf.mxu0
        %v3867 = vadd.f32 0.0, %v3866
        %v3868 = vpop.f32.mrf.mxu0
        %3869 = vmatprep.mubr.f32.mxu0 0.0
        %3870 = vmatmul.mubr.f32.gmra.mxu0 %v3688
        %v3871 = vpop.f32.mrf.mxu0
        %v3872 = vadd.f32 0.0, %v3871
        %v3873 = vpop.f32.mrf.mxu0
        %3874 = vmatprep.mubr.f32.mxu0 0.0
        %3875 = vmatmul.mubr.f32.gmra.mxu0 %v3691
        %v3876 = vpop.f32.mrf.mxu0
        %v3877 = vadd.f32 0.0, %v3876
        %v3878 = vpop.f32.mrf.mxu0
        %3879 = vmatprep.mubr.f32.mxu0 0.0
        %3880 = vmatmul.mubr.f32.gmra.mxu0 %v3694
        %v3881 = vpop.f32.mrf.mxu0
        %v3882 = vadd.f32 0.0, %v3881
        %v3883 = vpop.f32.mrf.mxu0
        %3884 = vmatprep.mubr.f32.mxu0 0.0
        %3885 = vmatmul.mubr.f32.gmra.mxu0 %v3697
        %v3886 = vpop.f32.mrf.mxu0
        %v3887 = vadd.f32 0.0, %v3886
        %v3888 = vpop.f32.mrf.mxu0
        %3889 = vmatprep.mubr.f32.mxu0 0.0
        %3890 = vmatmul.mubr.f32.gmra.mxu0 %v3700
        %v3891 = vpop.f32.mrf.mxu0
        %v3892 = vadd.f32 0.0, %v3891
        %v3893 = vpop.f32.mrf.mxu0
        %3894 = vmatprep.mubr.f32.mxu0 0.0
        %3895 = vmatmul.mubr.f32.gmra.mxu0 %v3703
        %v3896 = vpop.f32.mrf.mxu0
        %v3897 = vadd.f32 0.0, %v3896
        %v3898 = vpop.f32.mrf.mxu0
        %3899 = vmatprep.mubr.f32.mxu0 0.0
        %3900 = vmatmul.mubr.f32.gmra.mxu0 %v3706
        %v3901 = vpop.f32.mrf.mxu0
        %v3902 = vadd.f32 0.0, %v3901
        %v3903 = vpop.f32.mrf.mxu0
        %3904 = vmatprep.mubr.f32.mxu0 0.0
        %3905 = vmatmul.mubr.f32.gmra.mxu0 %v3709
        %v3906 = vpop.f32.mrf.mxu0
        %v3907 = vadd.f32 0.0, %v3906
        %v3908 = vpop.f32.mrf.mxu0
        %3909 = vmatprep.mubr.f32.mxu0 0.0
        %3910 = vmatmul.mubr.f32.gmra.mxu0 %v3712
        %v3911 = vpop.f32.mrf.mxu0
        %v3912 = vadd.f32 0.0, %v3911
        %v3913 = vpop.f32.mrf.mxu0
        %3914 = vmatprep.mubr.f32.mxu0 0.0
        %3915 = vmatmul.mubr.f32.gmra.mxu0 %v3715
        %v3916 = vpop.f32.mrf.mxu0
        %v3917 = vadd.f32 0.0, %v3916
        %v3918 = vpop.f32.mrf.mxu0
        %3919 = vmatprep.mubr.f32.mxu0 0.0
        %3920 = vmatmul.mubr.f32.gmra.mxu0 %v3718
        %v3921 = vpop.f32.mrf.mxu0
        %v3922 = vadd.f32 0.0, %v3921
        %v3923 = vpop.f32.mrf.mxu0
        %3924 = vmatprep.mubr.f32.mxu0 0.0
        %3925 = vmatmul.mubr.f32.gmra.mxu0 %v3721
        %v3926 = vpop.f32.mrf.mxu0
        %v3927 = vadd.f32 0.0, %v3926
        %v3928 = vpop.f32.mrf.mxu0
        %3929 = vmatprep.mubr.f32.mxu0 0.0
        %3930 = vmatmul.mubr.f32.gmra.mxu0 %v3724
        %v3931 = vpop.f32.mrf.mxu0
        %v3932 = vadd.f32 0.0, %v3931
        %v3933 = vpop.f32.mrf.mxu0
        %3934 = vmatprep.mubr.f32.mxu0 0.0
        %3935 = vmatmul.mubr.f32.gmra.mxu0 %v3727
        %v3936 = vpop.f32.mrf.mxu0
        %v3937 = vadd.f32 0.0, %v3936
        %v3938 = vpop.f32.mrf.mxu0
        %3939 = vmatprep.mubr.f32.mxu0 0.0
        %3940 = vmatmul.mubr.f32.gmra.mxu0 %v3730
        %v3941 = vpop.f32.mrf.mxu0
        %v3942 = vadd.f32 0.0, %v3941
        %v3943 = vpop.f32.mrf.mxu0
        %3944 = vmatprep.mubr.f32.mxu0 0.0
        %3945 = vmatmul.mubr.f32.gmra.mxu0 %v3733
        %v3946 = vpop.f32.mrf.mxu0
        %v3947 = vadd.f32 0.0, %v3946
        %v3948 = vpop.f32.mrf.mxu0
        %3949 = vmatprep.mubr.f32.mxu0 0.0
        %3950 = vmatmul.mubr.f32.gmra.mxu0 %v3736
        %v3951 = vpop.f32.mrf.mxu0
        %v3952 = vadd.f32 0.0, %v3951
        %v3953 = vpop.f32.mrf.mxu0
        %3954 = vmatprep.mubr.f32.mxu0 0.0
        %3955 = vmatmul.mubr.f32.gmra.mxu0 %v3739
        %v3956 = vpop.f32.mrf.mxu0
        %v3957 = vadd.f32 0.0, %v3956
        %v3958 = vpop.f32.mrf.mxu0
        %3959 = vmatprep.mubr.f32.mxu0 0.0
        %3960 = vmatmul.mubr.f32.gmra.mxu0 %v3742
        %v3961 = vpop.f32.mrf.mxu0
        %v3962 = vadd.f32 0.0, %v3961
        %v3963 = vpop.f32.mrf.mxu0
        %3964 = vmatprep.mubr.f32.mxu0 0.0
        %3965 = vmatmul.mubr.f32.gmra.mxu0 %v3745
        %v3966 = vpop.f32.mrf.mxu0
        %v3967 = vadd.f32 0.0, %v3966
        %v3968 = vpop.f32.mrf.mxu0
        %3969 = vmatprep.mubr.f32.mxu0 0.0
        %3970 = vmatmul.mubr.f32.gmra.mxu0 %v3748
        %v3971 = vpop.f32.mrf.mxu0
        %v3972 = vadd.f32 0.0, %v3971
        %v3973 = vpop.f32.mrf.mxu0
        %3974 = vdwg.mxu0
        %v3975 = vadd.f32 %v3620, %v3817
        %v3976 = vadd.f32 %v3621, %v3822
        %v3977 = vadd.f32 %v3622, %v3827
        %v3978 = vadd.f32 %v3623, %v3832
        %v3979 = vadd.f32 %v3624, %v3837
        %v3980 = vadd.f32 %v3625, %v3842
        %v3981 = vadd.f32 %v3626, %v3847
        %v3982 = vadd.f32 %v3627, %v3852
        %v3983 = vadd.f32 %v3628, %v3857
        %v3984 = vadd.f32 %v3629, %v3862
        %v3985 = vadd.f32 %v3630, %v3867
        %v3986 = vadd.f32 %v3631, %v3872
        %v3987 = vadd.f32 %v3632, %v3877
        %v3988 = vadd.f32 %v3633, %v3882
        %v3989 = vadd.f32 %v3634, %v3887
        %v3990 = vadd.f32 %v3635, %v3892
        %v3991 = vadd.f32 %v3636, %v3897
        %v3992 = vadd.f32 %v3637, %v3902
        %v3993 = vadd.f32 %v3638, %v3907
        %v3994 = vadd.f32 %v3639, %v3912
        %v3995 = vadd.f32 %v3640, %v3917
        %v3996 = vadd.f32 %v3641, %v3922
        %v3997 = vadd.f32 %v3642, %v3927
        %v3998 = vadd.f32 %v3643, %v3932
        %v3999 = vadd.f32 %v3644, %v3937
        %v4000 = vadd.f32 %v3645, %v3942
        %v4001 = vadd.f32 %v3646, %v3947
        %v4002 = vadd.f32 %v3647, %v3952
        %v4003 = vadd.f32 %v3648, %v3957
        %v4004 = vadd.f32 %v3649, %v3962
        %v4005 = vadd.f32 %v3650, %v3967
        %v4006 = vadd.f32 %v3651, %v3972
        %v4007 = vld [vmem:[%s513] sm:$0x1]
        %v4009 = vlaneseq
        %v4010 = vshrl.u32 %v4009, 7
        %v4011 = vsub.s32 0, %v4010
        %v4012 = vrot.slane %v4007, %v4011
        %v4014 = vadd.f32 %v3975, %v4012
        %v4015 = vadd.f32 %v3976, %v4012
        %v4016 = vadd.f32 %v3977, %v4012
        %v4017 = vadd.f32 %v3978, %v4012
        %v4018 = vadd.f32 %v3979, %v4012
        %v4019 = vadd.f32 %v3980, %v4012
        %v4020 = vadd.f32 %v3981, %v4012
        %v4021 = vadd.f32 %v3982, %v4012
        %v4022 = vadd.f32 %v3983, %v4012
        %v4023 = vadd.f32 %v3984, %v4012
        %v4024 = vadd.f32 %v3985, %v4012
        %v4025 = vadd.f32 %v3986, %v4012
        %v4026 = vadd.f32 %v3987, %v4012
        %v4027 = vadd.f32 %v3988, %v4012
        %v4028 = vadd.f32 %v3989, %v4012
        %v4029 = vadd.f32 %v3990, %v4012
        %v4030 = vadd.f32 %v3991, %v4012
        %v4031 = vadd.f32 %v3992, %v4012
        %v4032 = vadd.f32 %v3993, %v4012
        %v4033 = vadd.f32 %v3994, %v4012
        %v4034 = vadd.f32 %v3995, %v4012
        %v4035 = vadd.f32 %v3996, %v4012
        %v4036 = vadd.f32 %v3997, %v4012
        %v4037 = vadd.f32 %v3998, %v4012
        %v4038 = vadd.f32 %v3999, %v4012
        %v4039 = vadd.f32 %v4000, %v4012
        %v4040 = vadd.f32 %v4001, %v4012
        %v4041 = vadd.f32 %v4002, %v4012
        %v4042 = vadd.f32 %v4003, %v4012
        %v4043 = vadd.f32 %v4004, %v4012
        %v4044 = vadd.f32 %v4005, %v4012
        %v4045 = vadd.f32 %v4006, %v4012
        %v4046 = vmax.f32 %v4014, 0.0
        %v4047 = vmax.f32 %v4015, 0.0
        %v4048 = vmax.f32 %v4016, 0.0
        %v4049 = vmax.f32 %v4017, 0.0
        %v4050 = vmax.f32 %v4018, 0.0
        %v4051 = vmax.f32 %v4019, 0.0
        %v4052 = vmax.f32 %v4020, 0.0
        %v4053 = vmax.f32 %v4021, 0.0
        %v4054 = vmax.f32 %v4022, 0.0
        %v4055 = vmax.f32 %v4023, 0.0
        %v4056 = vmax.f32 %v4024, 0.0
        %v4057 = vmax.f32 %v4025, 0.0
        %v4058 = vmax.f32 %v4026, 0.0
        %v4059 = vmax.f32 %v4027, 0.0
        %v4060 = vmax.f32 %v4028, 0.0
        %v4061 = vmax.f32 %v4029, 0.0
        %v4062 = vmax.f32 %v4030, 0.0
        %v4063 = vmax.f32 %v4031, 0.0
        %v4064 = vmax.f32 %v4032, 0.0
        %v4065 = vmax.f32 %v4033, 0.0
        %v4066 = vmax.f32 %v4034, 0.0
        %v4067 = vmax.f32 %v4035, 0.0
        %v4068 = vmax.f32 %v4036, 0.0
        %v4069 = vmax.f32 %v4037, 0.0
        %v4070 = vmax.f32 %v4038, 0.0
        %v4071 = vmax.f32 %v4039, 0.0
        %v4072 = vmax.f32 %v4040, 0.0
        %v4073 = vmax.f32 %v4041, 0.0
        %v4074 = vmax.f32 %v4042, 0.0
        %v4075 = vmax.f32 %v4043, 0.0
        %v4076 = vmax.f32 %v4044, 0.0
        %v4077 = vmax.f32 %v4045, 0.0
        %vm4078 = vcmask 261120
        %4079 = vst.msk [vmem:[#allocation2] sm:$0xff] %vm4078, %v4046
        %4080 = vst.msk [vmem:[#allocation2 + $0x8] sm:$0xff] %vm4078, %v4047
        %4081 = vst.msk [vmem:[#allocation2 + $0x10] sm:$0xff] %vm4078, %v4048
        %4082 = vst.msk [vmem:[#allocation2 + $0x18] sm:$0xff] %vm4078, %v4049
        %4083 = vst.msk [vmem:[#allocation2 + $0x20] sm:$0xff] %vm4078, %v4050
        %4084 = vst.msk [vmem:[#allocation2 + $0x28] sm:$0xff] %vm4078, %v4051
        %4085 = vst.msk [vmem:[#allocation2 + $0x30] sm:$0xff] %vm4078, %v4052
        %4086 = vst.msk [vmem:[#allocation2 + $0x38] sm:$0xff] %vm4078, %v4053
        %4087 = vst.msk [vmem:[#allocation2 + $0x40] sm:$0xff] %vm4078, %v4054
        %4088 = vst.msk [vmem:[#allocation2 + $0x48] sm:$0xff] %vm4078, %v4055
        %4089 = vst.msk [vmem:[#allocation2 + $0x50] sm:$0xff] %vm4078, %v4056
        %4090 = vst.msk [vmem:[#allocation2 + $0x58] sm:$0xff] %vm4078, %v4057
        %4091 = vst.msk [vmem:[#allocation2 + $0x60] sm:$0xff] %vm4078, %v4058
        %4092 = vst.msk [vmem:[#allocation2 + $0x68] sm:$0xff] %vm4078, %v4059
        %4093 = vst.msk [vmem:[#allocation2 + $0x70] sm:$0xff] %vm4078, %v4060
        %4094 = vst.msk [vmem:[#allocation2 + $0x78] sm:$0xff] %vm4078, %v4061
        %4095 = vst.msk [vmem:[#allocation2 + $0x80] sm:$0xff] %vm4078, %v4062
        %4096 = vst.msk [vmem:[#allocation2 + $0x88] sm:$0xff] %vm4078, %v4063
        %4097 = vst.msk [vmem:[#allocation2 + $0x90] sm:$0xff] %vm4078, %v4064
        %4098 = vst.msk [vmem:[#allocation2 + $0x98] sm:$0xff] %vm4078, %v4065
        %4099 = vst.msk [vmem:[#allocation2 + $0xa0] sm:$0xff] %vm4078, %v4066
        %4100 = vst.msk [vmem:[#allocation2 + $0xa8] sm:$0xff] %vm4078, %v4067
        %4101 = vst.msk [vmem:[#allocation2 + $0xb0] sm:$0xff] %vm4078, %v4068
        %4102 = vst.msk [vmem:[#allocation2 + $0xb8] sm:$0xff] %vm4078, %v4069
        %4103 = vst.msk [vmem:[#allocation2 + $0xc0] sm:$0xff] %vm4078, %v4070
        %4104 = vst.msk [vmem:[#allocation2 + $0xc8] sm:$0xff] %vm4078, %v4071
        %4105 = vst.msk [vmem:[#allocation2 + $0xd0] sm:$0xff] %vm4078, %v4072
        %4106 = vst.msk [vmem:[#allocation2 + $0xd8] sm:$0xff] %vm4078, %v4073
        %4107 = vst.msk [vmem:[#allocation2 + $0xe0] sm:$0xff] %vm4078, %v4074
        %4108 = vst.msk [vmem:[#allocation2 + $0xe8] sm:$0xff] %vm4078, %v4075
        %4109 = vst.msk [vmem:[#allocation2 + $0xf0] sm:$0xff] %vm4078, %v4076
        %4110 = vst.msk [vmem:[#allocation2 + $0xf8] sm:$0xff] %vm4078, %v4077
      $region106: #{tpu_custom_call.1} parent=59 // pred_fallthru
        _
      %p4111 = scmp.eq.s32.totalorder %s26, 2
      %p4112 = pnand %p3360, %p4111
      %p4113 = pneg %p4112
      // Predicated region
      $region107: #{tpu_custom_call.1} parent=59 // pred_check
        _
      $region108: #{tpu_custom_call.1} parent=59 // pred_check_branch
        %4115 = sbr.rel (%p4112) target = $region110
      $region109: #{tpu_custom_call.1} parent=59 // pred_region
        %v4116 = vld [vmem:[#allocation2] sm:$0xff]
        %v4117 = vld [vmem:[#allocation2 + $0x8] sm:$0xff]
        %v4118 = vld [vmem:[#allocation2 + $0x10] sm:$0xff]
        %v4119 = vld [vmem:[#allocation2 + $0x18] sm:$0xff]
        %v4120 = vld [vmem:[#allocation2 + $0x20] sm:$0xff]
        %v4121 = vld [vmem:[#allocation2 + $0x28] sm:$0xff]
        %v4122 = vld [vmem:[#allocation2 + $0x30] sm:$0xff]
        %v4123 = vld [vmem:[#allocation2 + $0x38] sm:$0xff]
        %v4124 = vld [vmem:[#allocation2 + $0x40] sm:$0xff]
        %v4125 = vld [vmem:[#allocation2 + $0x48] sm:$0xff]
        %v4126 = vld [vmem:[#allocation2 + $0x50] sm:$0xff]
        %v4127 = vld [vmem:[#allocation2 + $0x58] sm:$0xff]
        %v4128 = vld [vmem:[#allocation2 + $0x60] sm:$0xff]
        %v4129 = vld [vmem:[#allocation2 + $0x68] sm:$0xff]
        %v4130 = vld [vmem:[#allocation2 + $0x70] sm:$0xff]
        %v4131 = vld [vmem:[#allocation2 + $0x78] sm:$0xff]
        %v4132 = vld [vmem:[#allocation2 + $0x80] sm:$0xff]
        %v4133 = vld [vmem:[#allocation2 + $0x88] sm:$0xff]
        %v4134 = vld [vmem:[#allocation2 + $0x90] sm:$0xff]
        %v4135 = vld [vmem:[#allocation2 + $0x98] sm:$0xff]
        %v4136 = vld [vmem:[#allocation2 + $0xa0] sm:$0xff]
        %v4137 = vld [vmem:[#allocation2 + $0xa8] sm:$0xff]
        %v4138 = vld [vmem:[#allocation2 + $0xb0] sm:$0xff]
        %v4139 = vld [vmem:[#allocation2 + $0xb8] sm:$0xff]
        %v4140 = vld [vmem:[#allocation2 + $0xc0] sm:$0xff]
        %v4141 = vld [vmem:[#allocation2 + $0xc8] sm:$0xff]
        %v4142 = vld [vmem:[#allocation2 + $0xd0] sm:$0xff]
        %v4143 = vld [vmem:[#allocation2 + $0xd8] sm:$0xff]
        %v4144 = vld [vmem:[#allocation2 + $0xe0] sm:$0xff]
        %v4145 = vld [vmem:[#allocation2 + $0xe8] sm:$0xff]
        %v4146 = vld [vmem:[#allocation2 + $0xf0] sm:$0xff]
        %v4147 = vld [vmem:[#allocation2 + $0xf8] sm:$0xff]
        %vm4148 = vcmask 261120
        %4149 = vst.msk [vmem:[%s11] sm:$0xff] %vm4148, %v4116
        %4150 = vst.msk [vmem:[%s11 + $0x8] sm:$0xff] %vm4148, %v4117
        %4151 = vst.msk [vmem:[%s11 + $0x10] sm:$0xff] %vm4148, %v4118
        %4152 = vst.msk [vmem:[%s11 + $0x18] sm:$0xff] %vm4148, %v4119
        %4153 = vst.msk [vmem:[%s11 + $0x20] sm:$0xff] %vm4148, %v4120
        %4154 = vst.msk [vmem:[%s11 + $0x28] sm:$0xff] %vm4148, %v4121
        %4155 = vst.msk [vmem:[%s11 + $0x30] sm:$0xff] %vm4148, %v4122
        %4156 = vst.msk [vmem:[%s11 + $0x38] sm:$0xff] %vm4148, %v4123
        %4157 = vst.msk [vmem:[%s11 + $0x40] sm:$0xff] %vm4148, %v4124
        %4158 = vst.msk [vmem:[%s11 + $0x48] sm:$0xff] %vm4148, %v4125
        %4159 = vst.msk [vmem:[%s11 + $0x50] sm:$0xff] %vm4148, %v4126
        %4160 = vst.msk [vmem:[%s11 + $0x58] sm:$0xff] %vm4148, %v4127
        %4161 = vst.msk [vmem:[%s11 + $0x60] sm:$0xff] %vm4148, %v4128
        %4162 = vst.msk [vmem:[%s11 + $0x68] sm:$0xff] %vm4148, %v4129
        %4163 = vst.msk [vmem:[%s11 + $0x70] sm:$0xff] %vm4148, %v4130
        %4164 = vst.msk [vmem:[%s11 + $0x78] sm:$0xff] %vm4148, %v4131
        %4165 = vst.msk [vmem:[%s11 + $0x80] sm:$0xff] %vm4148, %v4132
        %4166 = vst.msk [vmem:[%s11 + $0x88] sm:$0xff] %vm4148, %v4133
        %4167 = vst.msk [vmem:[%s11 + $0x90] sm:$0xff] %vm4148, %v4134
        %4168 = vst.msk [vmem:[%s11 + $0x98] sm:$0xff] %vm4148, %v4135
        %4169 = vst.msk [vmem:[%s11 + $0xa0] sm:$0xff] %vm4148, %v4136
        %4170 = vst.msk [vmem:[%s11 + $0xa8] sm:$0xff] %vm4148, %v4137
        %4171 = vst.msk [vmem:[%s11 + $0xb0] sm:$0xff] %vm4148, %v4138
        %4172 = vst.msk [vmem:[%s11 + $0xb8] sm:$0xff] %vm4148, %v4139
        %4173 = vst.msk [vmem:[%s11 + $0xc0] sm:$0xff] %vm4148, %v4140
        %4174 = vst.msk [vmem:[%s11 + $0xc8] sm:$0xff] %vm4148, %v4141
        %4175 = vst.msk [vmem:[%s11 + $0xd0] sm:$0xff] %vm4148, %v4142
        %4176 = vst.msk [vmem:[%s11 + $0xd8] sm:$0xff] %vm4148, %v4143
        %4177 = vst.msk [vmem:[%s11 + $0xe0] sm:$0xff] %vm4148, %v4144
        %4178 = vst.msk [vmem:[%s11 + $0xe8] sm:$0xff] %vm4148, %v4145
        %4179 = vst.msk [vmem:[%s11 + $0xf0] sm:$0xff] %vm4148, %v4146
        %4180 = vst.msk [vmem:[%s11 + $0xf8] sm:$0xff] %vm4148, %v4147
      $region110: #{tpu_custom_call.1} parent=59 // pred_fallthru
        _
      // Predicated region
      $region111: #{tpu_custom_call.1} parent=59 // pred_check
        %p4181 = pneg %p302
      $region112: #{tpu_custom_call.1} parent=59 // pred_check_branch
        %4183 = sbr.rel (%p4181) target = $region114
      $region113: #{tpu_custom_call.1} parent=59 // pred_region
        _
      $region114: #{tpu_custom_call.1} parent=59 // pred_fallthru
        _
      // Predicated region
      $region115: #{tpu_custom_call.1} parent=59 // pred_check
        %p4184 = pneg %p302
      $region116: #{tpu_custom_call.1} parent=59 // pred_check_branch
        %4186 = sbr.rel (%p4184) target = $region118
      $region117: #{tpu_custom_call.1} parent=59 // pred_region
        _
      $region118: #{tpu_custom_call.1} parent=59 // pred_fallthru
        _
    $region60: #{tpu_custom_call.1} parent=5 // pred_fallthru
      _
    %p4187 = scmp.le.s32.totalorder 2, %s17
    // Predicated region
    $region119: #{tpu_custom_call.1} parent=5 // pred_check
      %p4188 = pneg %p4187
    $region120: #{tpu_custom_call.1} parent=5 // pred_check_branch
      %4190 = sbr.rel (%p4188) target = $region122
    $region121: #{tpu_custom_call.1} parent=5 // pred_region
      %s4191 = ssub.s32 %s17, 2
    $region122: #{tpu_custom_call.1} parent=5 // pred_fallthru
      _
  $region6: #{tpu_custom_call.1} parent=0 // loop_footer
    %s21 = sadd.s32 1, %s17
  $region7: #{tpu_custom_call.1} parent=0 // loop_footer_branch
    %16 = sbr.rel target = $region3
  $region8: #{tpu_custom_call.1} parent=0 // loop_exit
    _
  %4192 = vsyncmov [#allocation6]
  %s4193 = vpop.sfrf %4192
  %p4194 = scmp.eq.s32.totalorder %s4193, 0
  %p4195 = pneg %p4194
  %4197 = shalt.err (%p4195)

</llo_original>
